<compile_context>
chip_gen: v6e
topology: v6e:2x2x1
jax: 0.10.0
libtpu: 0.0.40
codegen_flags: <defaults>
</compile_context>

<pallas_src>
import jax
import jax.numpy as jnp
from jax.experimental import pallas as pl
from jax.experimental.pallas import tpu as pltpu

H = W = 80
CIN = 3
KH = KW = 3
HIDDEN = 100
HID_PAD = 128              # HIDDEN padded to a full 128-lane tile
NCLASS = 2
FEAT = H * W               # 6400 = 50 * 128  -> lane-dense
PADL = W + 1               # 81: max |flat tap offset| for a 3x3 / pad-1 conv
NK = 2                     # grid steps over the contraction (w1 DMA overlap)
CHUNK = FEAT // NK         # 3200: multiple of lcm(80,128) -> masks k-independent
XLEN = FEAT + 2 * PADL     # 6562: haloed flat input length


# ----------------------------------------------------------------------------
# Fused kernel: conv (flat domain) + Linear+ReLU+Linear+Softmax
# ----------------------------------------------------------------------------
def mainnet_kernel(xpf_ref, wsum_ref, cb_ref, mask_ref, w1q_ref, w1s_ref,
                   b1_ref, w2t_ref, b2_ref, feat_ref, dom_ref, acc_ref):
    # xpf_ref : (B, XLEN)       f32   haloed flat input (resident, DMA'd once)
    # wsum_ref: (9,)            f32   channel-summed 3x3 conv weights (SMEM)
    # cb_ref  : (1,)            f32   conv bias (SMEM)
    # mask_ref: (2, CHUNK)      f32   row0 = left-tap-ok, row1 = right-tap-ok
    # w1q_ref : (CHUNK, 128)    int8  chunk of quantized Linear-1 weights
    # w1s_ref : (1, 128)        f32   per-output-column dequant scales
    # b1_ref  : (1, 128)        f32   Linear-1 bias (zero-padded)
    # w2t_ref : (2, 128)        f32   Linear-2 weights, transposed + zero-padded
    # b2_ref  : (2,)            f32   Linear-2 bias (SMEM)
    # feat_ref: (B, CHUNK)      f32   lane-dense conv output chunk (output)
    # dom_ref : (B, 2)          f32   softmax output (written on last step)
    # acc_ref : (B, 128)        f32   Linear-1 accumulator (scratch)
    k = pl.program_id(0)

    lmask = mask_ref[0:1, :]          # (1, CHUNK)   0/1, col >= 1
    rmask = mask_ref[1:2, :]          # (1, CHUNK)   0/1, col <= W-2

    # ---- 3x3/stride-1/pad-1 conv computed in the flat pixel domain:
    #      out[j] = sum_{dy,dx} x_flat[j + dy*W + dx] * wsum[dy+1, dx+1].
    # Row padding is handled by the 81-zero halo baked into xpf on the host;
    # column wrap-around is removed with ONE precomputed mask per dx side.
    # The pl.when over kk keeps every tap slice offset a static integer.
    for kk in range(NK):
        @pl.when(k == kk)
        def _conv(kk=kk):
            base = kk * CHUNK                              # static Python int

            def dx_taps(dx):                               # sum over dy for one dx
                s = None
                for dy in (-1, 0, 1):
                    off = base + PADL + dy * W + dx        # static lane offset
                    t = xpf_ref[:, off:off + CHUNK] * wsum_ref[(dy + 1) * KW + (dx + 1)]
                    s = t if s is None else s + t
                return s

            feat_ref[...] = (dx_taps(0)
                             + dx_taps(-1) * lmask
                             + dx_taps(1) * rmask
                             + cb_ref[0])                  # lane-dense store

    feat_c = feat_ref[...]                                 # (B, CHUNK) f32

    # ---- Linear(6400 -> 100), accumulated over the K chunks.
    # int8 weights are widened to bf16 on the VPU (storage/DMA format only);
    # MXU accumulates in f32; per-column dequant scale applied in _finish.
    @pl.when(k == 0)
    def _init():
        acc_ref[...] = jnp.zeros_like(acc_ref)

    acc_ref[...] += jnp.dot(feat_c.astype(jnp.bfloat16),
                            w1q_ref[...].astype(jnp.bfloat16),
                            preferred_element_type=jnp.float32)

    # ---- last step: dequant + bias + ReLU, Linear(100 -> 2) on VPU/XLU, softmax.
    @pl.when(k == pl.num_programs(0) - 1)
    def _finish():
        h = jnp.maximum(acc_ref[...] * w1s_ref[...] + b1_ref[...], 0.0)  # (B,128)
        l0 = jnp.sum(h * w2t_ref[0:1, :], axis=-1, keepdims=True) + b2_ref[0]
        l1 = jnp.sum(h * w2t_ref[1:2, :], axis=-1, keepdims=True) + b2_ref[1]
        m = jnp.maximum(l0, l1)
        e0 = jnp.exp(l0 - m)
        e1 = jnp.exp(l1 - m)
        inv = pl.reciprocal(e0 + e1, approx=True)                        # EUP slot
        dom_ref[:, 0:1] = e0 * inv
        dom_ref[:, 1:2] = e1 * inv


# ----------------------------------------------------------------------------
# Wrapper
# ----------------------------------------------------------------------------
def mainnet_forward(x, kp):
    """x: (B, 1, 80, 80) f32 -> (feat_r (B,1,80,80), dom (B,2))."""
    B = x.shape[0]
    x_flat = x.reshape(B, FEAT).astype(jnp.float32)
    xpf = jnp.pad(x_flat, ((0, 0), (PADL, PADL)))       # (B, XLEN) 81-zero halo

    grid_spec = pltpu.PrefetchScalarGridSpec(
        num_scalar_prefetch=0,
        grid=(NK,),
        in_specs=[
            pl.BlockSpec((B, XLEN), lambda k: (0, 0)),                  # haloed x (resident)
            pl.BlockSpec(memory_space=pltpu.MemorySpace.SMEM),          # wsum (9,)
            pl.BlockSpec(memory_space=pltpu.MemorySpace.SMEM),          # conv_b (1,)
            pl.BlockSpec((2, CHUNK), lambda k: (0, 0)),                 # border masks
            pl.BlockSpec((CHUNK, HID_PAD), lambda k: (k, 0)),           # w1 (int8)
            pl.BlockSpec((1, HID_PAD), lambda k: (0, 0)),               # w1 scales
            pl.BlockSpec((1, HID_PAD), lambda k: (0, 0)),               # b1
            pl.BlockSpec((NCLASS, HID_PAD), lambda k: (0, 0)),          # w2^T
            pl.BlockSpec(memory_space=pltpu.MemorySpace.SMEM),          # b2 (2,)
        ],
        out_specs=[
            pl.BlockSpec((B, CHUNK), lambda k: (0, k)),                 # feat (lane-dense)
            pl.BlockSpec((B, NCLASS), lambda k: (0, 0)),                # dom (resident)
        ],
        scratch_shapes=[pltpu.VMEM((B, HID_PAD), jnp.float32)],
    )

    cost = pl.CostEstimate(
        flops=2 * B * FEAT * HID_PAD + 2 * 9 * B * FEAT,      # matmul + conv taps
        transcendentals=2 * B,                                 # softmax exps
        bytes_accessed=(FEAT * HID_PAD                         # int8 w1 (dominant)
                        + B * XLEN * 4                         # haloed input
                        + 2 * CHUNK * 4                        # masks
                        + (HID_PAD * 4) * 4                    # scales/b1/w2t
                        + B * FEAT * 4 + B * NCLASS * 4),      # outputs
    )

    feat_flat, dom = pl.pallas_call(
        mainnet_kernel,
        out_shape=(jax.ShapeDtypeStruct((B, FEAT), jnp.float32),
                   jax.ShapeDtypeStruct((B, NCLASS), jnp.float32)),
        grid_spec=grid_spec,
        compiler_params=pltpu.CompilerParams(
            dimension_semantics=("arbitrary",)),   # reduction axis; keep on one core
        cost_estimate=cost,
    )(xpf, kp["wsum"], kp["conv_b"], kp["masks"], kp["w1q"], kp["w1s"],
      kp["b1p"], kp["w2t"], kp["b2"])

    feat_r = feat_flat.reshape(B, 1, H, W)   # free row-major view of same buffer
    return feat_r, dom


# ----------------------------------------------------------------------------
# Parameters
# ----------------------------------------------------------------------------
def init_params(key):
    ks = jax.random.split(key, 6)
    return {
        "conv_w": jax.random.normal(ks[0], (CIN, KH, KW), jnp.float32) * 0.1,
        "conv_b": jax.random.normal(ks[1], (1,), jnp.float32) * 0.01,
        "w1": jax.random.normal(ks[2], (FEAT, HIDDEN), jnp.float32) * 0.02,
        "b1": jax.random.normal(ks[3], (HIDDEN,), jnp.float32) * 0.01,
        "w2": jax.random.normal(ks[4], (HIDDEN, NCLASS), jnp.float32) * 0.1,
        "b2": jax.random.normal(ks[5], (NCLASS,), jnp.float32) * 0.01,
    }


def pack_params(p):
    """One-time repack into the kernel-facing layouts (done outside jit)."""
    # x is channel-broadcast, so the 3-channel conv == single conv with summed w.
    wsum = p["conv_w"].sum(axis=0).reshape(KH * KW)
    # int8 symmetric per-output-column quantization of w1 (padded to 128 cols).
    w1p = jnp.pad(p["w1"], ((0, 0), (0, HID_PAD - HIDDEN)))           # (FEAT,128) f32
    w1s = jnp.max(jnp.abs(w1p), axis=0) / 127.0                       # (128,)
    w1s = jnp.where(w1s == 0.0, 1.0, w1s)                             # padded cols
    w1q = jnp.clip(jnp.round(w1p / w1s), -127.0, 127.0).astype(jnp.int8)
    # Precomputed 0/1 border masks (k-independent because CHUNK % W == 0).
    col = jnp.arange(CHUNK) % W
    masks = jnp.stack([(col >= 1).astype(jnp.float32),                # dx = -1 valid
                       (col <= W - 2).astype(jnp.float32)], axis=0)   # dx = +1 valid
    b1p = jnp.pad(p["b1"], (0, HID_PAD - HIDDEN)).reshape(1, HID_PAD)
    w2t = jnp.pad(p["w2"].T, ((0, 0), (0, HID_PAD - HIDDEN)))         # (2, 128)
    return {"wsum": wsum, "conv_b": p["conv_b"], "masks": masks,
            "w1q": w1q, "w1s": w1s.reshape(1, HID_PAD), "b1p": b1p,
            "w2t": w2t, "b2": p["b2"]}


# ----------------------------------------------------------------------------
# Pure-JAX reference (same stand-in conv, same int8+bf16 weight quantization)
# ----------------------------------------------------------------------------
def reference_forward(x, p, kp):
    B = x.shape[0]
    x3 = jnp.broadcast_to(x, (B, CIN, H, W)).astype(jnp.float32)
    xp = jnp.pad(x3, ((0, 0), (0, 0), (1, 1), (1, 1)))
    feat = jnp.zeros((B, H, W), jnp.float32)
    for c in range(CIN):
        for ky in range(KH):
            for kx in range(KW):
                feat = feat + xp[:, c, ky:ky + H, kx:kx + W] * p["conv_w"][c, ky, kx]
    feat_r = (feat + p["conv_b"][0])[:, None, :, :]
    f = feat_r.reshape(B, FEAT)
    acc = jnp.dot(f.astype(jnp.bfloat16), kp["w1q"].astype(jnp.bfloat16),
                  preferred_element_type=jnp.float32)
    h = jnp.maximum(acc * kp["w1s"] + jnp.pad(p["b1"], (0, HID_PAD - HIDDEN)), 0.0)
    logits = h[:, :HIDDEN] @ p["w2"] + p["b2"]
    return feat_r, jax.nn.softmax(logits, axis=-1)


if __name__ == "__main__":
    key = jax.random.PRNGKey(0)
    pkey, xkey = jax.random.split(key)
    params = init_params(pkey)
    packed = pack_params(params)

    B = 2
    x = jax.random.normal(xkey, (B, 1, H, W), jnp.float32)

    feat_r, dom = jax.jit(mainnet_forward)(x, packed)
    jax.block_until_ready((feat_r, dom))

    ref_feat, ref_dom = reference_forward(x, params, packed)

    assert feat_r.shape == (B, 1, H, W)
    assert dom.shape == (B, NCLASS)
    assert bool(jnp.allclose(feat_r, ref_feat, rtol=1e-4, atol=1e-4))
    assert bool(jnp.allclose(dom, ref_dom, rtol=1e-2, atol=1e-2))
    assert bool(jnp.all(jnp.abs(jnp.sum(dom, axis=-1) - 1.0) < 1e-2))

    print("KERNEL_OK")
</pallas_src>

<mosaic_0001>
module attributes {stable_mosaic.version = 11 : i64} {
  func.func @mainnet_kernel(%arg0: i32, %arg1: memref<2x6562xf32, #tpu.memory_space<vmem>>, %arg2: memref<9xf32, #tpu.memory_space<smem>>, %arg3: memref<1xf32, #tpu.memory_space<smem>>, %arg4: memref<2x3200xf32, #tpu.memory_space<vmem>>, %arg5: memref<3200x128xi8, #tpu.memory_space<vmem>>, %arg6: memref<1x128xf32, #tpu.memory_space<vmem>>, %arg7: memref<1x128xf32, #tpu.memory_space<vmem>>, %arg8: memref<2x128xf32, #tpu.memory_space<vmem>>, %arg9: memref<2xf32, #tpu.memory_space<smem>>, %arg10: memref<2x3200xf32, #tpu.memory_space<vmem>>, %arg11: memref<2x2xf32, #tpu.memory_space<vmem>>, %arg12: memref<2x128xf32, #tpu.memory_space<vmem>>) attributes {dimension_semantics = [#tpu.dimension_semantics<arbitrary>], iteration_bounds = array<i64: 2>, scalar_prefetch = 0 : i64, scratch_operands = 1 : i64, tpu.core_type = #tpu.core_type<tc>, window_params = [{pipeline_mode = #tpu.pipeline_mode<synchronous>, transform_indices = @transform_0, window_bounds = array<i64: 2, 6562>}, {transform_indices = @transform_1, window_bounds = array<i64: 9>}, {transform_indices = @transform_2, window_bounds = array<i64: 1>}, {pipeline_mode = #tpu.pipeline_mode<synchronous>, transform_indices = @transform_3, window_bounds = array<i64: 2, 3200>}, {transform_indices = @transform_4, window_bounds = array<i64: 3200, 128>}, {pipeline_mode = #tpu.pipeline_mode<synchronous>, transform_indices = @transform_5, window_bounds = array<i64: 1, 128>}, {pipeline_mode = #tpu.pipeline_mode<synchronous>, transform_indices = @transform_6, window_bounds = array<i64: 1, 128>}, {pipeline_mode = #tpu.pipeline_mode<synchronous>, transform_indices = @transform_7, window_bounds = array<i64: 2, 128>}, {transform_indices = @transform_8, window_bounds = array<i64: 2>}, {transform_indices = @transform_9, window_bounds = array<i64: 2, 3200>}, {pipeline_mode = #tpu.pipeline_mode<synchronous>, transform_indices = @transform_10, window_bounds = array<i64: 2, 2>}]} {
    %c0 = arith.constant 0 : index
    %c0_0 = arith.constant 0 : index
    %0 = vector.load %arg4[%c0, %c0_0] : memref<2x3200xf32, #tpu.memory_space<vmem>>, vector<1x3200xf32>
    %c1 = arith.constant 1 : index
    %c0_1 = arith.constant 0 : index
    %1 = vector.load %arg4[%c1, %c0_1] : memref<2x3200xf32, #tpu.memory_space<vmem>>, vector<1x3200xf32>
    %c0_i32 = arith.constant 0 : i32
    %2 = arith.cmpi eq, %arg0, %c0_i32 : i32
    %3 = arith.extui %2 : i1 to i32
    %c0_i32_2 = arith.constant 0 : i32
    %4 = arith.cmpi ne, %3, %c0_i32_2 : i32
    scf.if %4 {
      %c0_16 = arith.constant 0 : index
      %c1_17 = arith.constant 1 : index
      %22 = vector.load %arg1[%c0_16, %c1_17] : memref<2x6562xf32, #tpu.memory_space<vmem>>, vector<2x3200xf32>
      %c1_18 = arith.constant 1 : index
      %23 = memref.load %arg2[%c1_18] : memref<9xf32, #tpu.memory_space<smem>>
      %24 = vector.broadcast %23 : f32 to vector<2x3200xf32>
      %25 = arith.mulf %22, %24 : vector<2x3200xf32>
      %c0_19 = arith.constant 0 : index
      %c81 = arith.constant 81 : index
      %26 = vector.load %arg1[%c0_19, %c81] : memref<2x6562xf32, #tpu.memory_space<vmem>>, vector<2x3200xf32>
      %c4 = arith.constant 4 : index
      %27 = memref.load %arg2[%c4] : memref<9xf32, #tpu.memory_space<smem>>
      %28 = vector.broadcast %27 : f32 to vector<2x3200xf32>
      %29 = arith.mulf %26, %28 : vector<2x3200xf32>
      %30 = arith.addf %25, %29 : vector<2x3200xf32>
      %c0_20 = arith.constant 0 : index
      %c161 = arith.constant 161 : index
      %31 = vector.load %arg1[%c0_20, %c161] : memref<2x6562xf32, #tpu.memory_space<vmem>>, vector<2x3200xf32>
      %c7 = arith.constant 7 : index
      %32 = memref.load %arg2[%c7] : memref<9xf32, #tpu.memory_space<smem>>
      %33 = vector.broadcast %32 : f32 to vector<2x3200xf32>
      %34 = arith.mulf %31, %33 : vector<2x3200xf32>
      %35 = arith.addf %30, %34 : vector<2x3200xf32>
      %c0_21 = arith.constant 0 : index
      %c0_22 = arith.constant 0 : index
      %36 = vector.load %arg1[%c0_21, %c0_22] : memref<2x6562xf32, #tpu.memory_space<vmem>>, vector<2x3200xf32>
      %c0_23 = arith.constant 0 : index
      %37 = memref.load %arg2[%c0_23] : memref<9xf32, #tpu.memory_space<smem>>
      %38 = vector.broadcast %37 : f32 to vector<2x3200xf32>
      %39 = arith.mulf %36, %38 : vector<2x3200xf32>
      %c0_24 = arith.constant 0 : index
      %c80 = arith.constant 80 : index
      %40 = vector.load %arg1[%c0_24, %c80] : memref<2x6562xf32, #tpu.memory_space<vmem>>, vector<2x3200xf32>
      %c3 = arith.constant 3 : index
      %41 = memref.load %arg2[%c3] : memref<9xf32, #tpu.memory_space<smem>>
      %42 = vector.broadcast %41 : f32 to vector<2x3200xf32>
      %43 = arith.mulf %40, %42 : vector<2x3200xf32>
      %44 = arith.addf %39, %43 : vector<2x3200xf32>
      %c0_25 = arith.constant 0 : index
      %c160 = arith.constant 160 : index
      %45 = vector.load %arg1[%c0_25, %c160] : memref<2x6562xf32, #tpu.memory_space<vmem>>, vector<2x3200xf32>
      %c6 = arith.constant 6 : index
      %46 = memref.load %arg2[%c6] : memref<9xf32, #tpu.memory_space<smem>>
      %47 = vector.broadcast %46 : f32 to vector<2x3200xf32>
      %48 = arith.mulf %45, %47 : vector<2x3200xf32>
      %49 = arith.addf %44, %48 : vector<2x3200xf32>
      %50 = vector.broadcast %0 : vector<1x3200xf32> to vector<2x3200xf32>
      %51 = arith.mulf %49, %50 : vector<2x3200xf32>
      %52 = arith.addf %35, %51 : vector<2x3200xf32>
      %c0_26 = arith.constant 0 : index
      %c2 = arith.constant 2 : index
      %53 = vector.load %arg1[%c0_26, %c2] : memref<2x6562xf32, #tpu.memory_space<vmem>>, vector<2x3200xf32>
      %c2_27 = arith.constant 2 : index
      %54 = memref.load %arg2[%c2_27] : memref<9xf32, #tpu.memory_space<smem>>
      %55 = vector.broadcast %54 : f32 to vector<2x3200xf32>
      %56 = arith.mulf %53, %55 : vector<2x3200xf32>
      %c0_28 = arith.constant 0 : index
      %c82 = arith.constant 82 : index
      %57 = vector.load %arg1[%c0_28, %c82] : memref<2x6562xf32, #tpu.memory_space<vmem>>, vector<2x3200xf32>
      %c5 = arith.constant 5 : index
      %58 = memref.load %arg2[%c5] : memref<9xf32, #tpu.memory_space<smem>>
      %59 = vector.broadcast %58 : f32 to vector<2x3200xf32>
      %60 = arith.mulf %57, %59 : vector<2x3200xf32>
      %61 = arith.addf %56, %60 : vector<2x3200xf32>
      %c0_29 = arith.constant 0 : index
      %c162 = arith.constant 162 : index
      %62 = vector.load %arg1[%c0_29, %c162] : memref<2x6562xf32, #tpu.memory_space<vmem>>, vector<2x3200xf32>
      %c8 = arith.constant 8 : index
      %63 = memref.load %arg2[%c8] : memref<9xf32, #tpu.memory_space<smem>>
      %64 = vector.broadcast %63 : f32 to vector<2x3200xf32>
      %65 = arith.mulf %62, %64 : vector<2x3200xf32>
      %66 = arith.addf %61, %65 : vector<2x3200xf32>
      %67 = vector.broadcast %1 : vector<1x3200xf32> to vector<2x3200xf32>
      %68 = arith.mulf %66, %67 : vector<2x3200xf32>
      %69 = arith.addf %52, %68 : vector<2x3200xf32>
      %c0_30 = arith.constant 0 : index
      %70 = memref.load %arg3[%c0_30] : memref<1xf32, #tpu.memory_space<smem>>
      %71 = vector.broadcast %70 : f32 to vector<2x3200xf32>
      %72 = arith.addf %69, %71 : vector<2x3200xf32>
      %c0_31 = arith.constant 0 : index
      %c0_32 = arith.constant 0 : index
      %73 = vector.load %arg10[%c0_31, %c0_32] : memref<2x3200xf32, #tpu.memory_space<vmem>>, vector<2x3200xf32>
      tpu.vector_store %arg10[%c0_31, %c0_32], %72 {strides = array<i32>} : memref<2x3200xf32, #tpu.memory_space<vmem>>, vector<2x3200xf32>,
    } else {
    }
    %c1_i32 = arith.constant 1 : i32
    %5 = arith.cmpi eq, %arg0, %c1_i32 : i32
    %6 = arith.extui %5 : i1 to i32
    %c0_i32_3 = arith.constant 0 : i32
    %7 = arith.cmpi ne, %6, %c0_i32_3 : i32
    scf.if %7 {
      %c0_16 = arith.constant 0 : index
      %c3201 = arith.constant 3201 : index
      %22 = vector.load %arg1[%c0_16, %c3201] : memref<2x6562xf32, #tpu.memory_space<vmem>>, vector<2x3200xf32>
      %c1_17 = arith.constant 1 : index
      %23 = memref.load %arg2[%c1_17] : memref<9xf32, #tpu.memory_space<smem>>
      %24 = vector.broadcast %23 : f32 to vector<2x3200xf32>
      %25 = arith.mulf %22, %24 : vector<2x3200xf32>
      %c0_18 = arith.constant 0 : index
      %c3281 = arith.constant 3281 : index
      %26 = vector.load %arg1[%c0_18, %c3281] : memref<2x6562xf32, #tpu.memory_space<vmem>>, vector<2x3200xf32>
      %c4 = arith.constant 4 : index
      %27 = memref.load %arg2[%c4] : memref<9xf32, #tpu.memory_space<smem>>
      %28 = vector.broadcast %27 : f32 to vector<2x3200xf32>
      %29 = arith.mulf %26, %28 : vector<2x3200xf32>
      %30 = arith.addf %25, %29 : vector<2x3200xf32>
      %c0_19 = arith.constant 0 : index
      %c3361 = arith.constant 3361 : index
      %31 = vector.load %arg1[%c0_19, %c3361] : memref<2x6562xf32, #tpu.memory_space<vmem>>, vector<2x3200xf32>
      %c7 = arith.constant 7 : index
      %32 = memref.load %arg2[%c7] : memref<9xf32, #tpu.memory_space<smem>>
      %33 = vector.broadcast %32 : f32 to vector<2x3200xf32>
      %34 = arith.mulf %31, %33 : vector<2x3200xf32>
      %35 = arith.addf %30, %34 : vector<2x3200xf32>
      %c0_20 = arith.constant 0 : index
      %c3200 = arith.constant 3200 : index
      %36 = vector.load %arg1[%c0_20, %c3200] : memref<2x6562xf32, #tpu.memory_space<vmem>>, vector<2x3200xf32>
      %c0_21 = arith.constant 0 : index
      %37 = memref.load %arg2[%c0_21] : memref<9xf32, #tpu.memory_space<smem>>
      %38 = vector.broadcast %37 : f32 to vector<2x3200xf32>
      %39 = arith.mulf %36, %38 : vector<2x3200xf32>
      %c0_22 = arith.constant 0 : index
      %c3280 = arith.constant 3280 : index
      %40 = vector.load %arg1[%c0_22, %c3280] : memref<2x6562xf32, #tpu.memory_space<vmem>>, vector<2x3200xf32>
      %c3 = arith.constant 3 : index
      %41 = memref.load %arg2[%c3] : memref<9xf32, #tpu.memory_space<smem>>
      %42 = vector.broadcast %41 : f32 to vector<2x3200xf32>
      %43 = arith.mulf %40, %42 : vector<2x3200xf32>
      %44 = arith.addf %39, %43 : vector<2x3200xf32>
      %c0_23 = arith.constant 0 : index
      %c3360 = arith.constant 3360 : index
      %45 = vector.load %arg1[%c0_23, %c3360] : memref<2x6562xf32, #tpu.memory_space<vmem>>, vector<2x3200xf32>
      %c6 = arith.constant 6 : index
      %46 = memref.load %arg2[%c6] : memref<9xf32, #tpu.memory_space<smem>>
      %47 = vector.broadcast %46 : f32 to vector<2x3200xf32>
      %48 = arith.mulf %45, %47 : vector<2x3200xf32>
      %49 = arith.addf %44, %48 : vector<2x3200xf32>
      %50 = vector.broadcast %0 : vector<1x3200xf32> to vector<2x3200xf32>
      %51 = arith.mulf %49, %50 : vector<2x3200xf32>
      %52 = arith.addf %35, %51 : vector<2x3200xf32>
      %c0_24 = arith.constant 0 : index
      %c3202 = arith.constant 3202 : index
      %53 = vector.load %arg1[%c0_24, %c3202] : memref<2x6562xf32, #tpu.memory_space<vmem>>, vector<2x3200xf32>
      %c2 = arith.constant 2 : index
      %54 = memref.load %arg2[%c2] : memref<9xf32, #tpu.memory_space<smem>>
      %55 = vector.broadcast %54 : f32 to vector<2x3200xf32>
      %56 = arith.mulf %53, %55 : vector<2x3200xf32>
      %c0_25 = arith.constant 0 : index
      %c3282 = arith.constant 3282 : index
      %57 = vector.load %arg1[%c0_25, %c3282] : memref<2x6562xf32, #tpu.memory_space<vmem>>, vector<2x3200xf32>
      %c5 = arith.constant 5 : index
      %58 = memref.load %arg2[%c5] : memref<9xf32, #tpu.memory_space<smem>>
      %59 = vector.broadcast %58 : f32 to vector<2x3200xf32>
      %60 = arith.mulf %57, %59 : vector<2x3200xf32>
      %61 = arith.addf %56, %60 : vector<2x3200xf32>
      %c0_26 = arith.constant 0 : index
      %c3362 = arith.constant 3362 : index
      %62 = vector.load %arg1[%c0_26, %c3362] : memref<2x6562xf32, #tpu.memory_space<vmem>>, vector<2x3200xf32>
      %c8 = arith.constant 8 : index
      %63 = memref.load %arg2[%c8] : memref<9xf32, #tpu.memory_space<smem>>
      %64 = vector.broadcast %63 : f32 to vector<2x3200xf32>
      %65 = arith.mulf %62, %64 : vector<2x3200xf32>
      %66 = arith.addf %61, %65 : vector<2x3200xf32>
      %67 = vector.broadcast %1 : vector<1x3200xf32> to vector<2x3200xf32>
      %68 = arith.mulf %66, %67 : vector<2x3200xf32>
      %69 = arith.addf %52, %68 : vector<2x3200xf32>
      %c0_27 = arith.constant 0 : index
      %70 = memref.load %arg3[%c0_27] : memref<1xf32, #tpu.memory_space<smem>>
      %71 = vector.broadcast %70 : f32 to vector<2x3200xf32>
      %72 = arith.addf %69, %71 : vector<2x3200xf32>
      %c0_28 = arith.constant 0 : index
      %c0_29 = arith.constant 0 : index
      %73 = vector.load %arg10[%c0_28, %c0_29] : memref<2x3200xf32, #tpu.memory_space<vmem>>, vector<2x3200xf32>
      tpu.vector_store %arg10[%c0_28, %c0_29], %72 {strides = array<i32>} : memref<2x3200xf32, #tpu.memory_space<vmem>>, vector<2x3200xf32>,
    } else {
    }
    %c0_4 = arith.constant 0 : index
    %c0_5 = arith.constant 0 : index
    %8 = vector.load %arg10[%c0_4, %c0_5] : memref<2x3200xf32, #tpu.memory_space<vmem>>, vector<2x3200xf32>
    %c0_i32_6 = arith.constant 0 : i32
    %9 = arith.cmpi eq, %arg0, %c0_i32_6 : i32
    %10 = arith.extui %9 : i1 to i32
    %c0_i32_7 = arith.constant 0 : i32
    %11 = arith.cmpi ne, %10, %c0_i32_7 : i32
    scf.if %11 {
      %cst_16 = arith.constant 0.000000e+00 : f32
      %22 = vector.broadcast %cst_16 : f32 to vector<2x128xf32>
      %c0_17 = arith.constant 0 : index
      %c0_18 = arith.constant 0 : index
      %23 = vector.load %arg12[%c0_17, %c0_18] : memref<2x128xf32, #tpu.memory_space<vmem>>, vector<2x128xf32>
      tpu.vector_store %arg12[%c0_17, %c0_18], %22 {strides = array<i32>} : memref<2x128xf32, #tpu.memory_space<vmem>>, vector<2x128xf32>,
    } else {
    }
    %c0_8 = arith.constant 0 : index
    %c0_9 = arith.constant 0 : index
    %12 = vector.load %arg12[%c0_8, %c0_9] : memref<2x128xf32, #tpu.memory_space<vmem>>, vector<2x128xf32>
    %13 = arith.truncf %8 : vector<2x3200xf32> to vector<2x3200xbf16>
    %c0_10 = arith.constant 0 : index
    %c0_11 = arith.constant 0 : index
    %14 = vector.load %arg5[%c0_10, %c0_11] : memref<3200x128xi8, #tpu.memory_space<vmem>>, vector<3200x128xi8>
    %15 = arith.sitofp %14 : vector<3200x128xi8> to vector<3200x128xbf16>
    %cst = arith.constant dense<0.000000e+00> : vector<2x128xf32>
    %16 = tpu.matmul %13, %15, %cst {dimension_numbers = #tpu.dot_dimension_numbers<[1], [0], [0], [1], [0, 0, 1, 1], [], []>} : vector<2x3200xbf16>, vector<3200x128xbf16>, vector<2x128xf32> -> vector<2x128xf32>
    %17 = arith.addf %12, %16 : vector<2x128xf32>
    %c0_12 = arith.constant 0 : index
    %c0_13 = arith.constant 0 : index
    %18 = vector.load %arg12[%c0_12, %c0_13] : memref<2x128xf32, #tpu.memory_space<vmem>>, vector<2x128xf32>
    tpu.vector_store %arg12[%c0_12, %c0_13], %17 {strides = array<i32>} : memref<2x128xf32, #tpu.memory_space<vmem>>, vector<2x128xf32>,
    %c1_i32_14 = arith.constant 1 : i32
    %19 = arith.cmpi eq, %arg0, %c1_i32_14 : i32
    %20 = arith.extui %19 : i1 to i32
    %c0_i32_15 = arith.constant 0 : i32
    %21 = arith.cmpi ne, %20, %c0_i32_15 : i32
    scf.if %21 {
      %c0_16 = arith.constant 0 : index
      %c0_17 = arith.constant 0 : index
      %22 = vector.load %arg12[%c0_16, %c0_17] : memref<2x128xf32, #tpu.memory_space<vmem>>, vector<2x128xf32>
      %c0_18 = arith.constant 0 : index
      %c0_19 = arith.constant 0 : index
      %23 = vector.load %arg6[%c0_18, %c0_19] : memref<1x128xf32, #tpu.memory_space<vmem>>, vector<1x128xf32>
      %24 = vector.broadcast %23 : vector<1x128xf32> to vector<2x128xf32>
      %25 = arith.mulf %22, %24 : vector<2x128xf32>
      %c0_20 = arith.constant 0 : index
      %c0_21 = arith.constant 0 : index
      %26 = vector.load %arg7[%c0_20, %c0_21] : memref<1x128xf32, #tpu.memory_space<vmem>>, vector<1x128xf32>
      %27 = vector.broadcast %26 : vector<1x128xf32> to vector<2x128xf32>
      %28 = arith.addf %25, %27 : vector<2x128xf32>
      %cst_22 = arith.constant 0.000000e+00 : f32
      %29 = vector.broadcast %cst_22 : f32 to vector<2x128xf32>
      %30 = arith.maximumf %28, %29 : vector<2x128xf32>
      %c0_23 = arith.constant 0 : index
      %c0_24 = arith.constant 0 : index
      %31 = vector.load %arg8[%c0_23, %c0_24] : memref<2x128xf32, #tpu.memory_space<vmem>>, vector<1x128xf32>
      %32 = vector.broadcast %31 : vector<1x128xf32> to vector<2x128xf32>
      %33 = arith.mulf %30, %32 : vector<2x128xf32>
      %cst_25 = arith.constant dense<0.000000e+00> : vector<2xf32>
      %34 = vector.multi_reduction <add>, %33, %cst_25 [1] : vector<2x128xf32> to vector<2xf32>
      %35 = vector.shape_cast %34 : vector<2xf32> to vector<2x1xf32>
      %c0_26 = arith.constant 0 : index
      %36 = memref.load %arg9[%c0_26] : memref<2xf32, #tpu.memory_space<smem>>
      %37 = vector.broadcast %36 : f32 to vector<2x1xf32>
      %38 = arith.addf %35, %37 : vector<2x1xf32>
      %c1_27 = arith.constant 1 : index
      %c0_28 = arith.constant 0 : index
      %39 = vector.load %arg8[%c1_27, %c0_28] : memref<2x128xf32, #tpu.memory_space<vmem>>, vector<1x128xf32>
      %40 = vector.broadcast %39 : vector<1x128xf32> to vector<2x128xf32>
      %41 = arith.mulf %30, %40 : vector<2x128xf32>
      %cst_29 = arith.constant dense<0.000000e+00> : vector<2xf32>
      %42 = vector.multi_reduction <add>, %41, %cst_29 [1] : vector<2x128xf32> to vector<2xf32>
      %43 = vector.shape_cast %42 : vector<2xf32> to vector<2x1xf32>
      %c1_30 = arith.constant 1 : index
      %44 = memref.load %arg9[%c1_30] : memref<2xf32, #tpu.memory_space<smem>>
      %45 = vector.broadcast %44 : f32 to vector<2x1xf32>
      %46 = arith.addf %43, %45 : vector<2x1xf32>
      %47 = arith.maximumf %38, %46 : vector<2x1xf32>
      %48 = arith.subf %38, %47 : vector<2x1xf32>
      %49 = math.exp %48 : vector<2x1xf32>
      %50 = arith.subf %46, %47 : vector<2x1xf32>
      %51 = math.exp %50 : vector<2x1xf32>
      %52 = arith.addf %49, %51 : vector<2x1xf32>
      %53 = tpu.reciprocal %52 {approx = true} : vector<2x1xf32> -> vector<2x1xf32>
      %54 = arith.mulf %49, %53 : vector<2x1xf32>
      %c0_31 = arith.constant 0 : index
      %c0_32 = arith.constant 0 : index
      %55 = vector.load %arg11[%c0_31, %c0_32] : memref<2x2xf32, #tpu.memory_space<vmem>>, vector<2x1xf32>
      tpu.vector_store %arg11[%c0_31, %c0_32], %54 {strides = array<i32>} : memref<2x2xf32, #tpu.memory_space<vmem>>, vector<2x1xf32>,
      %56 = arith.mulf %51, %53 : vector<2x1xf32>
      %c0_33 = arith.constant 0 : index
      %c1_34 = arith.constant 1 : index
      %57 = vector.load %arg11[%c0_33, %c1_34] : memref<2x2xf32, #tpu.memory_space<vmem>>, vector<2x1xf32>
      tpu.vector_store %arg11[%c0_33, %c1_34], %56 {strides = array<i32>} : memref<2x2xf32, #tpu.memory_space<vmem>>, vector<2x1xf32>,
    } else {
    }
    return
  }
  func.func @transform_0(%arg0: i32) -> (i32, i32) {
    %c0_i32 = arith.constant 0 : i32
    %c0_i32_0 = arith.constant 0 : i32
    %c0_i32_1 = arith.constant 0 : i32
    return %c0_i32, %c0_i32_0 : i32, i32
  }
  func.func @transform_1(%arg0: i32) -> i32 {
    %c0_i32 = arith.constant 0 : i32
    %c0_i32_0 = arith.constant 0 : i32
    return %c0_i32 : i32
  }
  func.func @transform_2(%arg0: i32) -> i32 {
    %c0_i32 = arith.constant 0 : i32
    %c0_i32_0 = arith.constant 0 : i32
    return %c0_i32 : i32
  }
  func.func @transform_3(%arg0: i32) -> (i32, i32) {
    %c0_i32 = arith.constant 0 : i32
    %c0_i32_0 = arith.constant 0 : i32
    %c0_i32_1 = arith.constant 0 : i32
    return %c0_i32, %c0_i32_0 : i32, i32
  }
  func.func @transform_4(%arg0: i32) -> (i32, i32) {
    %c0_i32 = arith.constant 0 : i32
    %c0_i32_0 = arith.constant 0 : i32
    return %arg0, %c0_i32 : i32, i32
  }
  func.func @transform_5(%arg0: i32) -> (i32, i32) {
    %c0_i32 = arith.constant 0 : i32
    %c0_i32_0 = arith.constant 0 : i32
    %c0_i32_1 = arith.constant 0 : i32
    return %c0_i32, %c0_i32_0 : i32, i32
  }
  func.func @transform_6(%arg0: i32) -> (i32, i32) {
    %c0_i32 = arith.constant 0 : i32
    %c0_i32_0 = arith.constant 0 : i32
    %c0_i32_1 = arith.constant 0 : i32
    return %c0_i32, %c0_i32_0 : i32, i32
  }
  func.func @transform_7(%arg0: i32) -> (i32, i32) {
    %c0_i32 = arith.constant 0 : i32
    %c0_i32_0 = arith.constant 0 : i32
    %c0_i32_1 = arith.constant 0 : i32
    return %c0_i32, %c0_i32_0 : i32, i32
  }
  func.func @transform_8(%arg0: i32) -> i32 {
    %c0_i32 = arith.constant 0 : i32
    %c0_i32_0 = arith.constant 0 : i32
    return %c0_i32 : i32
  }
  func.func @transform_9(%arg0: i32) -> (i32, i32) {
    %c0_i32 = arith.constant 0 : i32
    %c0_i32_0 = arith.constant 0 : i32
    return %c0_i32, %arg0 : i32, i32
  }
  func.func @transform_10(%arg0: i32) -> (i32, i32) {
    %c0_i32 = arith.constant 0 : i32
    %c0_i32_0 = arith.constant 0 : i32
    %c0_i32_1 = arith.constant 0 : i32
    return %c0_i32, %c0_i32_0 : i32, i32
  }
}

</mosaic_0001>

<llo_original>
// kernel: mainnet_forward.1
$region0: #{mainnet_forward.1}
  #allocation0 [shape = 'u32[]', space=smem, size = 0x4, offset = 0x4, fixed_abs, tag = 'smem constant byte address 0x4 - core index']
  #allocation1 [shape = 'u32[144,128]{1,0:T(1,128)}', space=vmem, size = 0x12000, scoped, tag = 'internal scratch']
  #allocation2 [shape = 'f32[2,128]{1,0:T(2,128)}', space=vmem, size = 0x400, scoped, tag = 'scratch operand']
  #allocation3 [shape = 'f32[1]{0:T(128)S(6)}', space=smem, size = 0x200, scoped, tag = 'scoped memory for mainnet_forward.1']
  %s0 = inlined_call_operand.vmem [shape: f32[2,6562], index: 0, kind: input, shape index: {}]
  %s1 = inlined_call_operand.vmem [shape: f32[9], index: 1, kind: input, shape index: {}]
  %s2 = inlined_call_operand.<no memory space> [shape: f32[1], index: 2, kind: input, shape index: {}]
  %s3 = inlined_call_operand.vmem [shape: f32[2,3200], index: 3, kind: input, shape index: {}]
  %s4 = inlined_call_operand.hbm [shape: s8[6400,128], index: 4, kind: input, shape index: {}]
  %s5 = inlined_call_operand.vmem [shape: f32[1,128], index: 5, kind: input, shape index: {}]
  %s6 = inlined_call_operand.vmem [shape: f32[1,128], index: 6, kind: input, shape index: {}]
  %s7 = inlined_call_operand.vmem [shape: f32[2,128], index: 7, kind: input, shape index: {}]
  %s8 = inlined_call_operand.vmem [shape: f32[2], index: 8, kind: input, shape index: {}]
  %s9 = inlined_call_operand.vmem [shape: f32[2,6400], index: 9, kind: output, shape index: {0}]
  %s10 = inlined_call_operand.hbm [shape: f32[2,2], index: 10, kind: output, shape index: {1}]
  %11 = xla_tuple %s9, %s10
  %s12 = sld [smem:[#allocation0]]
  $region105: #{mainnet_forward.1} parent=0
    _
  %s14 = ssub.s32 1, %s12
  %s15 = scalar_select 0, %s14, %s12
  %16 = sst [smem:[#allocation3]] %s2
  $region1: #{mainnet_forward.1} parent=0
    #allocation4 [shape = 'u8[512]{0}', space=smem, size = 0x200, scoped, tag = 'input window, operand 1, single buffered']
    #allocation5 [shape = 's32[2]{0}', space=sflag, size = 0x8, scoped, tag = 'scoped memory for mainnet_forward.1']
    #allocation6 [shape = 's32[2]{0}', space=sflag, size = 0x8, scoped, tag = 'scoped memory for mainnet_forward.1']
    #allocation7 [shape = 's32[2]{0}', space=sflag, size = 0x8, scoped, tag = 'scoped memory for mainnet_forward.1']
    #allocation8 [shape = 'u8[819200]{0}', space=vmem, size = 0xc8000, scoped, tag = 'input window, operand 4']
    #allocation9 [shape = 'u8[512]{0}', space=smem, size = 0x200, scoped, tag = 'input window, operand 8, single buffered']
    #allocation10 [shape = 's32[1]{0}', space=sflag, size = 0x4, scoped, tag = 'scoped memory for mainnet_forward.1']
    #allocation11 [shape = 'u8[1024]{0}', space=vmem, size = 0x400, scoped, tag = 'output window, operand 1, single buffered']
    %17 = vsyncpa [#allocation7], 0
    %18 = vsyncpa [#allocation5], 0
    %s19 = scalar_lea.sflag [#allocation5], 1
    %20 = vsyncpa %s19, 0
    %21 = vsyncpa [#allocation10], 0
    %22 = vsyncpa [#allocation6], 0
    loop: start=0, step=1, limit=4
    $region2: #{mainnet_forward.1} parent=1 // loop_pre_header
      _
    $region3: #{mainnet_forward.1} parent=1 // loop_header
      %s24 = sphi 0, %s28
      %p25 = scmp.ge.s32.totalorder %s24, 4
      %s32 = sphi 0, %s32
      %s34 = sphi 0, %s32
      %s35 = sphi 0, %s34
      %s49 = sphi 0, %s35
      %s53 = sphi 0, %s53
      %s55 = sphi 0, %s53
      %s56 = sphi 0, %s55
      %s70 = sphi 0, %s56
      %s74 = sphi 0, %s74
      %s76 = sphi 0, %s74
      %s77 = sphi 0, %s76
      %s91 = sphi 0, %s77
      %s95 = sphi 0, %s95
      %s97 = sphi 0, %s95
      %s98 = sphi 0, %s97
      %s112 = sphi 0, %s98
      %s118 = sphi 0, %s120
      %s121 = sphi 0, %s118
      %s122 = sphi 0, %s121
      %s138 = sphi 0, %s122
      %s142 = sphi 0, %s142
      %s144 = sphi 0, %s142
      %s145 = sphi 0, %s144
      %s159 = sphi 0, %s145
      %s163 = sphi 0, %s163
      %s165 = sphi 0, %s163
      %s166 = sphi 0, %s165
      %s180 = sphi 0, %s166
      %s184 = sphi 0, %s184
      %s186 = sphi 0, %s184
      %s187 = sphi 0, %s186
      %s201 = sphi 0, %s187
      %s205 = sphi 0, %s205
      %s207 = sphi 0, %s205
      %s208 = sphi 0, %s207
      %s222 = sphi 0, %s208
      %s228 = sphi 0, %s230
      %s231 = sphi 0, %s228
      %s232 = sphi 0, %s231
      %s248 = sphi 0, %s232
      %s252 = sphi 0, %s252
      %s254 = sphi 0, %s252
      %s255 = sphi 0, %s254
      %s269 = sphi 0, %s255
    $region4: #{mainnet_forward.1} parent=1 // loop_header_branch
      %27 = sbr.rel (%p25) target = $region8
    $region5: #{mainnet_forward.1} parent=1 // loop_body
      %s29 = ssub.s32 %s24, 1
      %s30 = ssub.s32 %s24, 2
      %s31 = sadd.s32 %s24, 1
      %s33 = sadd.s32 %s32, 1
      %p36 = scmp.eq.s32.totalorder %s24, 1
      %p37 = scmp.ne.s32.totalorder %s32, %s34
      %p38 = scmp.eq.s32.totalorder %s24, 0
      %p39 = por %p37, %p38
      %p40 = scmp.ne.s32.totalorder %s32, %s34
      %p41 = scmp.eq.s32.totalorder %s29, 1
      %p42 = por %p40, %p41
      %p43 = scmp.ne.s32.totalorder %s34, %s35
      %p44 = scmp.eq.s32.totalorder %s29, 0
      %p45 = por %p43, %p44
      %p46 = scmp.ne.s32.totalorder %s34, %s35
      %p47 = scmp.eq.s32.totalorder %s30, 1
      %p48 = por %p46, %p47
      %p50 = scmp.ne.s32.totalorder %s35, %s49
      %p51 = scmp.eq.s32.totalorder %s30, 0
      %p52 = por %p50, %p51
      %s54 = sadd.s32 %s53, 1
      %p57 = scmp.eq.s32.totalorder %s24, 1
      %p58 = scmp.ne.s32.totalorder %s53, %s55
      %p59 = scmp.eq.s32.totalorder %s24, 0
      %p60 = por %p58, %p59
      %p61 = scmp.ne.s32.totalorder %s53, %s55
      %p62 = scmp.eq.s32.totalorder %s29, 1
      %p63 = por %p61, %p62
      %p64 = scmp.ne.s32.totalorder %s55, %s56
      %p65 = scmp.eq.s32.totalorder %s29, 0
      %p66 = por %p64, %p65
      %p67 = scmp.ne.s32.totalorder %s55, %s56
      %p68 = scmp.eq.s32.totalorder %s30, 1
      %p69 = por %p67, %p68
      %p71 = scmp.ne.s32.totalorder %s56, %s70
      %p72 = scmp.eq.s32.totalorder %s30, 0
      %p73 = por %p71, %p72
      %s75 = sadd.s32 %s74, 1
      %p78 = scmp.eq.s32.totalorder %s24, 1
      %p79 = scmp.ne.s32.totalorder %s74, %s76
      %p80 = scmp.eq.s32.totalorder %s24, 0
      %p81 = por %p79, %p80
      %p82 = scmp.ne.s32.totalorder %s74, %s76
      %p83 = scmp.eq.s32.totalorder %s29, 1
      %p84 = por %p82, %p83
      %p85 = scmp.ne.s32.totalorder %s76, %s77
      %p86 = scmp.eq.s32.totalorder %s29, 0
      %p87 = por %p85, %p86
      %p88 = scmp.ne.s32.totalorder %s76, %s77
      %p89 = scmp.eq.s32.totalorder %s30, 1
      %p90 = por %p88, %p89
      %p92 = scmp.ne.s32.totalorder %s77, %s91
      %p93 = scmp.eq.s32.totalorder %s30, 0
      %p94 = por %p92, %p93
      %s96 = sadd.s32 %s95, 1
      %p99 = scmp.eq.s32.totalorder %s24, 1
      %p100 = scmp.ne.s32.totalorder %s95, %s97
      %p101 = scmp.eq.s32.totalorder %s24, 0
      %p102 = por %p100, %p101
      %p103 = scmp.ne.s32.totalorder %s95, %s97
      %p104 = scmp.eq.s32.totalorder %s29, 1
      %p105 = por %p103, %p104
      %p106 = scmp.ne.s32.totalorder %s97, %s98
      %p107 = scmp.eq.s32.totalorder %s29, 0
      %p108 = por %p106, %p107
      %p109 = scmp.ne.s32.totalorder %s97, %s98
      %p110 = scmp.eq.s32.totalorder %s30, 1
      %p111 = por %p109, %p110
      %p113 = scmp.ne.s32.totalorder %s98, %s112
      %p114 = scmp.eq.s32.totalorder %s30, 0
      %p115 = por %p113, %p114
      %s116 = ssub.s32 %s24, %s31
      %p117 = scmp.eq.s32.totalorder %s116, 0
      %s119 = sadd.s32 %s118, 1
      %s120 = scalar_select %p117, %s118, %s119
      %p123 = pneg %p117
      %p124 = scmp.eq.s32.totalorder %s24, 1
      %p125 = por %p123, %p124
      %p126 = scmp.ne.s32.totalorder %s118, %s121
      %p127 = scmp.eq.s32.totalorder %s24, 0
      %p128 = por %p126, %p127
      %p129 = scmp.ne.s32.totalorder %s118, %s121
      %p130 = scmp.eq.s32.totalorder %s29, 1
      %p131 = por %p129, %p130
      %p132 = scmp.ne.s32.totalorder %s121, %s122
      %p133 = scmp.eq.s32.totalorder %s29, 0
      %p134 = por %p132, %p133
      %p135 = scmp.ne.s32.totalorder %s121, %s122
      %p136 = scmp.eq.s32.totalorder %s30, 1
      %p137 = por %p135, %p136
      %p139 = scmp.ne.s32.totalorder %s122, %s138
      %p140 = scmp.eq.s32.totalorder %s30, 0
      %p141 = por %p139, %p140
      %s143 = sadd.s32 %s142, 1
      %p146 = scmp.eq.s32.totalorder %s24, 1
      %p147 = scmp.ne.s32.totalorder %s142, %s144
      %p148 = scmp.eq.s32.totalorder %s24, 0
      %p149 = por %p147, %p148
      %p150 = scmp.ne.s32.totalorder %s142, %s144
      %p151 = scmp.eq.s32.totalorder %s29, 1
      %p152 = por %p150, %p151
      %p153 = scmp.ne.s32.totalorder %s144, %s145
      %p154 = scmp.eq.s32.totalorder %s29, 0
      %p155 = por %p153, %p154
      %p156 = scmp.ne.s32.totalorder %s144, %s145
      %p157 = scmp.eq.s32.totalorder %s30, 1
      %p158 = por %p156, %p157
      %p160 = scmp.ne.s32.totalorder %s145, %s159
      %p161 = scmp.eq.s32.totalorder %s30, 0
      %p162 = por %p160, %p161
      %s164 = sadd.s32 %s163, 1
      %p167 = scmp.eq.s32.totalorder %s24, 1
      %p168 = scmp.ne.s32.totalorder %s163, %s165
      %p169 = scmp.eq.s32.totalorder %s24, 0
      %p170 = por %p168, %p169
      %p171 = scmp.ne.s32.totalorder %s163, %s165
      %p172 = scmp.eq.s32.totalorder %s29, 1
      %p173 = por %p171, %p172
      %p174 = scmp.ne.s32.totalorder %s165, %s166
      %p175 = scmp.eq.s32.totalorder %s29, 0
      %p176 = por %p174, %p175
      %p177 = scmp.ne.s32.totalorder %s165, %s166
      %p178 = scmp.eq.s32.totalorder %s30, 1
      %p179 = por %p177, %p178
      %p181 = scmp.ne.s32.totalorder %s166, %s180
      %p182 = scmp.eq.s32.totalorder %s30, 0
      %p183 = por %p181, %p182
      %s185 = sadd.s32 %s184, 1
      %p188 = scmp.eq.s32.totalorder %s24, 1
      %p189 = scmp.ne.s32.totalorder %s184, %s186
      %p190 = scmp.eq.s32.totalorder %s24, 0
      %p191 = por %p189, %p190
      %p192 = scmp.ne.s32.totalorder %s184, %s186
      %p193 = scmp.eq.s32.totalorder %s29, 1
      %p194 = por %p192, %p193
      %p195 = scmp.ne.s32.totalorder %s186, %s187
      %p196 = scmp.eq.s32.totalorder %s29, 0
      %p197 = por %p195, %p196
      %p198 = scmp.ne.s32.totalorder %s186, %s187
      %p199 = scmp.eq.s32.totalorder %s30, 1
      %p200 = por %p198, %p199
      %p202 = scmp.ne.s32.totalorder %s187, %s201
      %p203 = scmp.eq.s32.totalorder %s30, 0
      %p204 = por %p202, %p203
      %s206 = sadd.s32 %s205, 1
      %p209 = scmp.eq.s32.totalorder %s24, 1
      %p210 = scmp.ne.s32.totalorder %s205, %s207
      %p211 = scmp.eq.s32.totalorder %s24, 0
      %p212 = por %p210, %p211
      %p213 = scmp.ne.s32.totalorder %s205, %s207
      %p214 = scmp.eq.s32.totalorder %s29, 1
      %p215 = por %p213, %p214
      %p216 = scmp.ne.s32.totalorder %s207, %s208
      %p217 = scmp.eq.s32.totalorder %s29, 0
      %p218 = por %p216, %p217
      %p219 = scmp.ne.s32.totalorder %s207, %s208
      %p220 = scmp.eq.s32.totalorder %s30, 1
      %p221 = por %p219, %p220
      %p223 = scmp.ne.s32.totalorder %s208, %s222
      %p224 = scmp.eq.s32.totalorder %s30, 0
      %p225 = por %p223, %p224
      %s226 = ssub.s32 %s24, %s31
      %p227 = scmp.eq.s32.totalorder %s226, 0
      %s229 = sadd.s32 %s228, 1
      %s230 = scalar_select %p227, %s228, %s229
      %p233 = pneg %p227
      %p234 = scmp.eq.s32.totalorder %s24, 1
      %p235 = por %p233, %p234
      %p236 = scmp.ne.s32.totalorder %s228, %s231
      %p237 = scmp.eq.s32.totalorder %s24, 0
      %p238 = por %p236, %p237
      %p239 = scmp.ne.s32.totalorder %s228, %s231
      %p240 = scmp.eq.s32.totalorder %s29, 1
      %p241 = por %p239, %p240
      %p242 = scmp.ne.s32.totalorder %s231, %s232
      %p243 = scmp.eq.s32.totalorder %s29, 0
      %p244 = por %p242, %p243
      %p245 = scmp.ne.s32.totalorder %s231, %s232
      %p246 = scmp.eq.s32.totalorder %s30, 1
      %p247 = por %p245, %p246
      %p249 = scmp.ne.s32.totalorder %s232, %s248
      %p250 = scmp.eq.s32.totalorder %s30, 0
      %p251 = por %p249, %p250
      %s253 = sadd.s32 %s252, 1
      %p256 = scmp.eq.s32.totalorder %s24, 1
      %p257 = scmp.ne.s32.totalorder %s252, %s254
      %p258 = scmp.eq.s32.totalorder %s24, 0
      %p259 = por %p257, %p258
      %p260 = scmp.ne.s32.totalorder %s252, %s254
      %p261 = scmp.eq.s32.totalorder %s29, 1
      %p262 = por %p260, %p261
      %p263 = scmp.ne.s32.totalorder %s254, %s255
      %p264 = scmp.eq.s32.totalorder %s29, 0
      %p265 = por %p263, %p264
      %p266 = scmp.ne.s32.totalorder %s254, %s255
      %p267 = scmp.eq.s32.totalorder %s30, 1
      %p268 = por %p266, %p267
      %p270 = scmp.ne.s32.totalorder %s255, %s269
      %p271 = scmp.eq.s32.totalorder %s30, 0
      %p272 = por %p270, %p271
      %p273 = scmp.le.s32.totalorder 1, %s24
      %p274 = scmp.lt.s32.totalorder %s24, 3
      %p275 = pnand %p273, %p274
      %p276 = pneg %p275
      // Predicated region
      $region9: #{mainnet_forward.1} parent=5 // pred_check
        _
      $region10: #{mainnet_forward.1} parent=5 // pred_check_branch
        %278 = sbr.rel (%p275) target = $region12
      $region11: #{mainnet_forward.1} parent=5 // pred_region
        %s279 = ssub.s32 %s24, 1
        // Predicated region
        $region13: #{mainnet_forward.1} parent=11 // pred_check
          %p280 = pneg %p45
        $region14: #{mainnet_forward.1} parent=11 // pred_check_branch
          %282 = sbr.rel (%p280) target = $region16
        $region15: #{mainnet_forward.1} parent=11 // pred_region
          _
        $region16: #{mainnet_forward.1} parent=11 // pred_fallthru
          _
        // Predicated region
        $region17: #{mainnet_forward.1} parent=11 // pred_check
          %p283 = pneg %p66
        $region18: #{mainnet_forward.1} parent=11 // pred_check_branch
          %285 = sbr.rel (%p283) target = $region20
        $region19: #{mainnet_forward.1} parent=11 // pred_region
          %s287 = ssub.s32 16, 16
          %288 = vsyncadd [#allocation7], %s287
          %s290 = sshll.u32 %s1, 4
          %s291 = int_to_ptr.vmem [resolvable:$true] %s290
          %293 = dma.vmem_to_smem %s291, 16, [#allocation4], [#allocation7]
        $region20: #{mainnet_forward.1} parent=11 // pred_fallthru
          _
        // Predicated region
        $region21: #{mainnet_forward.1} parent=11 // pred_check
          %p294 = pneg %p87
        $region22: #{mainnet_forward.1} parent=11 // pred_check_branch
          %296 = sbr.rel (%p294) target = $region24
        $region23: #{mainnet_forward.1} parent=11 // pred_region
          _
        $region24: #{mainnet_forward.1} parent=11 // pred_fallthru
          _
        // Predicated region
        $region25: #{mainnet_forward.1} parent=11 // pred_check
          %p297 = pneg %p108
        $region26: #{mainnet_forward.1} parent=11 // pred_check_branch
          %299 = sbr.rel (%p297) target = $region28
        $region27: #{mainnet_forward.1} parent=11 // pred_region
          _
        $region28: #{mainnet_forward.1} parent=11 // pred_fallthru
          _
        // Predicated region
        $region29: #{mainnet_forward.1} parent=11 // pred_check
          %p300 = pneg %p155
        $region30: #{mainnet_forward.1} parent=11 // pred_check_branch
          %302 = sbr.rel (%p300) target = $region32
        $region31: #{mainnet_forward.1} parent=11 // pred_region
          _
        $region32: #{mainnet_forward.1} parent=11 // pred_fallthru
          _
        // Predicated region
        $region33: #{mainnet_forward.1} parent=11 // pred_check
          %p303 = pneg %p176
        $region34: #{mainnet_forward.1} parent=11 // pred_check_branch
          %305 = sbr.rel (%p303) target = $region36
        $region35: #{mainnet_forward.1} parent=11 // pred_region
          _
        $region36: #{mainnet_forward.1} parent=11 // pred_fallthru
          _
        // Predicated region
        $region37: #{mainnet_forward.1} parent=11 // pred_check
          %p306 = pneg %p197
        $region38: #{mainnet_forward.1} parent=11 // pred_check_branch
          %308 = sbr.rel (%p306) target = $region40
        $region39: #{mainnet_forward.1} parent=11 // pred_region
          _
        $region40: #{mainnet_forward.1} parent=11 // pred_fallthru
          _
        // Predicated region
        $region41: #{mainnet_forward.1} parent=11 // pred_check
          %p309 = pneg %p218
        $region42: #{mainnet_forward.1} parent=11 // pred_check_branch
          %311 = sbr.rel (%p309) target = $region44
        $region43: #{mainnet_forward.1} parent=11 // pred_region
          %s313 = ssub.s32 16, 16
          %314 = vsyncadd [#allocation10], %s313
          %s316 = sshll.u32 %s8, 4
          %s317 = int_to_ptr.vmem [resolvable:$true] %s316
          %319 = dma.vmem_to_smem %s317, 16, [#allocation9], [#allocation10]
        $region44: #{mainnet_forward.1} parent=11 // pred_fallthru
          _
      $region12: #{mainnet_forward.1} parent=5 // pred_fallthru
        _
      %p320 = scmp.lt.s32.totalorder %s24, 2
      // Predicated region
      $region45: #{mainnet_forward.1} parent=5 // pred_check
        %p321 = pneg %p320
      $region46: #{mainnet_forward.1} parent=5 // pred_check_branch
        %323 = sbr.rel (%p321) target = $region48
      $region47: #{mainnet_forward.1} parent=5 // pred_region
        // Predicated region
        $region49: #{mainnet_forward.1} parent=47 // pred_check
          %p324 = pneg %p128
        $region50: #{mainnet_forward.1} parent=47 // pred_check_branch
          %326 = sbr.rel (%p324) target = $region52
        $region51: #{mainnet_forward.1} parent=47 // pred_region
          %s327 = sand.u32 %s118, 1
          %s328 = scalar_lea.sflag [#allocation5], %s327
          %s329 = sand.u32 %s118, 1
          %s330 = smul.addr %s329, 800
          %s331 = scalar_lea.vmem [#allocation8], %s330
          %s332 = smul.u32 100, %s24
          %s334 = ssub.s32 12800, 12800
          %335 = vsyncadd %s328, %s334
          %s336 = smul.addr %s332, 128
          %s337 = scalar_lea.hbm %s4, %s336
          %s338 = sshll.u32 %s331, 4
          %s339 = int_to_ptr.vmem [resolvable:$true] %s338
          %344 = dma.hbm_to_vmem [thread:$0]  %s337, 12800, %s339, %s328, 128, 128, 8
        $region52: #{mainnet_forward.1} parent=47 // pred_fallthru
          _
      $region48: #{mainnet_forward.1} parent=5 // pred_fallthru
        _
      %p345 = scmp.le.s32.totalorder 1, %s24
      %p346 = scmp.lt.s32.totalorder %s24, 3
      %p347 = pnand %p345, %p346
      %p348 = pneg %p347
      // Predicated region
      $region53: #{mainnet_forward.1} parent=5 // pred_check
        _
      $region54: #{mainnet_forward.1} parent=5 // pred_check_branch
        %350 = sbr.rel (%p347) target = $region56
      $region55: #{mainnet_forward.1} parent=5 // pred_region
        %s351 = ssub.s32 %s24, 1
        // Predicated region
        $region57: #{mainnet_forward.1} parent=55 // pred_check
          %p352 = pneg %p66
        $region58: #{mainnet_forward.1} parent=55 // pred_check_branch
          %354 = sbr.rel (%p352) target = $region60
        $region59: #{mainnet_forward.1} parent=55 // pred_region
          %355 = dma.done [#allocation7], 16
        $region60: #{mainnet_forward.1} parent=55 // pred_fallthru
          _
        %s356 = sand.u32 %s121, 1
        %s357 = scalar_lea.sflag [#allocation5], %s356
        %s358 = sand.u32 %s121, 1
        %s359 = smul.addr %s358, 800
        %s360 = scalar_lea.vmem [#allocation8], %s359
        // Predicated region
        $region61: #{mainnet_forward.1} parent=55 // pred_check
          %p361 = pneg %p134
        $region62: #{mainnet_forward.1} parent=55 // pred_check_branch
          %363 = sbr.rel (%p361) target = $region64
        $region63: #{mainnet_forward.1} parent=55 // pred_region
          %364 = dma.done %s357, 12800
        $region64: #{mainnet_forward.1} parent=55 // pred_fallthru
          _
        // Predicated region
        $region65: #{mainnet_forward.1} parent=55 // pred_check
          %p365 = pneg %p218
        $region66: #{mainnet_forward.1} parent=55 // pred_check_branch
          %367 = sbr.rel (%p365) target = $region68
        $region67: #{mainnet_forward.1} parent=55 // pred_region
          %368 = dma.done [#allocation10], 16
        $region68: #{mainnet_forward.1} parent=55 // pred_fallthru
          _
        %369 = sfence
        %p370 = pneg %p45
        %p371 = pneg %p42
        %p372 = pneg %p66
        %p373 = pneg %p63
        %p374 = pneg %p87
        %p375 = pneg %p84
        %p376 = pneg %p108
        %p377 = pneg %p105
        %s378 = sand.u32 %s121, 1
        %s379 = scalar_lea.sflag [#allocation5], %s378
        %s380 = sand.u32 %s121, 1
        %s381 = smul.addr %s380, 800
        %s382 = scalar_lea.vmem [#allocation8], %s381
        %p383 = pneg %p134
        %p384 = pneg %p131
        %p385 = pneg %p155
        %p386 = pneg %p152
        %p387 = pneg %p176
        %p388 = pneg %p173
        %p389 = pneg %p197
        %p390 = pneg %p194
        %p391 = pneg %p218
        %p392 = pneg %p215
        %p393 = pneg %p244
        %p394 = pneg %p241
        %s395 = smul.u32 25, %s29
        %p396 = scmp.lt.s32.totalorder %s395, 49
        %s397 = scalar_select %p396, %s395, 49
        %s398 = smul.addr %s397, 2
        %s399 = scalar_lea.vmem %s9, %s398
        %p400 = pneg %p265
        %p401 = pneg %p262
        %s402 = smul.u32 100, %s29
        %s403 = smul.u32 25, %s29
        %p404 = scmp.lt.s32.totalorder %s403, 49
        %s405 = scalar_select %p404, %s403, 49
        %s406 = smul.addr %s405, 2
        %s407 = scalar_lea.vmem %s9, %s406
        %s408 = smul.u32 25, %s29
        %v410 = vld [vmem:[%s3] ss:$2 sm:$0xff]
        %s411 = scalar_lea.vmem %s3, 16
        %v412 = vld [vmem:[%s411] ss:$2 sm:$0xff]
        %s413 = scalar_lea.vmem %s3, 32
        %v414 = vld [vmem:[%s413] ss:$2 sm:$0xff]
        %s415 = scalar_lea.vmem %s3, 48
        %v416 = vld [vmem:[%s415] ss:$2 sm:$0x1]
        %s417 = scalar_lea.vmem %s3, 1
        %v418 = vld [vmem:[%s417] ss:$2 sm:$0xff]
        %s419 = scalar_lea.vmem %s3, 17
        %v420 = vld [vmem:[%s419] ss:$2 sm:$0xff]
        %s421 = scalar_lea.vmem %s3, 33
        %v422 = vld [vmem:[%s421] ss:$2 sm:$0xff]
        %s423 = scalar_lea.vmem %s3, 49
        %v424 = vld [vmem:[%s423] ss:$2 sm:$0x1]
        %p425 = scmp.eq.s32.totalorder %s29, 0
        // Predicated region
        $region69: #{mainnet_forward.1} parent=55 // pred_check
          %p426 = pneg %p425
        $region70: #{mainnet_forward.1} parent=55 // pred_check_branch
          %428 = sbr.rel (%p426) target = $region72
        $region71: #{mainnet_forward.1} parent=55 // pred_region
          %v429 = vld [vmem:[%s0] sm:$0xff]
          %v430 = vld [vmem:[%s0 + $0x8] sm:$0xff]
          %v431 = vld [vmem:[%s0 + $0x10] sm:$0xff]
          %v432 = vld [vmem:[%s0 + $0x18] sm:$0xff]
          %v433 = vld [vmem:[%s0 + $0x20] sm:$0xff]
          %v434 = vld [vmem:[%s0 + $0x28] sm:$0xff]
          %v435 = vld [vmem:[%s0 + $0x30] sm:$0xf]
          %s436 = sld [smem:[#allocation4 + $0x1]]
          %v437 = vstv %s436
          %v438 = vmul.f32 %v429, %v437
          %v439 = vmul.f32 %v430, %v437
          %v440 = vmul.f32 %v431, %v437
          %v441 = vmul.f32 %v432, %v437
          %v442 = vmul.f32 %v433, %v437
          %v443 = vmul.f32 %v434, %v437
          %v444 = vmul.f32 %v435, %v437
          %s445 = sld [smem:[#allocation4 + $0x4]]
          %v446 = vstv %s445
          %v447 = vmul.f32 %v429, %v446
          %v448 = vmul.f32 %v430, %v446
          %v449 = vmul.f32 %v431, %v446
          %v450 = vmul.f32 %v432, %v446
          %v451 = vmul.f32 %v433, %v446
          %v452 = vmul.f32 %v434, %v446
          %v453 = vmul.f32 %v435, %v446
          %461 = vrot.lane.b32.xlu0 %v447, 48
          %v462 = vpop.permute.xlu0 %461
          %463 = vrot.lane.b32.xlu0 %v448, 48
          %v464 = vpop.permute.xlu0 %463
          %465 = vrot.lane.b32.xlu0 %v449, 48
          %v466 = vpop.permute.xlu0 %465
          %467 = vrot.lane.b32.xlu0 %v450, 48
          %v468 = vpop.permute.xlu0 %467
          %469 = vrot.lane.b32.xlu0 %v451, 48
          %v470 = vpop.permute.xlu0 %469
          %471 = vrot.lane.b32.xlu0 %v452, 48
          %v472 = vpop.permute.xlu0 %471
          %473 = vrot.lane.b32.xlu0 %v453, 48
          %v474 = vpop.permute.xlu0 %473
          %v475 = vrot.slane %v462, 2
          %v476 = vrot.slane %v464, 2
          %v477 = vrot.slane %v466, 2
          %v478 = vrot.slane %v468, 2
          %v479 = vrot.slane %v470, 2
          %v480 = vrot.slane %v472, 2
          %v481 = vrot.slane %v474, 2
          %vm482 = vcmask 1045504
          %v483 = vsel %vm482, %v475, %v476
          %vm484 = vcmask 392192
          %v485 = vsel %vm484, %v462, %v483
          %v486 = vsel %vm482, %v476, %v477
          %v487 = vsel %vm484, %v464, %v486
          %v488 = vsel %vm482, %v477, %v478
          %v489 = vsel %vm484, %v466, %v488
          %v490 = vsel %vm482, %v478, %v479
          %v491 = vsel %vm484, %v468, %v490
          %v492 = vsel %vm482, %v479, %v480
          %v493 = vsel %vm484, %v470, %v492
          %v494 = vsel %vm482, %v480, %v481
          %v495 = vsel %vm484, %v472, %v494
          %v496 = vsel %vm484, %v474, %v481
          %v504 = vadd.f32 %v438, %v485
          %v505 = vadd.f32 %v439, %v487
          %v506 = vadd.f32 %v440, %v489
          %v507 = vadd.f32 %v441, %v491
          %v508 = vadd.f32 %v442, %v493
          %v509 = vadd.f32 %v443, %v495
          %v510 = vadd.f32 %v444, %v496
          %v511 = vld [vmem:[%s0 + $0x2] sm:$0xff]
          %v512 = vld [vmem:[%s0 + $0xa] sm:$0xff]
          %v513 = vld [vmem:[%s0 + $0x12] sm:$0xff]
          %v514 = vld [vmem:[%s0 + $0x1a] sm:$0xff]
          %v515 = vld [vmem:[%s0 + $0x22] sm:$0xff]
          %v516 = vld [vmem:[%s0 + $0x2a] sm:$0xff]
          %v517 = vld [vmem:[%s0 + $0x32] sm:$0xf]
          %s518 = sld [smem:[#allocation4 + $0x7]]
          %v519 = vstv %s518
          %v520 = vmul.f32 %v511, %v519
          %v521 = vmul.f32 %v512, %v519
          %v522 = vmul.f32 %v513, %v519
          %v523 = vmul.f32 %v514, %v519
          %v524 = vmul.f32 %v515, %v519
          %v525 = vmul.f32 %v516, %v519
          %v526 = vmul.f32 %v517, %v519
          %534 = vrot.lane.b32.xlu0 %v520, 96
          %v535 = vpop.permute.xlu0 %534
          %536 = vrot.lane.b32.xlu0 %v521, 96
          %v537 = vpop.permute.xlu0 %536
          %538 = vrot.lane.b32.xlu0 %v522, 96
          %v539 = vpop.permute.xlu0 %538
          %540 = vrot.lane.b32.xlu0 %v523, 96
          %v541 = vpop.permute.xlu0 %540
          %542 = vrot.lane.b32.xlu0 %v524, 96
          %v543 = vpop.permute.xlu0 %542
          %544 = vrot.lane.b32.xlu0 %v525, 96
          %v545 = vpop.permute.xlu0 %544
          %546 = vrot.lane.b32.xlu0 %v526, 96
          %v547 = vpop.permute.xlu0 %546
          %v548 = vrot.slane %v535, 2
          %v549 = vrot.slane %v537, 2
          %v550 = vrot.slane %v539, 2
          %v551 = vrot.slane %v541, 2
          %v552 = vrot.slane %v543, 2
          %v553 = vrot.slane %v545, 2
          %v554 = vrot.slane %v547, 2
          %v555 = vsel %vm482, %v548, %v549
          %vm556 = vcmask 785408
          %v557 = vsel %vm556, %v535, %v555
          %v558 = vsel %vm482, %v549, %v550
          %v559 = vsel %vm556, %v537, %v558
          %v560 = vsel %vm482, %v550, %v551
          %v561 = vsel %vm556, %v539, %v560
          %v562 = vsel %vm482, %v551, %v552
          %v563 = vsel %vm556, %v541, %v562
          %v564 = vsel %vm482, %v552, %v553
          %v565 = vsel %vm556, %v543, %v564
          %v566 = vsel %vm482, %v553, %v554
          %v567 = vsel %vm556, %v545, %v566
          %v568 = vsel %vm556, %v547, %v554
          %v576 = vadd.f32 %v504, %v557
          %v577 = vadd.f32 %v505, %v559
          %v578 = vadd.f32 %v506, %v561
          %v579 = vadd.f32 %v507, %v563
          %v580 = vadd.f32 %v508, %v565
          %v581 = vadd.f32 %v509, %v567
          %v582 = vadd.f32 %v510, %v568
          %v583 = vld [vmem:[%s0] sm:$0xff]
          %v584 = vld [vmem:[%s0 + $0x8] sm:$0xff]
          %v585 = vld [vmem:[%s0 + $0x10] sm:$0xff]
          %v586 = vld [vmem:[%s0 + $0x18] sm:$0xff]
          %v587 = vld [vmem:[%s0 + $0x20] sm:$0xff]
          %v588 = vld [vmem:[%s0 + $0x28] sm:$0xff]
          %v589 = vld [vmem:[%s0 + $0x30] sm:$0x3]
          %s590 = sld [smem:[#allocation4]]
          %v591 = vstv %s590
          %v592 = vmul.f32 %v583, %v591
          %v593 = vmul.f32 %v584, %v591
          %v594 = vmul.f32 %v585, %v591
          %v595 = vmul.f32 %v586, %v591
          %v596 = vmul.f32 %v587, %v591
          %v597 = vmul.f32 %v588, %v591
          %v598 = vmul.f32 %v589, %v591
          %s599 = sld [smem:[#allocation4 + $0x3]]
          %v600 = vstv %s599
          %v601 = vmul.f32 %v429, %v600
          %v602 = vmul.f32 %v430, %v600
          %v603 = vmul.f32 %v431, %v600
          %v604 = vmul.f32 %v432, %v600
          %v605 = vmul.f32 %v433, %v600
          %v606 = vmul.f32 %v434, %v600
          %v607 = vmul.f32 %v435, %v600
          %615 = vrot.lane.b32.xlu0 %v601, 48
          %v616 = vpop.permute.xlu0 %615
          %617 = vrot.lane.b32.xlu0 %v602, 48
          %v618 = vpop.permute.xlu0 %617
          %619 = vrot.lane.b32.xlu0 %v603, 48
          %v620 = vpop.permute.xlu0 %619
          %621 = vrot.lane.b32.xlu0 %v604, 48
          %v622 = vpop.permute.xlu0 %621
          %623 = vrot.lane.b32.xlu0 %v605, 48
          %v624 = vpop.permute.xlu0 %623
          %625 = vrot.lane.b32.xlu0 %v606, 48
          %v626 = vpop.permute.xlu0 %625
          %627 = vrot.lane.b32.xlu0 %v607, 48
          %v628 = vpop.permute.xlu0 %627
          %v629 = vrot.slane %v616, 2
          %v630 = vrot.slane %v618, 2
          %v631 = vrot.slane %v620, 2
          %v632 = vrot.slane %v622, 2
          %v633 = vrot.slane %v624, 2
          %v634 = vrot.slane %v626, 2
          %v635 = vrot.slane %v628, 2
          %v636 = vsel %vm482, %v629, %v630
          %v637 = vsel %vm484, %v616, %v636
          %v638 = vsel %vm482, %v630, %v631
          %v639 = vsel %vm484, %v618, %v638
          %v640 = vsel %vm482, %v631, %v632
          %v641 = vsel %vm484, %v620, %v640
          %v642 = vsel %vm482, %v632, %v633
          %v643 = vsel %vm484, %v622, %v642
          %v644 = vsel %vm482, %v633, %v634
          %v645 = vsel %vm484, %v624, %v644
          %v646 = vsel %vm482, %v634, %v635
          %v647 = vsel %vm484, %v626, %v646
          %v648 = vsel %vm484, %v628, %v635
          %v656 = vadd.f32 %v592, %v637
          %v657 = vadd.f32 %v593, %v639
          %v658 = vadd.f32 %v594, %v641
          %v659 = vadd.f32 %v595, %v643
          %v660 = vadd.f32 %v596, %v645
          %v661 = vadd.f32 %v597, %v647
          %v662 = vadd.f32 %v598, %v648
          %s663 = sld [smem:[#allocation4 + $0x6]]
          %v664 = vstv %s663
          %v665 = vmul.f32 %v511, %v664
          %v666 = vmul.f32 %v512, %v664
          %v667 = vmul.f32 %v513, %v664
          %v668 = vmul.f32 %v514, %v664
          %v669 = vmul.f32 %v515, %v664
          %v670 = vmul.f32 %v516, %v664
          %v671 = vmul.f32 %v517, %v664
          %679 = vrot.lane.b32.xlu0 %v665, 96
          %v680 = vpop.permute.xlu0 %679
          %681 = vrot.lane.b32.xlu0 %v666, 96
          %v682 = vpop.permute.xlu0 %681
          %683 = vrot.lane.b32.xlu0 %v667, 96
          %v684 = vpop.permute.xlu0 %683
          %685 = vrot.lane.b32.xlu0 %v668, 96
          %v686 = vpop.permute.xlu0 %685
          %687 = vrot.lane.b32.xlu0 %v669, 96
          %v688 = vpop.permute.xlu0 %687
          %689 = vrot.lane.b32.xlu0 %v670, 96
          %v690 = vpop.permute.xlu0 %689
          %691 = vrot.lane.b32.xlu0 %v671, 96
          %v692 = vpop.permute.xlu0 %691
          %v693 = vrot.slane %v680, 2
          %v694 = vrot.slane %v682, 2
          %v695 = vrot.slane %v684, 2
          %v696 = vrot.slane %v686, 2
          %v697 = vrot.slane %v688, 2
          %v698 = vrot.slane %v690, 2
          %v699 = vrot.slane %v692, 2
          %v700 = vsel %vm482, %v693, %v694
          %v701 = vsel %vm556, %v680, %v700
          %v702 = vsel %vm482, %v694, %v695
          %v703 = vsel %vm556, %v682, %v702
          %v704 = vsel %vm482, %v695, %v696
          %v705 = vsel %vm556, %v684, %v704
          %v706 = vsel %vm482, %v696, %v697
          %v707 = vsel %vm556, %v686, %v706
          %v708 = vsel %vm482, %v697, %v698
          %v709 = vsel %vm556, %v688, %v708
          %v710 = vsel %vm482, %v698, %v699
          %v711 = vsel %vm556, %v690, %v710
          %v712 = vsel %vm556, %v692, %v699
          %v720 = vadd.f32 %v656, %v701
          %v721 = vadd.f32 %v657, %v703
          %v722 = vadd.f32 %v658, %v705
          %v723 = vadd.f32 %v659, %v707
          %v724 = vadd.f32 %v660, %v709
          %v725 = vadd.f32 %v661, %v711
          %v726 = vadd.f32 %v662, %v712
          %v731 = vlaneseq
          %v732 = vshrl.u32 %v731, 7
          %v733 = vsub.s32 0, %v732
          %v734 = vrot.slane %v410, %v733
          %v735 = vlaneseq
          %v736 = vshrl.u32 %v735, 7
          %v737 = vsub.s32 1, %v736
          %v738 = vrot.slane %v410, %v737
          %v739 = vlaneseq
          %v740 = vshrl.u32 %v739, 7
          %v741 = vsub.s32 2, %v740
          %v742 = vrot.slane %v410, %v741
          %v743 = vlaneseq
          %v744 = vshrl.u32 %v743, 7
          %v745 = vsub.s32 3, %v744
          %v746 = vrot.slane %v410, %v745
          %v747 = vlaneseq
          %v748 = vshrl.u32 %v747, 7
          %v749 = vsub.s32 4, %v748
          %v750 = vrot.slane %v410, %v749
          %v751 = vlaneseq
          %v752 = vshrl.u32 %v751, 7
          %v753 = vsub.s32 5, %v752
          %v754 = vrot.slane %v410, %v753
          %v755 = vlaneseq
          %v756 = vshrl.u32 %v755, 7
          %v757 = vsub.s32 6, %v756
          %v758 = vrot.slane %v410, %v757
          %v759 = vlaneseq
          %v760 = vshrl.u32 %v759, 7
          %v761 = vsub.s32 7, %v760
          %v762 = vrot.slane %v410, %v761
          %v763 = vlaneseq
          %v764 = vshrl.u32 %v763, 7
          %v765 = vsub.s32 0, %v764
          %v766 = vrot.slane %v412, %v765
          %v767 = vlaneseq
          %v768 = vshrl.u32 %v767, 7
          %v769 = vsub.s32 1, %v768
          %v770 = vrot.slane %v412, %v769
          %v771 = vlaneseq
          %v772 = vshrl.u32 %v771, 7
          %v773 = vsub.s32 2, %v772
          %v774 = vrot.slane %v412, %v773
          %v775 = vlaneseq
          %v776 = vshrl.u32 %v775, 7
          %v777 = vsub.s32 3, %v776
          %v778 = vrot.slane %v412, %v777
          %v779 = vlaneseq
          %v780 = vshrl.u32 %v779, 7
          %v781 = vsub.s32 4, %v780
          %v782 = vrot.slane %v412, %v781
          %v783 = vlaneseq
          %v784 = vshrl.u32 %v783, 7
          %v785 = vsub.s32 5, %v784
          %v786 = vrot.slane %v412, %v785
          %v787 = vlaneseq
          %v788 = vshrl.u32 %v787, 7
          %v789 = vsub.s32 6, %v788
          %v790 = vrot.slane %v412, %v789
          %v791 = vlaneseq
          %v792 = vshrl.u32 %v791, 7
          %v793 = vsub.s32 7, %v792
          %v794 = vrot.slane %v412, %v793
          %v795 = vlaneseq
          %v796 = vshrl.u32 %v795, 7
          %v797 = vsub.s32 0, %v796
          %v798 = vrot.slane %v414, %v797
          %v799 = vlaneseq
          %v800 = vshrl.u32 %v799, 7
          %v801 = vsub.s32 1, %v800
          %v802 = vrot.slane %v414, %v801
          %v803 = vlaneseq
          %v804 = vshrl.u32 %v803, 7
          %v805 = vsub.s32 2, %v804
          %v806 = vrot.slane %v414, %v805
          %v807 = vlaneseq
          %v808 = vshrl.u32 %v807, 7
          %v809 = vsub.s32 3, %v808
          %v810 = vrot.slane %v414, %v809
          %v811 = vlaneseq
          %v812 = vshrl.u32 %v811, 7
          %v813 = vsub.s32 4, %v812
          %v814 = vrot.slane %v414, %v813
          %v815 = vlaneseq
          %v816 = vshrl.u32 %v815, 7
          %v817 = vsub.s32 5, %v816
          %v818 = vrot.slane %v414, %v817
          %v819 = vlaneseq
          %v820 = vshrl.u32 %v819, 7
          %v821 = vsub.s32 6, %v820
          %v822 = vrot.slane %v414, %v821
          %v823 = vlaneseq
          %v824 = vshrl.u32 %v823, 7
          %v825 = vsub.s32 7, %v824
          %v826 = vrot.slane %v414, %v825
          %v827 = vlaneseq
          %v828 = vshrl.u32 %v827, 7
          %v829 = vsub.s32 0, %v828
          %v830 = vrot.slane %v416, %v829
          %v831 = vcombine.low %v734, %v738
          %v832 = vcombine.low %v742, %v746
          %v834 = vunpack.c.l.s4 1983009808
          %v835 = vunpack.c.0.s8 %v834
          %v836 = vlaneseq
          %v837 = vshrl.u32 %v836, 7
          %v838 = vsub.s32 %v835, %v837
          %v839 = vrot.slane %v831, %v838
          %v841 = vunpack.c.l.s4 1983009808
          %v842 = vunpack.c.0.s8 %v841
          %v843 = vlaneseq
          %v844 = vshrl.u32 %v843, 7
          %v845 = vsub.s32 %v842, %v844
          %v846 = vrot.slane %v832, %v845
          %v847 = vcombine.low %v839, %v846
          %v848 = vcombine.low %v750, %v754
          %v849 = vcombine.low %v758, %v762
          %v851 = vunpack.c.l.s4 1983009808
          %v852 = vunpack.c.0.s8 %v851
          %v853 = vlaneseq
          %v854 = vshrl.u32 %v853, 7
          %v855 = vsub.s32 %v852, %v854
          %v856 = vrot.slane %v848, %v855
          %v858 = vunpack.c.l.s4 1983009808
          %v859 = vunpack.c.0.s8 %v858
          %v860 = vlaneseq
          %v861 = vshrl.u32 %v860, 7
          %v862 = vsub.s32 %v859, %v861
          %v863 = vrot.slane %v849, %v862
          %v864 = vcombine.low %v856, %v863
          %v865 = vcombine.low %v766, %v770
          %v866 = vcombine.low %v774, %v778
          %v868 = vunpack.c.l.s4 1983009808
          %v869 = vunpack.c.0.s8 %v868
          %v870 = vlaneseq
          %v871 = vshrl.u32 %v870, 7
          %v872 = vsub.s32 %v869, %v871
          %v873 = vrot.slane %v865, %v872
          %v875 = vunpack.c.l.s4 1983009808
          %v876 = vunpack.c.0.s8 %v875
          %v877 = vlaneseq
          %v878 = vshrl.u32 %v877, 7
          %v879 = vsub.s32 %v876, %v878
          %v880 = vrot.slane %v866, %v879
          %v881 = vcombine.low %v873, %v880
          %v882 = vcombine.low %v782, %v786
          %v883 = vcombine.low %v790, %v794
          %v885 = vunpack.c.l.s4 1983009808
          %v886 = vunpack.c.0.s8 %v885
          %v887 = vlaneseq
          %v888 = vshrl.u32 %v887, 7
          %v889 = vsub.s32 %v886, %v888
          %v890 = vrot.slane %v882, %v889
          %v892 = vunpack.c.l.s4 1983009808
          %v893 = vunpack.c.0.s8 %v892
          %v894 = vlaneseq
          %v895 = vshrl.u32 %v894, 7
          %v896 = vsub.s32 %v893, %v895
          %v897 = vrot.slane %v883, %v896
          %v898 = vcombine.low %v890, %v897
          %v899 = vcombine.low %v798, %v802
          %v900 = vcombine.low %v806, %v810
          %v902 = vunpack.c.l.s4 1983009808
          %v903 = vunpack.c.0.s8 %v902
          %v904 = vlaneseq
          %v905 = vshrl.u32 %v904, 7
          %v906 = vsub.s32 %v903, %v905
          %v907 = vrot.slane %v899, %v906
          %v909 = vunpack.c.l.s4 1983009808
          %v910 = vunpack.c.0.s8 %v909
          %v911 = vlaneseq
          %v912 = vshrl.u32 %v911, 7
          %v913 = vsub.s32 %v910, %v912
          %v914 = vrot.slane %v900, %v913
          %v915 = vcombine.low %v907, %v914
          %v916 = vcombine.low %v814, %v818
          %v917 = vcombine.low %v822, %v826
          %v919 = vunpack.c.l.s4 1983009808
          %v920 = vunpack.c.0.s8 %v919
          %v921 = vlaneseq
          %v922 = vshrl.u32 %v921, 7
          %v923 = vsub.s32 %v920, %v922
          %v924 = vrot.slane %v916, %v923
          %v926 = vunpack.c.l.s4 1983009808
          %v927 = vunpack.c.0.s8 %v926
          %v928 = vlaneseq
          %v929 = vshrl.u32 %v928, 7
          %v930 = vsub.s32 %v927, %v929
          %v931 = vrot.slane %v917, %v930
          %v932 = vcombine.low %v924, %v931
          %v934 = vunpack.c.l.s4 1983009808
          %v935 = vunpack.c.0.s8 %v934
          %v936 = vlaneseq
          %v937 = vshrl.u32 %v936, 7
          %v938 = vsub.s32 %v935, %v937
          %v939 = vrot.slane %v830, %v938
          %v947 = vmul.f32 %v720, %v847
          %v948 = vmul.f32 %v721, %v864
          %v949 = vmul.f32 %v722, %v881
          %v950 = vmul.f32 %v723, %v898
          %v951 = vmul.f32 %v724, %v915
          %v952 = vmul.f32 %v725, %v932
          %v953 = vmul.f32 %v726, %v939
          %961 = vrot.lane.b32.xlu0 %v947, 1
          %v962 = vpop.permute.xlu0 %961
          %963 = vrot.lane.b32.xlu0 %v948, 1
          %v964 = vpop.permute.xlu0 %963
          %965 = vrot.lane.b32.xlu0 %v949, 1
          %v966 = vpop.permute.xlu0 %965
          %967 = vrot.lane.b32.xlu0 %v950, 1
          %v968 = vpop.permute.xlu0 %967
          %969 = vrot.lane.b32.xlu0 %v951, 1
          %v970 = vpop.permute.xlu0 %969
          %971 = vrot.lane.b32.xlu0 %v952, 1
          %v972 = vpop.permute.xlu0 %971
          %973 = vrot.lane.b32.xlu0 %v953, 1
          %v974 = vpop.permute.xlu0 %973
          %v975 = vrot.slane %v962, 6
          %v976 = vrot.slane %v964, 6
          %v977 = vrot.slane %v966, 6
          %v978 = vrot.slane %v968, 6
          %v979 = vrot.slane %v970, 6
          %v980 = vrot.slane %v972, 6
          %v981 = vrot.slane %v974, 6
          %vm982 = vcmask 7168
          %v983 = vsel %vm982, %v975, %v962
          %vm984 = vcmask 1041408
          %v985 = vsel %vm984, %v975, %v976
          %v986 = vsel %vm982, %v985, %v964
          %v987 = vsel %vm984, %v976, %v977
          %v988 = vsel %vm982, %v987, %v966
          %v989 = vsel %vm984, %v977, %v978
          %v990 = vsel %vm982, %v989, %v968
          %v991 = vsel %vm984, %v978, %v979
          %v992 = vsel %vm982, %v991, %v970
          %v993 = vsel %vm984, %v979, %v980
          %v994 = vsel %vm982, %v993, %v972
          %v995 = vsel %vm984, %v980, %v981
          %v996 = vsel %vm982, %v995, %v974
          %v1004 = vadd.f32 %v576, %v983
          %v1005 = vadd.f32 %v577, %v986
          %v1006 = vadd.f32 %v578, %v988
          %v1007 = vadd.f32 %v579, %v990
          %v1008 = vadd.f32 %v580, %v992
          %v1009 = vadd.f32 %v581, %v994
          %v1010 = vadd.f32 %v582, %v996
          %v1011 = vld [vmem:[%s0] sm:$0xff]
          %v1012 = vld [vmem:[%s0 + $0x8] sm:$0xff]
          %v1013 = vld [vmem:[%s0 + $0x10] sm:$0xff]
          %v1014 = vld [vmem:[%s0 + $0x18] sm:$0xff]
          %v1015 = vld [vmem:[%s0 + $0x20] sm:$0xff]
          %v1016 = vld [vmem:[%s0 + $0x28] sm:$0xff]
          %v1017 = vld [vmem:[%s0 + $0x30] sm:$0xf]
          %s1018 = sld [smem:[#allocation4 + $0x2]]
          %v1019 = vstv %s1018
          %v1020 = vmul.f32 %v1011, %v1019
          %v1021 = vmul.f32 %v1012, %v1019
          %v1022 = vmul.f32 %v1013, %v1019
          %v1023 = vmul.f32 %v1014, %v1019
          %v1024 = vmul.f32 %v1015, %v1019
          %v1025 = vmul.f32 %v1016, %v1019
          %v1026 = vmul.f32 %v1017, %v1019
          %s1027 = sld [smem:[#allocation4 + $0x5]]
          %v1028 = vstv %s1027
          %v1029 = vmul.f32 %v1011, %v1028
          %v1030 = vmul.f32 %v1012, %v1028
          %v1031 = vmul.f32 %v1013, %v1028
          %v1032 = vmul.f32 %v1014, %v1028
          %v1033 = vmul.f32 %v1015, %v1028
          %v1034 = vmul.f32 %v1016, %v1028
          %v1035 = vmul.f32 %v1017, %v1028
          %1043 = vrot.lane.b32.xlu0 %v1029, 48
          %v1044 = vpop.permute.xlu0 %1043
          %1045 = vrot.lane.b32.xlu0 %v1030, 48
          %v1046 = vpop.permute.xlu0 %1045
          %1047 = vrot.lane.b32.xlu0 %v1031, 48
          %v1048 = vpop.permute.xlu0 %1047
          %1049 = vrot.lane.b32.xlu0 %v1032, 48
          %v1050 = vpop.permute.xlu0 %1049
          %1051 = vrot.lane.b32.xlu0 %v1033, 48
          %v1052 = vpop.permute.xlu0 %1051
          %1053 = vrot.lane.b32.xlu0 %v1034, 48
          %v1054 = vpop.permute.xlu0 %1053
          %1055 = vrot.lane.b32.xlu0 %v1035, 48
          %v1056 = vpop.permute.xlu0 %1055
          %v1057 = vrot.slane %v1044, 2
          %v1058 = vrot.slane %v1046, 2
          %v1059 = vrot.slane %v1048, 2
          %v1060 = vrot.slane %v1050, 2
          %v1061 = vrot.slane %v1052, 2
          %v1062 = vrot.slane %v1054, 2
          %v1063 = vrot.slane %v1056, 2
          %v1064 = vsel %vm482, %v1057, %v1058
          %v1065 = vsel %vm484, %v1044, %v1064
          %v1066 = vsel %vm482, %v1058, %v1059
          %v1067 = vsel %vm484, %v1046, %v1066
          %v1068 = vsel %vm482, %v1059, %v1060
          %v1069 = vsel %vm484, %v1048, %v1068
          %v1070 = vsel %vm482, %v1060, %v1061
          %v1071 = vsel %vm484, %v1050, %v1070
          %v1072 = vsel %vm482, %v1061, %v1062
          %v1073 = vsel %vm484, %v1052, %v1072
          %v1074 = vsel %vm482, %v1062, %v1063
          %v1075 = vsel %vm484, %v1054, %v1074
          %v1076 = vsel %vm484, %v1056, %v1063
          %v1084 = vadd.f32 %v1020, %v1065
          %v1085 = vadd.f32 %v1021, %v1067
          %v1086 = vadd.f32 %v1022, %v1069
          %v1087 = vadd.f32 %v1023, %v1071
          %v1088 = vadd.f32 %v1024, %v1073
          %v1089 = vadd.f32 %v1025, %v1075
          %v1090 = vadd.f32 %v1026, %v1076
          %v1091 = vld [vmem:[%s0 + $0x2] sm:$0xff]
          %v1092 = vld [vmem:[%s0 + $0xa] sm:$0xff]
          %v1093 = vld [vmem:[%s0 + $0x12] sm:$0xff]
          %v1094 = vld [vmem:[%s0 + $0x1a] sm:$0xff]
          %v1095 = vld [vmem:[%s0 + $0x22] sm:$0xff]
          %v1096 = vld [vmem:[%s0 + $0x2a] sm:$0xff]
          %v1097 = vld [vmem:[%s0 + $0x32] sm:$0xf]
          %s1098 = sld [smem:[#allocation4 + $0x8]]
          %v1099 = vstv %s1098
          %v1100 = vmul.f32 %v1091, %v1099
          %v1101 = vmul.f32 %v1092, %v1099
          %v1102 = vmul.f32 %v1093, %v1099
          %v1103 = vmul.f32 %v1094, %v1099
          %v1104 = vmul.f32 %v1095, %v1099
          %v1105 = vmul.f32 %v1096, %v1099
          %v1106 = vmul.f32 %v1097, %v1099
          %1114 = vrot.lane.b32.xlu0 %v1100, 96
          %v1115 = vpop.permute.xlu0 %1114
          %1116 = vrot.lane.b32.xlu0 %v1101, 96
          %v1117 = vpop.permute.xlu0 %1116
          %1118 = vrot.lane.b32.xlu0 %v1102, 96
          %v1119 = vpop.permute.xlu0 %1118
          %1120 = vrot.lane.b32.xlu0 %v1103, 96
          %v1121 = vpop.permute.xlu0 %1120
          %1122 = vrot.lane.b32.xlu0 %v1104, 96
          %v1123 = vpop.permute.xlu0 %1122
          %1124 = vrot.lane.b32.xlu0 %v1105, 96
          %v1125 = vpop.permute.xlu0 %1124
          %1126 = vrot.lane.b32.xlu0 %v1106, 96
          %v1127 = vpop.permute.xlu0 %1126
          %v1128 = vrot.slane %v1115, 2
          %v1129 = vrot.slane %v1117, 2
          %v1130 = vrot.slane %v1119, 2
          %v1131 = vrot.slane %v1121, 2
          %v1132 = vrot.slane %v1123, 2
          %v1133 = vrot.slane %v1125, 2
          %v1134 = vrot.slane %v1127, 2
          %v1135 = vsel %vm482, %v1128, %v1129
          %v1136 = vsel %vm556, %v1115, %v1135
          %v1137 = vsel %vm482, %v1129, %v1130
          %v1138 = vsel %vm556, %v1117, %v1137
          %v1139 = vsel %vm482, %v1130, %v1131
          %v1140 = vsel %vm556, %v1119, %v1139
          %v1141 = vsel %vm482, %v1131, %v1132
          %v1142 = vsel %vm556, %v1121, %v1141
          %v1143 = vsel %vm482, %v1132, %v1133
          %v1144 = vsel %vm556, %v1123, %v1143
          %v1145 = vsel %vm482, %v1133, %v1134
          %v1146 = vsel %vm556, %v1125, %v1145
          %v1147 = vsel %vm556, %v1127, %v1134
          %v1155 = vadd.f32 %v1084, %v1136
          %v1156 = vadd.f32 %v1085, %v1138
          %v1157 = vadd.f32 %v1086, %v1140
          %v1158 = vadd.f32 %v1087, %v1142
          %v1159 = vadd.f32 %v1088, %v1144
          %v1160 = vadd.f32 %v1089, %v1146
          %v1161 = vadd.f32 %v1090, %v1147
          %v1166 = vlaneseq
          %v1167 = vshrl.u32 %v1166, 7
          %v1168 = vsub.s32 0, %v1167
          %v1169 = vrot.slane %v418, %v1168
          %v1170 = vlaneseq
          %v1171 = vshrl.u32 %v1170, 7
          %v1172 = vsub.s32 1, %v1171
          %v1173 = vrot.slane %v418, %v1172
          %v1174 = vlaneseq
          %v1175 = vshrl.u32 %v1174, 7
          %v1176 = vsub.s32 2, %v1175
          %v1177 = vrot.slane %v418, %v1176
          %v1178 = vlaneseq
          %v1179 = vshrl.u32 %v1178, 7
          %v1180 = vsub.s32 3, %v1179
          %v1181 = vrot.slane %v418, %v1180
          %v1182 = vlaneseq
          %v1183 = vshrl.u32 %v1182, 7
          %v1184 = vsub.s32 4, %v1183
          %v1185 = vrot.slane %v418, %v1184
          %v1186 = vlaneseq
          %v1187 = vshrl.u32 %v1186, 7
          %v1188 = vsub.s32 5, %v1187
          %v1189 = vrot.slane %v418, %v1188
          %v1190 = vlaneseq
          %v1191 = vshrl.u32 %v1190, 7
          %v1192 = vsub.s32 6, %v1191
          %v1193 = vrot.slane %v418, %v1192
          %v1194 = vlaneseq
          %v1195 = vshrl.u32 %v1194, 7
          %v1196 = vsub.s32 7, %v1195
          %v1197 = vrot.slane %v418, %v1196
          %v1198 = vlaneseq
          %v1199 = vshrl.u32 %v1198, 7
          %v1200 = vsub.s32 0, %v1199
          %v1201 = vrot.slane %v420, %v1200
          %v1202 = vlaneseq
          %v1203 = vshrl.u32 %v1202, 7
          %v1204 = vsub.s32 1, %v1203
          %v1205 = vrot.slane %v420, %v1204
          %v1206 = vlaneseq
          %v1207 = vshrl.u32 %v1206, 7
          %v1208 = vsub.s32 2, %v1207
          %v1209 = vrot.slane %v420, %v1208
          %v1210 = vlaneseq
          %v1211 = vshrl.u32 %v1210, 7
          %v1212 = vsub.s32 3, %v1211
          %v1213 = vrot.slane %v420, %v1212
          %v1214 = vlaneseq
          %v1215 = vshrl.u32 %v1214, 7
          %v1216 = vsub.s32 4, %v1215
          %v1217 = vrot.slane %v420, %v1216
          %v1218 = vlaneseq
          %v1219 = vshrl.u32 %v1218, 7
          %v1220 = vsub.s32 5, %v1219
          %v1221 = vrot.slane %v420, %v1220
          %v1222 = vlaneseq
          %v1223 = vshrl.u32 %v1222, 7
          %v1224 = vsub.s32 6, %v1223
          %v1225 = vrot.slane %v420, %v1224
          %v1226 = vlaneseq
          %v1227 = vshrl.u32 %v1226, 7
          %v1228 = vsub.s32 7, %v1227
          %v1229 = vrot.slane %v420, %v1228
          %v1230 = vlaneseq
          %v1231 = vshrl.u32 %v1230, 7
          %v1232 = vsub.s32 0, %v1231
          %v1233 = vrot.slane %v422, %v1232
          %v1234 = vlaneseq
          %v1235 = vshrl.u32 %v1234, 7
          %v1236 = vsub.s32 1, %v1235
          %v1237 = vrot.slane %v422, %v1236
          %v1238 = vlaneseq
          %v1239 = vshrl.u32 %v1238, 7
          %v1240 = vsub.s32 2, %v1239
          %v1241 = vrot.slane %v422, %v1240
          %v1242 = vlaneseq
          %v1243 = vshrl.u32 %v1242, 7
          %v1244 = vsub.s32 3, %v1243
          %v1245 = vrot.slane %v422, %v1244
          %v1246 = vlaneseq
          %v1247 = vshrl.u32 %v1246, 7
          %v1248 = vsub.s32 4, %v1247
          %v1249 = vrot.slane %v422, %v1248
          %v1250 = vlaneseq
          %v1251 = vshrl.u32 %v1250, 7
          %v1252 = vsub.s32 5, %v1251
          %v1253 = vrot.slane %v422, %v1252
          %v1254 = vlaneseq
          %v1255 = vshrl.u32 %v1254, 7
          %v1256 = vsub.s32 6, %v1255
          %v1257 = vrot.slane %v422, %v1256
          %v1258 = vlaneseq
          %v1259 = vshrl.u32 %v1258, 7
          %v1260 = vsub.s32 7, %v1259
          %v1261 = vrot.slane %v422, %v1260
          %v1262 = vlaneseq
          %v1263 = vshrl.u32 %v1262, 7
          %v1264 = vsub.s32 0, %v1263
          %v1265 = vrot.slane %v424, %v1264
          %v1266 = vcombine.low %v1169, %v1173
          %v1267 = vcombine.low %v1177, %v1181
          %v1269 = vunpack.c.l.s4 1983009808
          %v1270 = vunpack.c.0.s8 %v1269
          %v1271 = vlaneseq
          %v1272 = vshrl.u32 %v1271, 7
          %v1273 = vsub.s32 %v1270, %v1272
          %v1274 = vrot.slane %v1266, %v1273
          %v1276 = vunpack.c.l.s4 1983009808
          %v1277 = vunpack.c.0.s8 %v1276
          %v1278 = vlaneseq
          %v1279 = vshrl.u32 %v1278, 7
          %v1280 = vsub.s32 %v1277, %v1279
          %v1281 = vrot.slane %v1267, %v1280
          %v1282 = vcombine.low %v1274, %v1281
          %v1283 = vcombine.low %v1185, %v1189
          %v1284 = vcombine.low %v1193, %v1197
          %v1286 = vunpack.c.l.s4 1983009808
          %v1287 = vunpack.c.0.s8 %v1286
          %v1288 = vlaneseq
          %v1289 = vshrl.u32 %v1288, 7
          %v1290 = vsub.s32 %v1287, %v1289
          %v1291 = vrot.slane %v1283, %v1290
          %v1293 = vunpack.c.l.s4 1983009808
          %v1294 = vunpack.c.0.s8 %v1293
          %v1295 = vlaneseq
          %v1296 = vshrl.u32 %v1295, 7
          %v1297 = vsub.s32 %v1294, %v1296
          %v1298 = vrot.slane %v1284, %v1297
          %v1299 = vcombine.low %v1291, %v1298
          %v1300 = vcombine.low %v1201, %v1205
          %v1301 = vcombine.low %v1209, %v1213
          %v1303 = vunpack.c.l.s4 1983009808
          %v1304 = vunpack.c.0.s8 %v1303
          %v1305 = vlaneseq
          %v1306 = vshrl.u32 %v1305, 7
          %v1307 = vsub.s32 %v1304, %v1306
          %v1308 = vrot.slane %v1300, %v1307
          %v1310 = vunpack.c.l.s4 1983009808
          %v1311 = vunpack.c.0.s8 %v1310
          %v1312 = vlaneseq
          %v1313 = vshrl.u32 %v1312, 7
          %v1314 = vsub.s32 %v1311, %v1313
          %v1315 = vrot.slane %v1301, %v1314
          %v1316 = vcombine.low %v1308, %v1315
          %v1317 = vcombine.low %v1217, %v1221
          %v1318 = vcombine.low %v1225, %v1229
          %v1320 = vunpack.c.l.s4 1983009808
          %v1321 = vunpack.c.0.s8 %v1320
          %v1322 = vlaneseq
          %v1323 = vshrl.u32 %v1322, 7
          %v1324 = vsub.s32 %v1321, %v1323
          %v1325 = vrot.slane %v1317, %v1324
          %v1327 = vunpack.c.l.s4 1983009808
          %v1328 = vunpack.c.0.s8 %v1327
          %v1329 = vlaneseq
          %v1330 = vshrl.u32 %v1329, 7
          %v1331 = vsub.s32 %v1328, %v1330
          %v1332 = vrot.slane %v1318, %v1331
          %v1333 = vcombine.low %v1325, %v1332
          %v1334 = vcombine.low %v1233, %v1237
          %v1335 = vcombine.low %v1241, %v1245
          %v1337 = vunpack.c.l.s4 1983009808
          %v1338 = vunpack.c.0.s8 %v1337
          %v1339 = vlaneseq
          %v1340 = vshrl.u32 %v1339, 7
          %v1341 = vsub.s32 %v1338, %v1340
          %v1342 = vrot.slane %v1334, %v1341
          %v1344 = vunpack.c.l.s4 1983009808
          %v1345 = vunpack.c.0.s8 %v1344
          %v1346 = vlaneseq
          %v1347 = vshrl.u32 %v1346, 7
          %v1348 = vsub.s32 %v1345, %v1347
          %v1349 = vrot.slane %v1335, %v1348
          %v1350 = vcombine.low %v1342, %v1349
          %v1351 = vcombine.low %v1249, %v1253
          %v1352 = vcombine.low %v1257, %v1261
          %v1354 = vunpack.c.l.s4 1983009808
          %v1355 = vunpack.c.0.s8 %v1354
          %v1356 = vlaneseq
          %v1357 = vshrl.u32 %v1356, 7
          %v1358 = vsub.s32 %v1355, %v1357
          %v1359 = vrot.slane %v1351, %v1358
          %v1361 = vunpack.c.l.s4 1983009808
          %v1362 = vunpack.c.0.s8 %v1361
          %v1363 = vlaneseq
          %v1364 = vshrl.u32 %v1363, 7
          %v1365 = vsub.s32 %v1362, %v1364
          %v1366 = vrot.slane %v1352, %v1365
          %v1367 = vcombine.low %v1359, %v1366
          %v1369 = vunpack.c.l.s4 1983009808
          %v1370 = vunpack.c.0.s8 %v1369
          %v1371 = vlaneseq
          %v1372 = vshrl.u32 %v1371, 7
          %v1373 = vsub.s32 %v1370, %v1372
          %v1374 = vrot.slane %v1265, %v1373
          %1375 = vrot.lane.b32.xlu0 %v1282, 2
          %v1376 = vpop.permute.xlu0 %1375
          %1377 = vrot.lane.b32.xlu0 %v1299, 2
          %v1378 = vpop.permute.xlu0 %1377
          %1379 = vrot.lane.b32.xlu0 %v1316, 2
          %v1380 = vpop.permute.xlu0 %1379
          %1381 = vrot.lane.b32.xlu0 %v1333, 2
          %v1382 = vpop.permute.xlu0 %1381
          %1383 = vrot.lane.b32.xlu0 %v1350, 2
          %v1384 = vpop.permute.xlu0 %1383
          %1385 = vrot.lane.b32.xlu0 %v1367, 2
          %v1386 = vpop.permute.xlu0 %1385
          %1387 = vrot.lane.b32.xlu0 %v1374, 2
          %v1388 = vpop.permute.xlu0 %1387
          %v1389 = vrot.slane %v1376, 6
          %v1390 = vrot.slane %v1378, 6
          %v1391 = vrot.slane %v1380, 6
          %v1392 = vrot.slane %v1382, 6
          %v1393 = vrot.slane %v1384, 6
          %v1394 = vrot.slane %v1386, 6
          %v1395 = vrot.slane %v1388, 6
          %vm1396 = vcmask 15360
          %v1397 = vsel %vm1396, %v1389, %v1376
          %v1398 = vsel %vm984, %v1389, %v1390
          %v1399 = vsel %vm1396, %v1398, %v1378
          %v1400 = vsel %vm984, %v1390, %v1391
          %v1401 = vsel %vm1396, %v1400, %v1380
          %v1402 = vsel %vm984, %v1391, %v1392
          %v1403 = vsel %vm1396, %v1402, %v1382
          %v1404 = vsel %vm984, %v1392, %v1393
          %v1405 = vsel %vm1396, %v1404, %v1384
          %v1406 = vsel %vm984, %v1393, %v1394
          %v1407 = vsel %vm1396, %v1406, %v1386
          %v1408 = vsel %vm984, %v1394, %v1395
          %v1409 = vsel %vm1396, %v1408, %v1388
          %v1417 = vmul.f32 %v1155, %v1397
          %v1418 = vmul.f32 %v1156, %v1399
          %v1419 = vmul.f32 %v1157, %v1401
          %v1420 = vmul.f32 %v1158, %v1403
          %v1421 = vmul.f32 %v1159, %v1405
          %v1422 = vmul.f32 %v1160, %v1407
          %v1423 = vmul.f32 %v1161, %v1409
          %1431 = vrot.lane.b32.xlu0 %v1417, 127
          %v1432 = vpop.permute.xlu0 %1431
          %1433 = vrot.lane.b32.xlu0 %v1418, 127
          %v1434 = vpop.permute.xlu0 %1433
          %1435 = vrot.lane.b32.xlu0 %v1419, 127
          %v1436 = vpop.permute.xlu0 %1435
          %1437 = vrot.lane.b32.xlu0 %v1420, 127
          %v1438 = vpop.permute.xlu0 %1437
          %1439 = vrot.lane.b32.xlu0 %v1421, 127
          %v1440 = vpop.permute.xlu0 %1439
          %1441 = vrot.lane.b32.xlu0 %v1422, 127
          %v1442 = vpop.permute.xlu0 %1441
          %1443 = vrot.lane.b32.xlu0 %v1423, 127
          %v1444 = vpop.permute.xlu0 %1443
          %v1445 = vrot.slane %v1432, 2
          %v1446 = vrot.slane %v1434, 2
          %v1447 = vrot.slane %v1436, 2
          %v1448 = vrot.slane %v1438, 2
          %v1449 = vrot.slane %v1440, 2
          %v1450 = vrot.slane %v1442, 2
          %v1451 = vrot.slane %v1444, 2
          %v1452 = vsel %vm482, %v1445, %v1446
          %vm1453 = vcmask 1039360
          %v1454 = vsel %vm1453, %v1432, %v1452
          %v1455 = vsel %vm482, %v1446, %v1447
          %v1456 = vsel %vm1453, %v1434, %v1455
          %v1457 = vsel %vm482, %v1447, %v1448
          %v1458 = vsel %vm1453, %v1436, %v1457
          %v1459 = vsel %vm482, %v1448, %v1449
          %v1460 = vsel %vm1453, %v1438, %v1459
          %v1461 = vsel %vm482, %v1449, %v1450
          %v1462 = vsel %vm1453, %v1440, %v1461
          %v1463 = vsel %vm482, %v1450, %v1451
          %v1464 = vsel %vm1453, %v1442, %v1463
          %v1465 = vsel %vm1453, %v1444, %v1451
          %v1473 = vadd.f32 %v1004, %v1454
          %v1474 = vadd.f32 %v1005, %v1456
          %v1475 = vadd.f32 %v1006, %v1458
          %v1476 = vadd.f32 %v1007, %v1460
          %v1477 = vadd.f32 %v1008, %v1462
          %v1478 = vadd.f32 %v1009, %v1464
          %v1479 = vadd.f32 %v1010, %v1465
          %s1480 = sld [smem:[#allocation3]]
          %v1481 = vstv %s1480
          %v1482 = vadd.f32 %v1473, %v1481
          %v1483 = vadd.f32 %v1474, %v1481
          %v1484 = vadd.f32 %v1475, %v1481
          %v1485 = vadd.f32 %v1476, %v1481
          %v1486 = vadd.f32 %v1477, %v1481
          %v1487 = vadd.f32 %v1478, %v1481
          %v1488 = vadd.f32 %v1479, %v1481
          %1496 = vrot.lane.b32.xlu0 %v1482, 127
          %v1497 = vpop.permute.xlu0 %1496
          %1498 = vrot.lane.b32.xlu0 %v1483, 127
          %v1499 = vpop.permute.xlu0 %1498
          %1500 = vrot.lane.b32.xlu0 %v1484, 127
          %v1501 = vpop.permute.xlu0 %1500
          %1502 = vrot.lane.b32.xlu0 %v1485, 127
          %v1503 = vpop.permute.xlu0 %1502
          %1504 = vrot.lane.b32.xlu0 %v1486, 127
          %v1505 = vpop.permute.xlu0 %1504
          %1506 = vrot.lane.b32.xlu0 %v1487, 127
          %v1507 = vpop.permute.xlu0 %1506
          %1508 = vrot.lane.b32.xlu0 %v1488, 127
          %v1509 = vpop.permute.xlu0 %1508
          %v1510 = vrot.slane %v1497, 2
          %v1511 = vrot.slane %v1499, 2
          %v1512 = vrot.slane %v1501, 2
          %v1513 = vrot.slane %v1503, 2
          %v1514 = vrot.slane %v1505, 2
          %v1515 = vrot.slane %v1507, 2
          %v1516 = vrot.slane %v1509, 2
          %v1517 = vsel %vm482, %v1510, %v1511
          %v1518 = vsel %vm1453, %v1497, %v1517
          %v1519 = vsel %vm482, %v1511, %v1512
          %v1520 = vsel %vm1453, %v1499, %v1519
          %v1521 = vsel %vm482, %v1512, %v1513
          %v1522 = vsel %vm1453, %v1501, %v1521
          %v1523 = vsel %vm482, %v1513, %v1514
          %v1524 = vsel %vm1453, %v1503, %v1523
          %v1525 = vsel %vm482, %v1514, %v1515
          %v1526 = vsel %vm1453, %v1505, %v1525
          %v1527 = vsel %vm482, %v1515, %v1516
          %v1528 = vsel %vm1453, %v1507, %v1527
          %v1529 = vsel %vm1453, %v1509, %v1516
          %1537 = vst [vmem:[%s407] sm:$0xff] %v1518
          %1538 = vst [vmem:[%s407 + $0x8] sm:$0xff] %v1520
          %1539 = vst [vmem:[%s407 + $0x10] sm:$0xff] %v1522
          %1540 = vst [vmem:[%s407 + $0x18] sm:$0xff] %v1524
          %1541 = vst [vmem:[%s407 + $0x20] sm:$0xff] %v1526
          %1542 = vst [vmem:[%s407 + $0x28] sm:$0xff] %v1528
          %1543 = vst [vmem:[%s407 + $0x30] sm:$0x3] %v1529
        $region72: #{mainnet_forward.1} parent=55 // pred_fallthru
          _
        %p1544 = scmp.eq.s32.totalorder %s29, 1
        // Predicated region
        $region73: #{mainnet_forward.1} parent=55 // pred_check
          %p1545 = pneg %p1544
        $region74: #{mainnet_forward.1} parent=55 // pred_check_branch
          %1547 = sbr.rel (%p1545) target = $region76
        $region75: #{mainnet_forward.1} parent=55 // pred_region
          %v1548 = vld [vmem:[%s0 + $0x32] sm:$0xff]
          %v1549 = vld [vmem:[%s0 + $0x3a] sm:$0xff]
          %v1550 = vld [vmem:[%s0 + $0x42] sm:$0xff]
          %v1551 = vld [vmem:[%s0 + $0x4a] sm:$0xff]
          %v1552 = vld [vmem:[%s0 + $0x52] sm:$0xff]
          %v1553 = vld [vmem:[%s0 + $0x5a] sm:$0xff]
          %v1554 = vld [vmem:[%s0 + $0x62] sm:$0xf]
          %s1555 = sld [smem:[#allocation4 + $0x1]]
          %v1556 = vstv %s1555
          %v1557 = vmul.f32 %v1548, %v1556
          %v1558 = vmul.f32 %v1549, %v1556
          %v1559 = vmul.f32 %v1550, %v1556
          %v1560 = vmul.f32 %v1551, %v1556
          %v1561 = vmul.f32 %v1552, %v1556
          %v1562 = vmul.f32 %v1553, %v1556
          %v1563 = vmul.f32 %v1554, %v1556
          %s1564 = sld [smem:[#allocation4 + $0x4]]
          %v1565 = vstv %s1564
          %v1566 = vmul.f32 %v1548, %v1565
          %v1567 = vmul.f32 %v1549, %v1565
          %v1568 = vmul.f32 %v1550, %v1565
          %v1569 = vmul.f32 %v1551, %v1565
          %v1570 = vmul.f32 %v1552, %v1565
          %v1571 = vmul.f32 %v1553, %v1565
          %v1572 = vmul.f32 %v1554, %v1565
          %1580 = vrot.lane.b32.xlu0 %v1566, 48
          %v1581 = vpop.permute.xlu0 %1580
          %1582 = vrot.lane.b32.xlu0 %v1567, 48
          %v1583 = vpop.permute.xlu0 %1582
          %1584 = vrot.lane.b32.xlu0 %v1568, 48
          %v1585 = vpop.permute.xlu0 %1584
          %1586 = vrot.lane.b32.xlu0 %v1569, 48
          %v1587 = vpop.permute.xlu0 %1586
          %1588 = vrot.lane.b32.xlu0 %v1570, 48
          %v1589 = vpop.permute.xlu0 %1588
          %1590 = vrot.lane.b32.xlu0 %v1571, 48
          %v1591 = vpop.permute.xlu0 %1590
          %1592 = vrot.lane.b32.xlu0 %v1572, 48
          %v1593 = vpop.permute.xlu0 %1592
          %v1594 = vrot.slane %v1581, 2
          %v1595 = vrot.slane %v1583, 2
          %v1596 = vrot.slane %v1585, 2
          %v1597 = vrot.slane %v1587, 2
          %v1598 = vrot.slane %v1589, 2
          %v1599 = vrot.slane %v1591, 2
          %v1600 = vrot.slane %v1593, 2
          %vm1601 = vcmask 1045504
          %v1602 = vsel %vm1601, %v1594, %v1595
          %vm1603 = vcmask 392192
          %v1604 = vsel %vm1603, %v1581, %v1602
          %v1605 = vsel %vm1601, %v1595, %v1596
          %v1606 = vsel %vm1603, %v1583, %v1605
          %v1607 = vsel %vm1601, %v1596, %v1597
          %v1608 = vsel %vm1603, %v1585, %v1607
          %v1609 = vsel %vm1601, %v1597, %v1598
          %v1610 = vsel %vm1603, %v1587, %v1609
          %v1611 = vsel %vm1601, %v1598, %v1599
          %v1612 = vsel %vm1603, %v1589, %v1611
          %v1613 = vsel %vm1601, %v1599, %v1600
          %v1614 = vsel %vm1603, %v1591, %v1613
          %v1615 = vsel %vm1603, %v1593, %v1600
          %v1623 = vadd.f32 %v1557, %v1604
          %v1624 = vadd.f32 %v1558, %v1606
          %v1625 = vadd.f32 %v1559, %v1608
          %v1626 = vadd.f32 %v1560, %v1610
          %v1627 = vadd.f32 %v1561, %v1612
          %v1628 = vadd.f32 %v1562, %v1614
          %v1629 = vadd.f32 %v1563, %v1615
          %v1630 = vld [vmem:[%s0 + $0x34] sm:$0xff]
          %v1631 = vld [vmem:[%s0 + $0x3c] sm:$0xff]
          %v1632 = vld [vmem:[%s0 + $0x44] sm:$0xff]
          %v1633 = vld [vmem:[%s0 + $0x4c] sm:$0xff]
          %v1634 = vld [vmem:[%s0 + $0x54] sm:$0xff]
          %v1635 = vld [vmem:[%s0 + $0x5c] sm:$0xff]
          %v1636 = vld [vmem:[%s0 + $0x64] sm:$0xf]
          %s1637 = sld [smem:[#allocation4 + $0x7]]
          %v1638 = vstv %s1637
          %v1639 = vmul.f32 %v1630, %v1638
          %v1640 = vmul.f32 %v1631, %v1638
          %v1641 = vmul.f32 %v1632, %v1638
          %v1642 = vmul.f32 %v1633, %v1638
          %v1643 = vmul.f32 %v1634, %v1638
          %v1644 = vmul.f32 %v1635, %v1638
          %v1645 = vmul.f32 %v1636, %v1638
          %1653 = vrot.lane.b32.xlu0 %v1639, 96
          %v1654 = vpop.permute.xlu0 %1653
          %1655 = vrot.lane.b32.xlu0 %v1640, 96
          %v1656 = vpop.permute.xlu0 %1655
          %1657 = vrot.lane.b32.xlu0 %v1641, 96
          %v1658 = vpop.permute.xlu0 %1657
          %1659 = vrot.lane.b32.xlu0 %v1642, 96
          %v1660 = vpop.permute.xlu0 %1659
          %1661 = vrot.lane.b32.xlu0 %v1643, 96
          %v1662 = vpop.permute.xlu0 %1661
          %1663 = vrot.lane.b32.xlu0 %v1644, 96
          %v1664 = vpop.permute.xlu0 %1663
          %1665 = vrot.lane.b32.xlu0 %v1645, 96
          %v1666 = vpop.permute.xlu0 %1665
          %v1667 = vrot.slane %v1654, 2
          %v1668 = vrot.slane %v1656, 2
          %v1669 = vrot.slane %v1658, 2
          %v1670 = vrot.slane %v1660, 2
          %v1671 = vrot.slane %v1662, 2
          %v1672 = vrot.slane %v1664, 2
          %v1673 = vrot.slane %v1666, 2
          %v1674 = vsel %vm1601, %v1667, %v1668
          %vm1675 = vcmask 785408
          %v1676 = vsel %vm1675, %v1654, %v1674
          %v1677 = vsel %vm1601, %v1668, %v1669
          %v1678 = vsel %vm1675, %v1656, %v1677
          %v1679 = vsel %vm1601, %v1669, %v1670
          %v1680 = vsel %vm1675, %v1658, %v1679
          %v1681 = vsel %vm1601, %v1670, %v1671
          %v1682 = vsel %vm1675, %v1660, %v1681
          %v1683 = vsel %vm1601, %v1671, %v1672
          %v1684 = vsel %vm1675, %v1662, %v1683
          %v1685 = vsel %vm1601, %v1672, %v1673
          %v1686 = vsel %vm1675, %v1664, %v1685
          %v1687 = vsel %vm1675, %v1666, %v1673
          %v1695 = vadd.f32 %v1623, %v1676
          %v1696 = vadd.f32 %v1624, %v1678
          %v1697 = vadd.f32 %v1625, %v1680
          %v1698 = vadd.f32 %v1626, %v1682
          %v1699 = vadd.f32 %v1627, %v1684
          %v1700 = vadd.f32 %v1628, %v1686
          %v1701 = vadd.f32 %v1629, %v1687
          %v1702 = vld [vmem:[%s0 + $0x32] sm:$0xff]
          %v1703 = vld [vmem:[%s0 + $0x3a] sm:$0xff]
          %v1704 = vld [vmem:[%s0 + $0x42] sm:$0xff]
          %v1705 = vld [vmem:[%s0 + $0x4a] sm:$0xff]
          %v1706 = vld [vmem:[%s0 + $0x52] sm:$0xff]
          %v1707 = vld [vmem:[%s0 + $0x5a] sm:$0xff]
          %v1708 = vld [vmem:[%s0 + $0x62] sm:$0x3]
          %s1709 = sld [smem:[#allocation4]]
          %v1710 = vstv %s1709
          %v1711 = vmul.f32 %v1702, %v1710
          %v1712 = vmul.f32 %v1703, %v1710
          %v1713 = vmul.f32 %v1704, %v1710
          %v1714 = vmul.f32 %v1705, %v1710
          %v1715 = vmul.f32 %v1706, %v1710
          %v1716 = vmul.f32 %v1707, %v1710
          %v1717 = vmul.f32 %v1708, %v1710
          %s1718 = sld [smem:[#allocation4 + $0x3]]
          %v1719 = vstv %s1718
          %v1720 = vmul.f32 %v1548, %v1719
          %v1721 = vmul.f32 %v1549, %v1719
          %v1722 = vmul.f32 %v1550, %v1719
          %v1723 = vmul.f32 %v1551, %v1719
          %v1724 = vmul.f32 %v1552, %v1719
          %v1725 = vmul.f32 %v1553, %v1719
          %v1726 = vmul.f32 %v1554, %v1719
          %1734 = vrot.lane.b32.xlu0 %v1720, 48
          %v1735 = vpop.permute.xlu0 %1734
          %1736 = vrot.lane.b32.xlu0 %v1721, 48
          %v1737 = vpop.permute.xlu0 %1736
          %1738 = vrot.lane.b32.xlu0 %v1722, 48
          %v1739 = vpop.permute.xlu0 %1738
          %1740 = vrot.lane.b32.xlu0 %v1723, 48
          %v1741 = vpop.permute.xlu0 %1740
          %1742 = vrot.lane.b32.xlu0 %v1724, 48
          %v1743 = vpop.permute.xlu0 %1742
          %1744 = vrot.lane.b32.xlu0 %v1725, 48
          %v1745 = vpop.permute.xlu0 %1744
          %1746 = vrot.lane.b32.xlu0 %v1726, 48
          %v1747 = vpop.permute.xlu0 %1746
          %v1748 = vrot.slane %v1735, 2
          %v1749 = vrot.slane %v1737, 2
          %v1750 = vrot.slane %v1739, 2
          %v1751 = vrot.slane %v1741, 2
          %v1752 = vrot.slane %v1743, 2
          %v1753 = vrot.slane %v1745, 2
          %v1754 = vrot.slane %v1747, 2
          %v1755 = vsel %vm1601, %v1748, %v1749
          %v1756 = vsel %vm1603, %v1735, %v1755
          %v1757 = vsel %vm1601, %v1749, %v1750
          %v1758 = vsel %vm1603, %v1737, %v1757
          %v1759 = vsel %vm1601, %v1750, %v1751
          %v1760 = vsel %vm1603, %v1739, %v1759
          %v1761 = vsel %vm1601, %v1751, %v1752
          %v1762 = vsel %vm1603, %v1741, %v1761
          %v1763 = vsel %vm1601, %v1752, %v1753
          %v1764 = vsel %vm1603, %v1743, %v1763
          %v1765 = vsel %vm1601, %v1753, %v1754
          %v1766 = vsel %vm1603, %v1745, %v1765
          %v1767 = vsel %vm1603, %v1747, %v1754
          %v1775 = vadd.f32 %v1711, %v1756
          %v1776 = vadd.f32 %v1712, %v1758
          %v1777 = vadd.f32 %v1713, %v1760
          %v1778 = vadd.f32 %v1714, %v1762
          %v1779 = vadd.f32 %v1715, %v1764
          %v1780 = vadd.f32 %v1716, %v1766
          %v1781 = vadd.f32 %v1717, %v1767
          %s1782 = sld [smem:[#allocation4 + $0x6]]
          %v1783 = vstv %s1782
          %v1784 = vmul.f32 %v1630, %v1783
          %v1785 = vmul.f32 %v1631, %v1783
          %v1786 = vmul.f32 %v1632, %v1783
          %v1787 = vmul.f32 %v1633, %v1783
          %v1788 = vmul.f32 %v1634, %v1783
          %v1789 = vmul.f32 %v1635, %v1783
          %v1790 = vmul.f32 %v1636, %v1783
          %1798 = vrot.lane.b32.xlu0 %v1784, 96
          %v1799 = vpop.permute.xlu0 %1798
          %1800 = vrot.lane.b32.xlu0 %v1785, 96
          %v1801 = vpop.permute.xlu0 %1800
          %1802 = vrot.lane.b32.xlu0 %v1786, 96
          %v1803 = vpop.permute.xlu0 %1802
          %1804 = vrot.lane.b32.xlu0 %v1787, 96
          %v1805 = vpop.permute.xlu0 %1804
          %1806 = vrot.lane.b32.xlu0 %v1788, 96
          %v1807 = vpop.permute.xlu0 %1806
          %1808 = vrot.lane.b32.xlu0 %v1789, 96
          %v1809 = vpop.permute.xlu0 %1808
          %1810 = vrot.lane.b32.xlu0 %v1790, 96
          %v1811 = vpop.permute.xlu0 %1810
          %v1812 = vrot.slane %v1799, 2
          %v1813 = vrot.slane %v1801, 2
          %v1814 = vrot.slane %v1803, 2
          %v1815 = vrot.slane %v1805, 2
          %v1816 = vrot.slane %v1807, 2
          %v1817 = vrot.slane %v1809, 2
          %v1818 = vrot.slane %v1811, 2
          %v1819 = vsel %vm1601, %v1812, %v1813
          %v1820 = vsel %vm1675, %v1799, %v1819
          %v1821 = vsel %vm1601, %v1813, %v1814
          %v1822 = vsel %vm1675, %v1801, %v1821
          %v1823 = vsel %vm1601, %v1814, %v1815
          %v1824 = vsel %vm1675, %v1803, %v1823
          %v1825 = vsel %vm1601, %v1815, %v1816
          %v1826 = vsel %vm1675, %v1805, %v1825
          %v1827 = vsel %vm1601, %v1816, %v1817
          %v1828 = vsel %vm1675, %v1807, %v1827
          %v1829 = vsel %vm1601, %v1817, %v1818
          %v1830 = vsel %vm1675, %v1809, %v1829
          %v1831 = vsel %vm1675, %v1811, %v1818
          %v1839 = vadd.f32 %v1775, %v1820
          %v1840 = vadd.f32 %v1776, %v1822
          %v1841 = vadd.f32 %v1777, %v1824
          %v1842 = vadd.f32 %v1778, %v1826
          %v1843 = vadd.f32 %v1779, %v1828
          %v1844 = vadd.f32 %v1780, %v1830
          %v1845 = vadd.f32 %v1781, %v1831
          %v1850 = vlaneseq
          %v1851 = vshrl.u32 %v1850, 7
          %v1852 = vsub.s32 0, %v1851
          %v1853 = vrot.slane %v410, %v1852
          %v1854 = vlaneseq
          %v1855 = vshrl.u32 %v1854, 7
          %v1856 = vsub.s32 1, %v1855
          %v1857 = vrot.slane %v410, %v1856
          %v1858 = vlaneseq
          %v1859 = vshrl.u32 %v1858, 7
          %v1860 = vsub.s32 2, %v1859
          %v1861 = vrot.slane %v410, %v1860
          %v1862 = vlaneseq
          %v1863 = vshrl.u32 %v1862, 7
          %v1864 = vsub.s32 3, %v1863
          %v1865 = vrot.slane %v410, %v1864
          %v1866 = vlaneseq
          %v1867 = vshrl.u32 %v1866, 7
          %v1868 = vsub.s32 4, %v1867
          %v1869 = vrot.slane %v410, %v1868
          %v1870 = vlaneseq
          %v1871 = vshrl.u32 %v1870, 7
          %v1872 = vsub.s32 5, %v1871
          %v1873 = vrot.slane %v410, %v1872
          %v1874 = vlaneseq
          %v1875 = vshrl.u32 %v1874, 7
          %v1876 = vsub.s32 6, %v1875
          %v1877 = vrot.slane %v410, %v1876
          %v1878 = vlaneseq
          %v1879 = vshrl.u32 %v1878, 7
          %v1880 = vsub.s32 7, %v1879
          %v1881 = vrot.slane %v410, %v1880
          %v1882 = vlaneseq
          %v1883 = vshrl.u32 %v1882, 7
          %v1884 = vsub.s32 0, %v1883
          %v1885 = vrot.slane %v412, %v1884
          %v1886 = vlaneseq
          %v1887 = vshrl.u32 %v1886, 7
          %v1888 = vsub.s32 1, %v1887
          %v1889 = vrot.slane %v412, %v1888
          %v1890 = vlaneseq
          %v1891 = vshrl.u32 %v1890, 7
          %v1892 = vsub.s32 2, %v1891
          %v1893 = vrot.slane %v412, %v1892
          %v1894 = vlaneseq
          %v1895 = vshrl.u32 %v1894, 7
          %v1896 = vsub.s32 3, %v1895
          %v1897 = vrot.slane %v412, %v1896
          %v1898 = vlaneseq
          %v1899 = vshrl.u32 %v1898, 7
          %v1900 = vsub.s32 4, %v1899
          %v1901 = vrot.slane %v412, %v1900
          %v1902 = vlaneseq
          %v1903 = vshrl.u32 %v1902, 7
          %v1904 = vsub.s32 5, %v1903
          %v1905 = vrot.slane %v412, %v1904
          %v1906 = vlaneseq
          %v1907 = vshrl.u32 %v1906, 7
          %v1908 = vsub.s32 6, %v1907
          %v1909 = vrot.slane %v412, %v1908
          %v1910 = vlaneseq
          %v1911 = vshrl.u32 %v1910, 7
          %v1912 = vsub.s32 7, %v1911
          %v1913 = vrot.slane %v412, %v1912
          %v1914 = vlaneseq
          %v1915 = vshrl.u32 %v1914, 7
          %v1916 = vsub.s32 0, %v1915
          %v1917 = vrot.slane %v414, %v1916
          %v1918 = vlaneseq
          %v1919 = vshrl.u32 %v1918, 7
          %v1920 = vsub.s32 1, %v1919
          %v1921 = vrot.slane %v414, %v1920
          %v1922 = vlaneseq
          %v1923 = vshrl.u32 %v1922, 7
          %v1924 = vsub.s32 2, %v1923
          %v1925 = vrot.slane %v414, %v1924
          %v1926 = vlaneseq
          %v1927 = vshrl.u32 %v1926, 7
          %v1928 = vsub.s32 3, %v1927
          %v1929 = vrot.slane %v414, %v1928
          %v1930 = vlaneseq
          %v1931 = vshrl.u32 %v1930, 7
          %v1932 = vsub.s32 4, %v1931
          %v1933 = vrot.slane %v414, %v1932
          %v1934 = vlaneseq
          %v1935 = vshrl.u32 %v1934, 7
          %v1936 = vsub.s32 5, %v1935
          %v1937 = vrot.slane %v414, %v1936
          %v1938 = vlaneseq
          %v1939 = vshrl.u32 %v1938, 7
          %v1940 = vsub.s32 6, %v1939
          %v1941 = vrot.slane %v414, %v1940
          %v1942 = vlaneseq
          %v1943 = vshrl.u32 %v1942, 7
          %v1944 = vsub.s32 7, %v1943
          %v1945 = vrot.slane %v414, %v1944
          %v1946 = vlaneseq
          %v1947 = vshrl.u32 %v1946, 7
          %v1948 = vsub.s32 0, %v1947
          %v1949 = vrot.slane %v416, %v1948
          %v1950 = vcombine.low %v1853, %v1857
          %v1951 = vcombine.low %v1861, %v1865
          %v1953 = vunpack.c.l.s4 1983009808
          %v1954 = vunpack.c.0.s8 %v1953
          %v1955 = vlaneseq
          %v1956 = vshrl.u32 %v1955, 7
          %v1957 = vsub.s32 %v1954, %v1956
          %v1958 = vrot.slane %v1950, %v1957
          %v1960 = vunpack.c.l.s4 1983009808
          %v1961 = vunpack.c.0.s8 %v1960
          %v1962 = vlaneseq
          %v1963 = vshrl.u32 %v1962, 7
          %v1964 = vsub.s32 %v1961, %v1963
          %v1965 = vrot.slane %v1951, %v1964
          %v1966 = vcombine.low %v1958, %v1965
          %v1967 = vcombine.low %v1869, %v1873
          %v1968 = vcombine.low %v1877, %v1881
          %v1970 = vunpack.c.l.s4 1983009808
          %v1971 = vunpack.c.0.s8 %v1970
          %v1972 = vlaneseq
          %v1973 = vshrl.u32 %v1972, 7
          %v1974 = vsub.s32 %v1971, %v1973
          %v1975 = vrot.slane %v1967, %v1974
          %v1977 = vunpack.c.l.s4 1983009808
          %v1978 = vunpack.c.0.s8 %v1977
          %v1979 = vlaneseq
          %v1980 = vshrl.u32 %v1979, 7
          %v1981 = vsub.s32 %v1978, %v1980
          %v1982 = vrot.slane %v1968, %v1981
          %v1983 = vcombine.low %v1975, %v1982
          %v1984 = vcombine.low %v1885, %v1889
          %v1985 = vcombine.low %v1893, %v1897
          %v1987 = vunpack.c.l.s4 1983009808
          %v1988 = vunpack.c.0.s8 %v1987
          %v1989 = vlaneseq
          %v1990 = vshrl.u32 %v1989, 7
          %v1991 = vsub.s32 %v1988, %v1990
          %v1992 = vrot.slane %v1984, %v1991
          %v1994 = vunpack.c.l.s4 1983009808
          %v1995 = vunpack.c.0.s8 %v1994
          %v1996 = vlaneseq
          %v1997 = vshrl.u32 %v1996, 7
          %v1998 = vsub.s32 %v1995, %v1997
          %v1999 = vrot.slane %v1985, %v1998
          %v2000 = vcombine.low %v1992, %v1999
          %v2001 = vcombine.low %v1901, %v1905
          %v2002 = vcombine.low %v1909, %v1913
          %v2004 = vunpack.c.l.s4 1983009808
          %v2005 = vunpack.c.0.s8 %v2004
          %v2006 = vlaneseq
          %v2007 = vshrl.u32 %v2006, 7
          %v2008 = vsub.s32 %v2005, %v2007
          %v2009 = vrot.slane %v2001, %v2008
          %v2011 = vunpack.c.l.s4 1983009808
          %v2012 = vunpack.c.0.s8 %v2011
          %v2013 = vlaneseq
          %v2014 = vshrl.u32 %v2013, 7
          %v2015 = vsub.s32 %v2012, %v2014
          %v2016 = vrot.slane %v2002, %v2015
          %v2017 = vcombine.low %v2009, %v2016
          %v2018 = vcombine.low %v1917, %v1921
          %v2019 = vcombine.low %v1925, %v1929
          %v2021 = vunpack.c.l.s4 1983009808
          %v2022 = vunpack.c.0.s8 %v2021
          %v2023 = vlaneseq
          %v2024 = vshrl.u32 %v2023, 7
          %v2025 = vsub.s32 %v2022, %v2024
          %v2026 = vrot.slane %v2018, %v2025
          %v2028 = vunpack.c.l.s4 1983009808
          %v2029 = vunpack.c.0.s8 %v2028
          %v2030 = vlaneseq
          %v2031 = vshrl.u32 %v2030, 7
          %v2032 = vsub.s32 %v2029, %v2031
          %v2033 = vrot.slane %v2019, %v2032
          %v2034 = vcombine.low %v2026, %v2033
          %v2035 = vcombine.low %v1933, %v1937
          %v2036 = vcombine.low %v1941, %v1945
          %v2038 = vunpack.c.l.s4 1983009808
          %v2039 = vunpack.c.0.s8 %v2038
          %v2040 = vlaneseq
          %v2041 = vshrl.u32 %v2040, 7
          %v2042 = vsub.s32 %v2039, %v2041
          %v2043 = vrot.slane %v2035, %v2042
          %v2045 = vunpack.c.l.s4 1983009808
          %v2046 = vunpack.c.0.s8 %v2045
          %v2047 = vlaneseq
          %v2048 = vshrl.u32 %v2047, 7
          %v2049 = vsub.s32 %v2046, %v2048
          %v2050 = vrot.slane %v2036, %v2049
          %v2051 = vcombine.low %v2043, %v2050
          %v2053 = vunpack.c.l.s4 1983009808
          %v2054 = vunpack.c.0.s8 %v2053
          %v2055 = vlaneseq
          %v2056 = vshrl.u32 %v2055, 7
          %v2057 = vsub.s32 %v2054, %v2056
          %v2058 = vrot.slane %v1949, %v2057
          %v2066 = vmul.f32 %v1839, %v1966
          %v2067 = vmul.f32 %v1840, %v1983
          %v2068 = vmul.f32 %v1841, %v2000
          %v2069 = vmul.f32 %v1842, %v2017
          %v2070 = vmul.f32 %v1843, %v2034
          %v2071 = vmul.f32 %v1844, %v2051
          %v2072 = vmul.f32 %v1845, %v2058
          %2080 = vrot.lane.b32.xlu0 %v2066, 1
          %v2081 = vpop.permute.xlu0 %2080
          %2082 = vrot.lane.b32.xlu0 %v2067, 1
          %v2083 = vpop.permute.xlu0 %2082
          %2084 = vrot.lane.b32.xlu0 %v2068, 1
          %v2085 = vpop.permute.xlu0 %2084
          %2086 = vrot.lane.b32.xlu0 %v2069, 1
          %v2087 = vpop.permute.xlu0 %2086
          %2088 = vrot.lane.b32.xlu0 %v2070, 1
          %v2089 = vpop.permute.xlu0 %2088
          %2090 = vrot.lane.b32.xlu0 %v2071, 1
          %v2091 = vpop.permute.xlu0 %2090
          %2092 = vrot.lane.b32.xlu0 %v2072, 1
          %v2093 = vpop.permute.xlu0 %2092
          %v2094 = vrot.slane %v2081, 6
          %v2095 = vrot.slane %v2083, 6
          %v2096 = vrot.slane %v2085, 6
          %v2097 = vrot.slane %v2087, 6
          %v2098 = vrot.slane %v2089, 6
          %v2099 = vrot.slane %v2091, 6
          %v2100 = vrot.slane %v2093, 6
          %vm2101 = vcmask 7168
          %v2102 = vsel %vm2101, %v2094, %v2081
          %vm2103 = vcmask 1041408
          %v2104 = vsel %vm2103, %v2094, %v2095
          %v2105 = vsel %vm2101, %v2104, %v2083
          %v2106 = vsel %vm2103, %v2095, %v2096
          %v2107 = vsel %vm2101, %v2106, %v2085
          %v2108 = vsel %vm2103, %v2096, %v2097
          %v2109 = vsel %vm2101, %v2108, %v2087
          %v2110 = vsel %vm2103, %v2097, %v2098
          %v2111 = vsel %vm2101, %v2110, %v2089
          %v2112 = vsel %vm2103, %v2098, %v2099
          %v2113 = vsel %vm2101, %v2112, %v2091
          %v2114 = vsel %vm2103, %v2099, %v2100
          %v2115 = vsel %vm2101, %v2114, %v2093
          %v2123 = vadd.f32 %v1695, %v2102
          %v2124 = vadd.f32 %v1696, %v2105
          %v2125 = vadd.f32 %v1697, %v2107
          %v2126 = vadd.f32 %v1698, %v2109
          %v2127 = vadd.f32 %v1699, %v2111
          %v2128 = vadd.f32 %v1700, %v2113
          %v2129 = vadd.f32 %v1701, %v2115
          %v2130 = vld [vmem:[%s0 + $0x32] sm:$0xff]
          %v2131 = vld [vmem:[%s0 + $0x3a] sm:$0xff]
          %v2132 = vld [vmem:[%s0 + $0x42] sm:$0xff]
          %v2133 = vld [vmem:[%s0 + $0x4a] sm:$0xff]
          %v2134 = vld [vmem:[%s0 + $0x52] sm:$0xff]
          %v2135 = vld [vmem:[%s0 + $0x5a] sm:$0xff]
          %v2136 = vld [vmem:[%s0 + $0x62] sm:$0xf]
          %s2137 = sld [smem:[#allocation4 + $0x2]]
          %v2138 = vstv %s2137
          %v2139 = vmul.f32 %v2130, %v2138
          %v2140 = vmul.f32 %v2131, %v2138
          %v2141 = vmul.f32 %v2132, %v2138
          %v2142 = vmul.f32 %v2133, %v2138
          %v2143 = vmul.f32 %v2134, %v2138
          %v2144 = vmul.f32 %v2135, %v2138
          %v2145 = vmul.f32 %v2136, %v2138
          %s2146 = sld [smem:[#allocation4 + $0x5]]
          %v2147 = vstv %s2146
          %v2148 = vmul.f32 %v2130, %v2147
          %v2149 = vmul.f32 %v2131, %v2147
          %v2150 = vmul.f32 %v2132, %v2147
          %v2151 = vmul.f32 %v2133, %v2147
          %v2152 = vmul.f32 %v2134, %v2147
          %v2153 = vmul.f32 %v2135, %v2147
          %v2154 = vmul.f32 %v2136, %v2147
          %2162 = vrot.lane.b32.xlu0 %v2148, 48
          %v2163 = vpop.permute.xlu0 %2162
          %2164 = vrot.lane.b32.xlu0 %v2149, 48
          %v2165 = vpop.permute.xlu0 %2164
          %2166 = vrot.lane.b32.xlu0 %v2150, 48
          %v2167 = vpop.permute.xlu0 %2166
          %2168 = vrot.lane.b32.xlu0 %v2151, 48
          %v2169 = vpop.permute.xlu0 %2168
          %2170 = vrot.lane.b32.xlu0 %v2152, 48
          %v2171 = vpop.permute.xlu0 %2170
          %2172 = vrot.lane.b32.xlu0 %v2153, 48
          %v2173 = vpop.permute.xlu0 %2172
          %2174 = vrot.lane.b32.xlu0 %v2154, 48
          %v2175 = vpop.permute.xlu0 %2174
          %v2176 = vrot.slane %v2163, 2
          %v2177 = vrot.slane %v2165, 2
          %v2178 = vrot.slane %v2167, 2
          %v2179 = vrot.slane %v2169, 2
          %v2180 = vrot.slane %v2171, 2
          %v2181 = vrot.slane %v2173, 2
          %v2182 = vrot.slane %v2175, 2
          %v2183 = vsel %vm1601, %v2176, %v2177
          %v2184 = vsel %vm1603, %v2163, %v2183
          %v2185 = vsel %vm1601, %v2177, %v2178
          %v2186 = vsel %vm1603, %v2165, %v2185
          %v2187 = vsel %vm1601, %v2178, %v2179
          %v2188 = vsel %vm1603, %v2167, %v2187
          %v2189 = vsel %vm1601, %v2179, %v2180
          %v2190 = vsel %vm1603, %v2169, %v2189
          %v2191 = vsel %vm1601, %v2180, %v2181
          %v2192 = vsel %vm1603, %v2171, %v2191
          %v2193 = vsel %vm1601, %v2181, %v2182
          %v2194 = vsel %vm1603, %v2173, %v2193
          %v2195 = vsel %vm1603, %v2175, %v2182
          %v2203 = vadd.f32 %v2139, %v2184
          %v2204 = vadd.f32 %v2140, %v2186
          %v2205 = vadd.f32 %v2141, %v2188
          %v2206 = vadd.f32 %v2142, %v2190
          %v2207 = vadd.f32 %v2143, %v2192
          %v2208 = vadd.f32 %v2144, %v2194
          %v2209 = vadd.f32 %v2145, %v2195
          %v2210 = vld [vmem:[%s0 + $0x34] sm:$0xff]
          %v2211 = vld [vmem:[%s0 + $0x3c] sm:$0xff]
          %v2212 = vld [vmem:[%s0 + $0x44] sm:$0xff]
          %v2213 = vld [vmem:[%s0 + $0x4c] sm:$0xff]
          %v2214 = vld [vmem:[%s0 + $0x54] sm:$0xff]
          %v2215 = vld [vmem:[%s0 + $0x5c] sm:$0xff]
          %v2216 = vld [vmem:[%s0 + $0x64] sm:$0xf]
          %s2217 = sld [smem:[#allocation4 + $0x8]]
          %v2218 = vstv %s2217
          %v2219 = vmul.f32 %v2210, %v2218
          %v2220 = vmul.f32 %v2211, %v2218
          %v2221 = vmul.f32 %v2212, %v2218
          %v2222 = vmul.f32 %v2213, %v2218
          %v2223 = vmul.f32 %v2214, %v2218
          %v2224 = vmul.f32 %v2215, %v2218
          %v2225 = vmul.f32 %v2216, %v2218
          %2233 = vrot.lane.b32.xlu0 %v2219, 96
          %v2234 = vpop.permute.xlu0 %2233
          %2235 = vrot.lane.b32.xlu0 %v2220, 96
          %v2236 = vpop.permute.xlu0 %2235
          %2237 = vrot.lane.b32.xlu0 %v2221, 96
          %v2238 = vpop.permute.xlu0 %2237
          %2239 = vrot.lane.b32.xlu0 %v2222, 96
          %v2240 = vpop.permute.xlu0 %2239
          %2241 = vrot.lane.b32.xlu0 %v2223, 96
          %v2242 = vpop.permute.xlu0 %2241
          %2243 = vrot.lane.b32.xlu0 %v2224, 96
          %v2244 = vpop.permute.xlu0 %2243
          %2245 = vrot.lane.b32.xlu0 %v2225, 96
          %v2246 = vpop.permute.xlu0 %2245
          %v2247 = vrot.slane %v2234, 2
          %v2248 = vrot.slane %v2236, 2
          %v2249 = vrot.slane %v2238, 2
          %v2250 = vrot.slane %v2240, 2
          %v2251 = vrot.slane %v2242, 2
          %v2252 = vrot.slane %v2244, 2
          %v2253 = vrot.slane %v2246, 2
          %v2254 = vsel %vm1601, %v2247, %v2248
          %v2255 = vsel %vm1675, %v2234, %v2254
          %v2256 = vsel %vm1601, %v2248, %v2249
          %v2257 = vsel %vm1675, %v2236, %v2256
          %v2258 = vsel %vm1601, %v2249, %v2250
          %v2259 = vsel %vm1675, %v2238, %v2258
          %v2260 = vsel %vm1601, %v2250, %v2251
          %v2261 = vsel %vm1675, %v2240, %v2260
          %v2262 = vsel %vm1601, %v2251, %v2252
          %v2263 = vsel %vm1675, %v2242, %v2262
          %v2264 = vsel %vm1601, %v2252, %v2253
          %v2265 = vsel %vm1675, %v2244, %v2264
          %v2266 = vsel %vm1675, %v2246, %v2253
          %v2274 = vadd.f32 %v2203, %v2255
          %v2275 = vadd.f32 %v2204, %v2257
          %v2276 = vadd.f32 %v2205, %v2259
          %v2277 = vadd.f32 %v2206, %v2261
          %v2278 = vadd.f32 %v2207, %v2263
          %v2279 = vadd.f32 %v2208, %v2265
          %v2280 = vadd.f32 %v2209, %v2266
          %v2285 = vlaneseq
          %v2286 = vshrl.u32 %v2285, 7
          %v2287 = vsub.s32 0, %v2286
          %v2288 = vrot.slane %v418, %v2287
          %v2289 = vlaneseq
          %v2290 = vshrl.u32 %v2289, 7
          %v2291 = vsub.s32 1, %v2290
          %v2292 = vrot.slane %v418, %v2291
          %v2293 = vlaneseq
          %v2294 = vshrl.u32 %v2293, 7
          %v2295 = vsub.s32 2, %v2294
          %v2296 = vrot.slane %v418, %v2295
          %v2297 = vlaneseq
          %v2298 = vshrl.u32 %v2297, 7
          %v2299 = vsub.s32 3, %v2298
          %v2300 = vrot.slane %v418, %v2299
          %v2301 = vlaneseq
          %v2302 = vshrl.u32 %v2301, 7
          %v2303 = vsub.s32 4, %v2302
          %v2304 = vrot.slane %v418, %v2303
          %v2305 = vlaneseq
          %v2306 = vshrl.u32 %v2305, 7
          %v2307 = vsub.s32 5, %v2306
          %v2308 = vrot.slane %v418, %v2307
          %v2309 = vlaneseq
          %v2310 = vshrl.u32 %v2309, 7
          %v2311 = vsub.s32 6, %v2310
          %v2312 = vrot.slane %v418, %v2311
          %v2313 = vlaneseq
          %v2314 = vshrl.u32 %v2313, 7
          %v2315 = vsub.s32 7, %v2314
          %v2316 = vrot.slane %v418, %v2315
          %v2317 = vlaneseq
          %v2318 = vshrl.u32 %v2317, 7
          %v2319 = vsub.s32 0, %v2318
          %v2320 = vrot.slane %v420, %v2319
          %v2321 = vlaneseq
          %v2322 = vshrl.u32 %v2321, 7
          %v2323 = vsub.s32 1, %v2322
          %v2324 = vrot.slane %v420, %v2323
          %v2325 = vlaneseq
          %v2326 = vshrl.u32 %v2325, 7
          %v2327 = vsub.s32 2, %v2326
          %v2328 = vrot.slane %v420, %v2327
          %v2329 = vlaneseq
          %v2330 = vshrl.u32 %v2329, 7
          %v2331 = vsub.s32 3, %v2330
          %v2332 = vrot.slane %v420, %v2331
          %v2333 = vlaneseq
          %v2334 = vshrl.u32 %v2333, 7
          %v2335 = vsub.s32 4, %v2334
          %v2336 = vrot.slane %v420, %v2335
          %v2337 = vlaneseq
          %v2338 = vshrl.u32 %v2337, 7
          %v2339 = vsub.s32 5, %v2338
          %v2340 = vrot.slane %v420, %v2339
          %v2341 = vlaneseq
          %v2342 = vshrl.u32 %v2341, 7
          %v2343 = vsub.s32 6, %v2342
          %v2344 = vrot.slane %v420, %v2343
          %v2345 = vlaneseq
          %v2346 = vshrl.u32 %v2345, 7
          %v2347 = vsub.s32 7, %v2346
          %v2348 = vrot.slane %v420, %v2347
          %v2349 = vlaneseq
          %v2350 = vshrl.u32 %v2349, 7
          %v2351 = vsub.s32 0, %v2350
          %v2352 = vrot.slane %v422, %v2351
          %v2353 = vlaneseq
          %v2354 = vshrl.u32 %v2353, 7
          %v2355 = vsub.s32 1, %v2354
          %v2356 = vrot.slane %v422, %v2355
          %v2357 = vlaneseq
          %v2358 = vshrl.u32 %v2357, 7
          %v2359 = vsub.s32 2, %v2358
          %v2360 = vrot.slane %v422, %v2359
          %v2361 = vlaneseq
          %v2362 = vshrl.u32 %v2361, 7
          %v2363 = vsub.s32 3, %v2362
          %v2364 = vrot.slane %v422, %v2363
          %v2365 = vlaneseq
          %v2366 = vshrl.u32 %v2365, 7
          %v2367 = vsub.s32 4, %v2366
          %v2368 = vrot.slane %v422, %v2367
          %v2369 = vlaneseq
          %v2370 = vshrl.u32 %v2369, 7
          %v2371 = vsub.s32 5, %v2370
          %v2372 = vrot.slane %v422, %v2371
          %v2373 = vlaneseq
          %v2374 = vshrl.u32 %v2373, 7
          %v2375 = vsub.s32 6, %v2374
          %v2376 = vrot.slane %v422, %v2375
          %v2377 = vlaneseq
          %v2378 = vshrl.u32 %v2377, 7
          %v2379 = vsub.s32 7, %v2378
          %v2380 = vrot.slane %v422, %v2379
          %v2381 = vlaneseq
          %v2382 = vshrl.u32 %v2381, 7
          %v2383 = vsub.s32 0, %v2382
          %v2384 = vrot.slane %v424, %v2383
          %v2385 = vcombine.low %v2288, %v2292
          %v2386 = vcombine.low %v2296, %v2300
          %v2388 = vunpack.c.l.s4 1983009808
          %v2389 = vunpack.c.0.s8 %v2388
          %v2390 = vlaneseq
          %v2391 = vshrl.u32 %v2390, 7
          %v2392 = vsub.s32 %v2389, %v2391
          %v2393 = vrot.slane %v2385, %v2392
          %v2395 = vunpack.c.l.s4 1983009808
          %v2396 = vunpack.c.0.s8 %v2395
          %v2397 = vlaneseq
          %v2398 = vshrl.u32 %v2397, 7
          %v2399 = vsub.s32 %v2396, %v2398
          %v2400 = vrot.slane %v2386, %v2399
          %v2401 = vcombine.low %v2393, %v2400
          %v2402 = vcombine.low %v2304, %v2308
          %v2403 = vcombine.low %v2312, %v2316
          %v2405 = vunpack.c.l.s4 1983009808
          %v2406 = vunpack.c.0.s8 %v2405
          %v2407 = vlaneseq
          %v2408 = vshrl.u32 %v2407, 7
          %v2409 = vsub.s32 %v2406, %v2408
          %v2410 = vrot.slane %v2402, %v2409
          %v2412 = vunpack.c.l.s4 1983009808
          %v2413 = vunpack.c.0.s8 %v2412
          %v2414 = vlaneseq
          %v2415 = vshrl.u32 %v2414, 7
          %v2416 = vsub.s32 %v2413, %v2415
          %v2417 = vrot.slane %v2403, %v2416
          %v2418 = vcombine.low %v2410, %v2417
          %v2419 = vcombine.low %v2320, %v2324
          %v2420 = vcombine.low %v2328, %v2332
          %v2422 = vunpack.c.l.s4 1983009808
          %v2423 = vunpack.c.0.s8 %v2422
          %v2424 = vlaneseq
          %v2425 = vshrl.u32 %v2424, 7
          %v2426 = vsub.s32 %v2423, %v2425
          %v2427 = vrot.slane %v2419, %v2426
          %v2429 = vunpack.c.l.s4 1983009808
          %v2430 = vunpack.c.0.s8 %v2429
          %v2431 = vlaneseq
          %v2432 = vshrl.u32 %v2431, 7
          %v2433 = vsub.s32 %v2430, %v2432
          %v2434 = vrot.slane %v2420, %v2433
          %v2435 = vcombine.low %v2427, %v2434
          %v2436 = vcombine.low %v2336, %v2340
          %v2437 = vcombine.low %v2344, %v2348
          %v2439 = vunpack.c.l.s4 1983009808
          %v2440 = vunpack.c.0.s8 %v2439
          %v2441 = vlaneseq
          %v2442 = vshrl.u32 %v2441, 7
          %v2443 = vsub.s32 %v2440, %v2442
          %v2444 = vrot.slane %v2436, %v2443
          %v2446 = vunpack.c.l.s4 1983009808
          %v2447 = vunpack.c.0.s8 %v2446
          %v2448 = vlaneseq
          %v2449 = vshrl.u32 %v2448, 7
          %v2450 = vsub.s32 %v2447, %v2449
          %v2451 = vrot.slane %v2437, %v2450
          %v2452 = vcombine.low %v2444, %v2451
          %v2453 = vcombine.low %v2352, %v2356
          %v2454 = vcombine.low %v2360, %v2364
          %v2456 = vunpack.c.l.s4 1983009808
          %v2457 = vunpack.c.0.s8 %v2456
          %v2458 = vlaneseq
          %v2459 = vshrl.u32 %v2458, 7
          %v2460 = vsub.s32 %v2457, %v2459
          %v2461 = vrot.slane %v2453, %v2460
          %v2463 = vunpack.c.l.s4 1983009808
          %v2464 = vunpack.c.0.s8 %v2463
          %v2465 = vlaneseq
          %v2466 = vshrl.u32 %v2465, 7
          %v2467 = vsub.s32 %v2464, %v2466
          %v2468 = vrot.slane %v2454, %v2467
          %v2469 = vcombine.low %v2461, %v2468
          %v2470 = vcombine.low %v2368, %v2372
          %v2471 = vcombine.low %v2376, %v2380
          %v2473 = vunpack.c.l.s4 1983009808
          %v2474 = vunpack.c.0.s8 %v2473
          %v2475 = vlaneseq
          %v2476 = vshrl.u32 %v2475, 7
          %v2477 = vsub.s32 %v2474, %v2476
          %v2478 = vrot.slane %v2470, %v2477
          %v2480 = vunpack.c.l.s4 1983009808
          %v2481 = vunpack.c.0.s8 %v2480
          %v2482 = vlaneseq
          %v2483 = vshrl.u32 %v2482, 7
          %v2484 = vsub.s32 %v2481, %v2483
          %v2485 = vrot.slane %v2471, %v2484
          %v2486 = vcombine.low %v2478, %v2485
          %v2488 = vunpack.c.l.s4 1983009808
          %v2489 = vunpack.c.0.s8 %v2488
          %v2490 = vlaneseq
          %v2491 = vshrl.u32 %v2490, 7
          %v2492 = vsub.s32 %v2489, %v2491
          %v2493 = vrot.slane %v2384, %v2492
          %2494 = vrot.lane.b32.xlu0 %v2401, 2
          %v2495 = vpop.permute.xlu0 %2494
          %2496 = vrot.lane.b32.xlu0 %v2418, 2
          %v2497 = vpop.permute.xlu0 %2496
          %2498 = vrot.lane.b32.xlu0 %v2435, 2
          %v2499 = vpop.permute.xlu0 %2498
          %2500 = vrot.lane.b32.xlu0 %v2452, 2
          %v2501 = vpop.permute.xlu0 %2500
          %2502 = vrot.lane.b32.xlu0 %v2469, 2
          %v2503 = vpop.permute.xlu0 %2502
          %2504 = vrot.lane.b32.xlu0 %v2486, 2
          %v2505 = vpop.permute.xlu0 %2504
          %2506 = vrot.lane.b32.xlu0 %v2493, 2
          %v2507 = vpop.permute.xlu0 %2506
          %v2508 = vrot.slane %v2495, 6
          %v2509 = vrot.slane %v2497, 6
          %v2510 = vrot.slane %v2499, 6
          %v2511 = vrot.slane %v2501, 6
          %v2512 = vrot.slane %v2503, 6
          %v2513 = vrot.slane %v2505, 6
          %v2514 = vrot.slane %v2507, 6
          %vm2515 = vcmask 15360
          %v2516 = vsel %vm2515, %v2508, %v2495
          %v2517 = vsel %vm2103, %v2508, %v2509
          %v2518 = vsel %vm2515, %v2517, %v2497
          %v2519 = vsel %vm2103, %v2509, %v2510
          %v2520 = vsel %vm2515, %v2519, %v2499
          %v2521 = vsel %vm2103, %v2510, %v2511
          %v2522 = vsel %vm2515, %v2521, %v2501
          %v2523 = vsel %vm2103, %v2511, %v2512
          %v2524 = vsel %vm2515, %v2523, %v2503
          %v2525 = vsel %vm2103, %v2512, %v2513
          %v2526 = vsel %vm2515, %v2525, %v2505
          %v2527 = vsel %vm2103, %v2513, %v2514
          %v2528 = vsel %vm2515, %v2527, %v2507
          %v2536 = vmul.f32 %v2274, %v2516
          %v2537 = vmul.f32 %v2275, %v2518
          %v2538 = vmul.f32 %v2276, %v2520
          %v2539 = vmul.f32 %v2277, %v2522
          %v2540 = vmul.f32 %v2278, %v2524
          %v2541 = vmul.f32 %v2279, %v2526
          %v2542 = vmul.f32 %v2280, %v2528
          %2550 = vrot.lane.b32.xlu0 %v2536, 127
          %v2551 = vpop.permute.xlu0 %2550
          %2552 = vrot.lane.b32.xlu0 %v2537, 127
          %v2553 = vpop.permute.xlu0 %2552
          %2554 = vrot.lane.b32.xlu0 %v2538, 127
          %v2555 = vpop.permute.xlu0 %2554
          %2556 = vrot.lane.b32.xlu0 %v2539, 127
          %v2557 = vpop.permute.xlu0 %2556
          %2558 = vrot.lane.b32.xlu0 %v2540, 127
          %v2559 = vpop.permute.xlu0 %2558
          %2560 = vrot.lane.b32.xlu0 %v2541, 127
          %v2561 = vpop.permute.xlu0 %2560
          %2562 = vrot.lane.b32.xlu0 %v2542, 127
          %v2563 = vpop.permute.xlu0 %2562
          %v2564 = vrot.slane %v2551, 2
          %v2565 = vrot.slane %v2553, 2
          %v2566 = vrot.slane %v2555, 2
          %v2567 = vrot.slane %v2557, 2
          %v2568 = vrot.slane %v2559, 2
          %v2569 = vrot.slane %v2561, 2
          %v2570 = vrot.slane %v2563, 2
          %v2571 = vsel %vm1601, %v2564, %v2565
          %vm2572 = vcmask 1039360
          %v2573 = vsel %vm2572, %v2551, %v2571
          %v2574 = vsel %vm1601, %v2565, %v2566
          %v2575 = vsel %vm2572, %v2553, %v2574
          %v2576 = vsel %vm1601, %v2566, %v2567
          %v2577 = vsel %vm2572, %v2555, %v2576
          %v2578 = vsel %vm1601, %v2567, %v2568
          %v2579 = vsel %vm2572, %v2557, %v2578
          %v2580 = vsel %vm1601, %v2568, %v2569
          %v2581 = vsel %vm2572, %v2559, %v2580
          %v2582 = vsel %vm1601, %v2569, %v2570
          %v2583 = vsel %vm2572, %v2561, %v2582
          %v2584 = vsel %vm2572, %v2563, %v2570
          %v2592 = vadd.f32 %v2123, %v2573
          %v2593 = vadd.f32 %v2124, %v2575
          %v2594 = vadd.f32 %v2125, %v2577
          %v2595 = vadd.f32 %v2126, %v2579
          %v2596 = vadd.f32 %v2127, %v2581
          %v2597 = vadd.f32 %v2128, %v2583
          %v2598 = vadd.f32 %v2129, %v2584
          %s2599 = sld [smem:[#allocation3]]
          %v2600 = vstv %s2599
          %v2601 = vadd.f32 %v2592, %v2600
          %v2602 = vadd.f32 %v2593, %v2600
          %v2603 = vadd.f32 %v2594, %v2600
          %v2604 = vadd.f32 %v2595, %v2600
          %v2605 = vadd.f32 %v2596, %v2600
          %v2606 = vadd.f32 %v2597, %v2600
          %v2607 = vadd.f32 %v2598, %v2600
          %2615 = vrot.lane.b32.xlu0 %v2601, 127
          %v2616 = vpop.permute.xlu0 %2615
          %2617 = vrot.lane.b32.xlu0 %v2602, 127
          %v2618 = vpop.permute.xlu0 %2617
          %2619 = vrot.lane.b32.xlu0 %v2603, 127
          %v2620 = vpop.permute.xlu0 %2619
          %2621 = vrot.lane.b32.xlu0 %v2604, 127
          %v2622 = vpop.permute.xlu0 %2621
          %2623 = vrot.lane.b32.xlu0 %v2605, 127
          %v2624 = vpop.permute.xlu0 %2623
          %2625 = vrot.lane.b32.xlu0 %v2606, 127
          %v2626 = vpop.permute.xlu0 %2625
          %2627 = vrot.lane.b32.xlu0 %v2607, 127
          %v2628 = vpop.permute.xlu0 %2627
          %v2629 = vrot.slane %v2616, 2
          %v2630 = vrot.slane %v2618, 2
          %v2631 = vrot.slane %v2620, 2
          %v2632 = vrot.slane %v2622, 2
          %v2633 = vrot.slane %v2624, 2
          %v2634 = vrot.slane %v2626, 2
          %v2635 = vrot.slane %v2628, 2
          %v2636 = vsel %vm1601, %v2629, %v2630
          %v2637 = vsel %vm2572, %v2616, %v2636
          %v2638 = vsel %vm1601, %v2630, %v2631
          %v2639 = vsel %vm2572, %v2618, %v2638
          %v2640 = vsel %vm1601, %v2631, %v2632
          %v2641 = vsel %vm2572, %v2620, %v2640
          %v2642 = vsel %vm1601, %v2632, %v2633
          %v2643 = vsel %vm2572, %v2622, %v2642
          %v2644 = vsel %vm1601, %v2633, %v2634
          %v2645 = vsel %vm2572, %v2624, %v2644
          %v2646 = vsel %vm1601, %v2634, %v2635
          %v2647 = vsel %vm2572, %v2626, %v2646
          %v2648 = vsel %vm2572, %v2628, %v2635
          %2656 = vst [vmem:[%s407] sm:$0xff] %v2637
          %2657 = vst [vmem:[%s407 + $0x8] sm:$0xff] %v2639
          %2658 = vst [vmem:[%s407 + $0x10] sm:$0xff] %v2641
          %2659 = vst [vmem:[%s407 + $0x18] sm:$0xff] %v2643
          %2660 = vst [vmem:[%s407 + $0x20] sm:$0xff] %v2645
          %2661 = vst [vmem:[%s407 + $0x28] sm:$0xff] %v2647
          %2662 = vst [vmem:[%s407 + $0x30] sm:$0x3] %v2648
        $region76: #{mainnet_forward.1} parent=55 // pred_fallthru
          _
        %v2663 = vld [vmem:[%s407] sm:$0xff]
        %v2664 = vld [vmem:[%s407 + $0x8] sm:$0xff]
        %v2665 = vld [vmem:[%s407 + $0x10] sm:$0xff]
        %v2666 = vld [vmem:[%s407 + $0x18] sm:$0xff]
        %v2667 = vld [vmem:[%s407 + $0x20] sm:$0xff]
        %v2668 = vld [vmem:[%s407 + $0x28] sm:$0xff]
        %v2669 = vld [vmem:[%s407 + $0x30] sm:$0x3]
        // Predicated region
        $region77: #{mainnet_forward.1} parent=55 // pred_check
          %p2670 = pneg %p425
        $region78: #{mainnet_forward.1} parent=55 // pred_check_branch
          %2672 = sbr.rel (%p2670) target = $region80
        $region79: #{mainnet_forward.1} parent=55 // pred_region
          %2673 = vst [vmem:[#allocation2] sm:$0x3] 0.0
        $region80: #{mainnet_forward.1} parent=55 // pred_fallthru
          _
        %v2674 = vld [vmem:[#allocation2] sm:$0x3]
        %v2682 = vcombine.high %v2663, %v2663
        %v2684 = vunpack.c.l.s4 1983009808
        %v2685 = vunpack.c.0.s8 %v2684
        %v2686 = vlaneseq
        %v2687 = vshrl.u32 %v2686, 7
        %v2688 = vsub.s32 %v2685, %v2687
        %v2689 = vrot.slane %v2663, %v2688
        %v2691 = vunpack.c.l.s4 1983009808
        %v2692 = vunpack.c.0.s8 %v2691
        %v2693 = vlaneseq
        %v2694 = vshrl.u32 %v2693, 7
        %v2695 = vsub.s32 %v2692, %v2694
        %v2696 = vrot.slane %v2682, %v2695
        %v2697 = vcombine.high %v2689, %v2689
        %v2698 = vcombine.high %v2696, %v2696
        %v2699 = vcombine.high %v2664, %v2664
        %v2701 = vunpack.c.l.s4 1983009808
        %v2702 = vunpack.c.0.s8 %v2701
        %v2703 = vlaneseq
        %v2704 = vshrl.u32 %v2703, 7
        %v2705 = vsub.s32 %v2702, %v2704
        %v2706 = vrot.slane %v2664, %v2705
        %v2708 = vunpack.c.l.s4 1983009808
        %v2709 = vunpack.c.0.s8 %v2708
        %v2710 = vlaneseq
        %v2711 = vshrl.u32 %v2710, 7
        %v2712 = vsub.s32 %v2709, %v2711
        %v2713 = vrot.slane %v2699, %v2712
        %v2714 = vcombine.high %v2706, %v2706
        %v2715 = vcombine.high %v2713, %v2713
        %v2716 = vcombine.high %v2665, %v2665
        %v2718 = vunpack.c.l.s4 1983009808
        %v2719 = vunpack.c.0.s8 %v2718
        %v2720 = vlaneseq
        %v2721 = vshrl.u32 %v2720, 7
        %v2722 = vsub.s32 %v2719, %v2721
        %v2723 = vrot.slane %v2665, %v2722
        %v2725 = vunpack.c.l.s4 1983009808
        %v2726 = vunpack.c.0.s8 %v2725
        %v2727 = vlaneseq
        %v2728 = vshrl.u32 %v2727, 7
        %v2729 = vsub.s32 %v2726, %v2728
        %v2730 = vrot.slane %v2716, %v2729
        %v2731 = vcombine.high %v2723, %v2723
        %v2732 = vcombine.high %v2730, %v2730
        %v2733 = vcombine.high %v2666, %v2666
        %v2735 = vunpack.c.l.s4 1983009808
        %v2736 = vunpack.c.0.s8 %v2735
        %v2737 = vlaneseq
        %v2738 = vshrl.u32 %v2737, 7
        %v2739 = vsub.s32 %v2736, %v2738
        %v2740 = vrot.slane %v2666, %v2739
        %v2742 = vunpack.c.l.s4 1983009808
        %v2743 = vunpack.c.0.s8 %v2742
        %v2744 = vlaneseq
        %v2745 = vshrl.u32 %v2744, 7
        %v2746 = vsub.s32 %v2743, %v2745
        %v2747 = vrot.slane %v2733, %v2746
        %v2748 = vcombine.high %v2740, %v2740
        %v2749 = vcombine.high %v2747, %v2747
        %v2750 = vcombine.high %v2667, %v2667
        %v2752 = vunpack.c.l.s4 1983009808
        %v2753 = vunpack.c.0.s8 %v2752
        %v2754 = vlaneseq
        %v2755 = vshrl.u32 %v2754, 7
        %v2756 = vsub.s32 %v2753, %v2755
        %v2757 = vrot.slane %v2667, %v2756
        %v2759 = vunpack.c.l.s4 1983009808
        %v2760 = vunpack.c.0.s8 %v2759
        %v2761 = vlaneseq
        %v2762 = vshrl.u32 %v2761, 7
        %v2763 = vsub.s32 %v2760, %v2762
        %v2764 = vrot.slane %v2750, %v2763
        %v2765 = vcombine.high %v2757, %v2757
        %v2766 = vcombine.high %v2764, %v2764
        %v2767 = vcombine.high %v2668, %v2668
        %v2769 = vunpack.c.l.s4 1983009808
        %v2770 = vunpack.c.0.s8 %v2769
        %v2771 = vlaneseq
        %v2772 = vshrl.u32 %v2771, 7
        %v2773 = vsub.s32 %v2770, %v2772
        %v2774 = vrot.slane %v2668, %v2773
        %v2776 = vunpack.c.l.s4 1983009808
        %v2777 = vunpack.c.0.s8 %v2776
        %v2778 = vlaneseq
        %v2779 = vshrl.u32 %v2778, 7
        %v2780 = vsub.s32 %v2777, %v2779
        %v2781 = vrot.slane %v2767, %v2780
        %v2782 = vcombine.high %v2774, %v2774
        %v2783 = vcombine.high %v2781, %v2781
        %v2785 = vunpack.c.l.s4 1983009808
        %v2786 = vunpack.c.0.s8 %v2785
        %v2787 = vlaneseq
        %v2788 = vshrl.u32 %v2787, 7
        %v2789 = vsub.s32 %v2786, %v2788
        %v2790 = vrot.slane %v2669, %v2789
        %v2816 = vpack.c.bf16 %v2689, %v2689
        %v2817 = vpack.c.bf16 %v2697, %v2697
        %v2818 = vpack.c.bf16 %v2696, %v2696
        %v2819 = vpack.c.bf16 %v2698, %v2698
        %v2820 = vpack.c.bf16 %v2706, %v2706
        %v2821 = vpack.c.bf16 %v2714, %v2714
        %v2822 = vpack.c.bf16 %v2713, %v2713
        %v2823 = vpack.c.bf16 %v2715, %v2715
        %v2824 = vpack.c.bf16 %v2723, %v2723
        %v2825 = vpack.c.bf16 %v2731, %v2731
        %v2826 = vpack.c.bf16 %v2730, %v2730
        %v2827 = vpack.c.bf16 %v2732, %v2732
        %v2828 = vpack.c.bf16 %v2740, %v2740
        %v2829 = vpack.c.bf16 %v2748, %v2748
        %v2830 = vpack.c.bf16 %v2747, %v2747
        %v2831 = vpack.c.bf16 %v2749, %v2749
        %v2832 = vpack.c.bf16 %v2757, %v2757
        %v2833 = vpack.c.bf16 %v2765, %v2765
        %v2834 = vpack.c.bf16 %v2764, %v2764
        %v2835 = vpack.c.bf16 %v2766, %v2766
        %v2836 = vpack.c.bf16 %v2774, %v2774
        %v2837 = vpack.c.bf16 %v2782, %v2782
        %v2838 = vpack.c.bf16 %v2781, %v2781
        %v2839 = vpack.c.bf16 %v2783, %v2783
        %v2840 = vpack.c.bf16 %v2790, %v2790
        %v2841 = vld [vmem:[%s360] sm:$0xff]
        %v2842 = vld [vmem:[%s360 + $0x8] sm:$0xff]
        %v2843 = vld [vmem:[%s360 + $0x10] sm:$0xff]
        %v2844 = vld [vmem:[%s360 + $0x18] sm:$0xff]
        %v2845 = vld [vmem:[%s360 + $0x20] sm:$0xff]
        %v2846 = vld [vmem:[%s360 + $0x28] sm:$0xff]
        %v2847 = vld [vmem:[%s360 + $0x30] sm:$0xff]
        %v2848 = vld [vmem:[%s360 + $0x38] sm:$0xff]
        %v2849 = vld [vmem:[%s360 + $0x40] sm:$0xff]
        %v2850 = vld [vmem:[%s360 + $0x48] sm:$0xff]
        %v2851 = vld [vmem:[%s360 + $0x50] sm:$0xff]
        %v2852 = vld [vmem:[%s360 + $0x58] sm:$0xff]
        %v2853 = vld [vmem:[%s360 + $0x60] sm:$0xff]
        %v2854 = vld [vmem:[%s360 + $0x68] sm:$0xff]
        %v2855 = vld [vmem:[%s360 + $0x70] sm:$0xff]
        %v2856 = vld [vmem:[%s360 + $0x78] sm:$0xff]
        %v2857 = vld [vmem:[%s360 + $0x80] sm:$0xff]
        %v2858 = vld [vmem:[%s360 + $0x88] sm:$0xff]
        %v2859 = vld [vmem:[%s360 + $0x90] sm:$0xff]
        %v2860 = vld [vmem:[%s360 + $0x98] sm:$0xff]
        %v2861 = vld [vmem:[%s360 + $0xa0] sm:$0xff]
        %v2862 = vld [vmem:[%s360 + $0xa8] sm:$0xff]
        %v2863 = vld [vmem:[%s360 + $0xb0] sm:$0xff]
        %v2864 = vld [vmem:[%s360 + $0xb8] sm:$0xff]
        %v2865 = vld [vmem:[%s360 + $0xc0] sm:$0xff]
        %v2866 = vld [vmem:[%s360 + $0xc8] sm:$0xff]
        %v2867 = vld [vmem:[%s360 + $0xd0] sm:$0xff]
        %v2868 = vld [vmem:[%s360 + $0xd8] sm:$0xff]
        %v2869 = vld [vmem:[%s360 + $0xe0] sm:$0xff]
        %v2870 = vld [vmem:[%s360 + $0xe8] sm:$0xff]
        %v2871 = vld [vmem:[%s360 + $0xf0] sm:$0xff]
        %v2872 = vld [vmem:[%s360 + $0xf8] sm:$0xff]
        %v2873 = vld [vmem:[%s360 + $0x100] sm:$0xff]
        %v2874 = vld [vmem:[%s360 + $0x108] sm:$0xff]
        %v2875 = vld [vmem:[%s360 + $0x110] sm:$0xff]
        %v2876 = vld [vmem:[%s360 + $0x118] sm:$0xff]
        %v2877 = vld [vmem:[%s360 + $0x120] sm:$0xff]
        %v2878 = vld [vmem:[%s360 + $0x128] sm:$0xff]
        %v2879 = vld [vmem:[%s360 + $0x130] sm:$0xff]
        %v2880 = vld [vmem:[%s360 + $0x138] sm:$0xff]
        %v2881 = vld [vmem:[%s360 + $0x140] sm:$0xff]
        %v2882 = vld [vmem:[%s360 + $0x148] sm:$0xff]
        %v2883 = vld [vmem:[%s360 + $0x150] sm:$0xff]
        %v2884 = vld [vmem:[%s360 + $0x158] sm:$0xff]
        %v2885 = vld [vmem:[%s360 + $0x160] sm:$0xff]
        %v2886 = vld [vmem:[%s360 + $0x168] sm:$0xff]
        %v2887 = vld [vmem:[%s360 + $0x170] sm:$0xff]
        %v2888 = vld [vmem:[%s360 + $0x178] sm:$0xff]
        %v2889 = vld [vmem:[%s360 + $0x180] sm:$0xff]
        %v2890 = vld [vmem:[%s360 + $0x188] sm:$0xff]
        %v2891 = vld [vmem:[%s360 + $0x190] sm:$0xff]
        %v2892 = vld [vmem:[%s360 + $0x198] sm:$0xff]
        %v2893 = vld [vmem:[%s360 + $0x1a0] sm:$0xff]
        %v2894 = vld [vmem:[%s360 + $0x1a8] sm:$0xff]
        %v2895 = vld [vmem:[%s360 + $0x1b0] sm:$0xff]
        %v2896 = vld [vmem:[%s360 + $0x1b8] sm:$0xff]
        %v2897 = vld [vmem:[%s360 + $0x1c0] sm:$0xff]
        %v2898 = vld [vmem:[%s360 + $0x1c8] sm:$0xff]
        %v2899 = vld [vmem:[%s360 + $0x1d0] sm:$0xff]
        %v2900 = vld [vmem:[%s360 + $0x1d8] sm:$0xff]
        %v2901 = vld [vmem:[%s360 + $0x1e0] sm:$0xff]
        %v2902 = vld [vmem:[%s360 + $0x1e8] sm:$0xff]
        %v2903 = vld [vmem:[%s360 + $0x1f0] sm:$0xff]
        %v2904 = vld [vmem:[%s360 + $0x1f8] sm:$0xff]
        %v2905 = vld [vmem:[%s360 + $0x200] sm:$0xff]
        %v2906 = vld [vmem:[%s360 + $0x208] sm:$0xff]
        %v2907 = vld [vmem:[%s360 + $0x210] sm:$0xff]
        %v2908 = vld [vmem:[%s360 + $0x218] sm:$0xff]
        %v2909 = vld [vmem:[%s360 + $0x220] sm:$0xff]
        %v2910 = vld [vmem:[%s360 + $0x228] sm:$0xff]
        %v2911 = vld [vmem:[%s360 + $0x230] sm:$0xff]
        %v2912 = vld [vmem:[%s360 + $0x238] sm:$0xff]
        %v2913 = vld [vmem:[%s360 + $0x240] sm:$0xff]
        %v2914 = vld [vmem:[%s360 + $0x248] sm:$0xff]
        %v2915 = vld [vmem:[%s360 + $0x250] sm:$0xff]
        %v2916 = vld [vmem:[%s360 + $0x258] sm:$0xff]
        %v2917 = vld [vmem:[%s360 + $0x260] sm:$0xff]
        %v2918 = vld [vmem:[%s360 + $0x268] sm:$0xff]
        %v2919 = vld [vmem:[%s360 + $0x270] sm:$0xff]
        %v2920 = vld [vmem:[%s360 + $0x278] sm:$0xff]
        %v2921 = vld [vmem:[%s360 + $0x280] sm:$0xff]
        %v2922 = vld [vmem:[%s360 + $0x288] sm:$0xff]
        %v2923 = vld [vmem:[%s360 + $0x290] sm:$0xff]
        %v2924 = vld [vmem:[%s360 + $0x298] sm:$0xff]
        %v2925 = vld [vmem:[%s360 + $0x2a0] sm:$0xff]
        %v2926 = vld [vmem:[%s360 + $0x2a8] sm:$0xff]
        %v2927 = vld [vmem:[%s360 + $0x2b0] sm:$0xff]
        %v2928 = vld [vmem:[%s360 + $0x2b8] sm:$0xff]
        %v2929 = vld [vmem:[%s360 + $0x2c0] sm:$0xff]
        %v2930 = vld [vmem:[%s360 + $0x2c8] sm:$0xff]
        %v2931 = vld [vmem:[%s360 + $0x2d0] sm:$0xff]
        %v2932 = vld [vmem:[%s360 + $0x2d8] sm:$0xff]
        %v2933 = vld [vmem:[%s360 + $0x2e0] sm:$0xff]
        %v2934 = vld [vmem:[%s360 + $0x2e8] sm:$0xff]
        %v2935 = vld [vmem:[%s360 + $0x2f0] sm:$0xff]
        %v2936 = vld [vmem:[%s360 + $0x2f8] sm:$0xff]
        %v2937 = vld [vmem:[%s360 + $0x300] sm:$0xff]
        %v2938 = vld [vmem:[%s360 + $0x308] sm:$0xff]
        %v2939 = vld [vmem:[%s360 + $0x310] sm:$0xff]
        %v2940 = vld [vmem:[%s360 + $0x318] sm:$0xff]
        %v2941 = vunpack.c.l.s8.bf16 %v2841
        %v2942 = vunpack.c.h.s8.bf16 %v2841
        %v2943 = vunpack.c.l.s8.bf16 %v2842
        %v2944 = vunpack.c.h.s8.bf16 %v2842
        %v2945 = vunpack.c.l.s8.bf16 %v2843
        %v2946 = vunpack.c.h.s8.bf16 %v2843
        %v2947 = vunpack.c.l.s8.bf16 %v2844
        %v2948 = vunpack.c.h.s8.bf16 %v2844
        %v2949 = vunpack.c.l.s8.bf16 %v2845
        %v2950 = vunpack.c.h.s8.bf16 %v2845
        %v2951 = vunpack.c.l.s8.bf16 %v2846
        %v2952 = vunpack.c.h.s8.bf16 %v2846
        %v2953 = vunpack.c.l.s8.bf16 %v2847
        %v2954 = vunpack.c.h.s8.bf16 %v2847
        %v2955 = vunpack.c.l.s8.bf16 %v2848
        %v2956 = vunpack.c.h.s8.bf16 %v2848
        %v2957 = vunpack.c.l.s8.bf16 %v2849
        %v2958 = vunpack.c.h.s8.bf16 %v2849
        %v2959 = vunpack.c.l.s8.bf16 %v2850
        %v2960 = vunpack.c.h.s8.bf16 %v2850
        %v2961 = vunpack.c.l.s8.bf16 %v2851
        %v2962 = vunpack.c.h.s8.bf16 %v2851
        %v2963 = vunpack.c.l.s8.bf16 %v2852
        %v2964 = vunpack.c.h.s8.bf16 %v2852
        %v2965 = vunpack.c.l.s8.bf16 %v2853
        %v2966 = vunpack.c.h.s8.bf16 %v2853
        %v2967 = vunpack.c.l.s8.bf16 %v2854
        %v2968 = vunpack.c.h.s8.bf16 %v2854
        %v2969 = vunpack.c.l.s8.bf16 %v2855
        %v2970 = vunpack.c.h.s8.bf16 %v2855
        %v2971 = vunpack.c.l.s8.bf16 %v2856
        %v2972 = vunpack.c.h.s8.bf16 %v2856
        %v2973 = vunpack.c.l.s8.bf16 %v2857
        %v2974 = vunpack.c.h.s8.bf16 %v2857
        %v2975 = vunpack.c.l.s8.bf16 %v2858
        %v2976 = vunpack.c.h.s8.bf16 %v2858
        %v2977 = vunpack.c.l.s8.bf16 %v2859
        %v2978 = vunpack.c.h.s8.bf16 %v2859
        %v2979 = vunpack.c.l.s8.bf16 %v2860
        %v2980 = vunpack.c.h.s8.bf16 %v2860
        %v2981 = vunpack.c.l.s8.bf16 %v2861
        %v2982 = vunpack.c.h.s8.bf16 %v2861
        %v2983 = vunpack.c.l.s8.bf16 %v2862
        %v2984 = vunpack.c.h.s8.bf16 %v2862
        %v2985 = vunpack.c.l.s8.bf16 %v2863
        %v2986 = vunpack.c.h.s8.bf16 %v2863
        %v2987 = vunpack.c.l.s8.bf16 %v2864
        %v2988 = vunpack.c.h.s8.bf16 %v2864
        %v2989 = vunpack.c.l.s8.bf16 %v2865
        %v2990 = vunpack.c.h.s8.bf16 %v2865
        %v2991 = vunpack.c.l.s8.bf16 %v2866
        %v2992 = vunpack.c.h.s8.bf16 %v2866
        %v2993 = vunpack.c.l.s8.bf16 %v2867
        %v2994 = vunpack.c.h.s8.bf16 %v2867
        %v2995 = vunpack.c.l.s8.bf16 %v2868
        %v2996 = vunpack.c.h.s8.bf16 %v2868
        %v2997 = vunpack.c.l.s8.bf16 %v2869
        %v2998 = vunpack.c.h.s8.bf16 %v2869
        %v2999 = vunpack.c.l.s8.bf16 %v2870
        %v3000 = vunpack.c.h.s8.bf16 %v2870
        %v3001 = vunpack.c.l.s8.bf16 %v2871
        %v3002 = vunpack.c.h.s8.bf16 %v2871
        %v3003 = vunpack.c.l.s8.bf16 %v2872
        %v3004 = vunpack.c.h.s8.bf16 %v2872
        %v3005 = vunpack.c.l.s8.bf16 %v2873
        %v3006 = vunpack.c.h.s8.bf16 %v2873
        %v3007 = vunpack.c.l.s8.bf16 %v2874
        %v3008 = vunpack.c.h.s8.bf16 %v2874
        %v3009 = vunpack.c.l.s8.bf16 %v2875
        %v3010 = vunpack.c.h.s8.bf16 %v2875
        %v3011 = vunpack.c.l.s8.bf16 %v2876
        %v3012 = vunpack.c.h.s8.bf16 %v2876
        %v3013 = vunpack.c.l.s8.bf16 %v2877
        %v3014 = vunpack.c.h.s8.bf16 %v2877
        %v3015 = vunpack.c.l.s8.bf16 %v2878
        %v3016 = vunpack.c.h.s8.bf16 %v2878
        %v3017 = vunpack.c.l.s8.bf16 %v2879
        %v3018 = vunpack.c.h.s8.bf16 %v2879
        %v3019 = vunpack.c.l.s8.bf16 %v2880
        %v3020 = vunpack.c.h.s8.bf16 %v2880
        %v3021 = vunpack.c.l.s8.bf16 %v2881
        %v3022 = vunpack.c.h.s8.bf16 %v2881
        %v3023 = vunpack.c.l.s8.bf16 %v2882
        %v3024 = vunpack.c.h.s8.bf16 %v2882
        %v3025 = vunpack.c.l.s8.bf16 %v2883
        %v3026 = vunpack.c.h.s8.bf16 %v2883
        %v3027 = vunpack.c.l.s8.bf16 %v2884
        %v3028 = vunpack.c.h.s8.bf16 %v2884
        %v3029 = vunpack.c.l.s8.bf16 %v2885
        %v3030 = vunpack.c.h.s8.bf16 %v2885
        %v3031 = vunpack.c.l.s8.bf16 %v2886
        %v3032 = vunpack.c.h.s8.bf16 %v2886
        %v3033 = vunpack.c.l.s8.bf16 %v2887
        %v3034 = vunpack.c.h.s8.bf16 %v2887
        %v3035 = vunpack.c.l.s8.bf16 %v2888
        %v3036 = vunpack.c.h.s8.bf16 %v2888
        %v3037 = vunpack.c.l.s8.bf16 %v2889
        %v3038 = vunpack.c.h.s8.bf16 %v2889
        %v3039 = vunpack.c.l.s8.bf16 %v2890
        %v3040 = vunpack.c.h.s8.bf16 %v2890
        %v3041 = vunpack.c.l.s8.bf16 %v2891
        %v3042 = vunpack.c.h.s8.bf16 %v2891
        %v3043 = vunpack.c.l.s8.bf16 %v2892
        %v3044 = vunpack.c.h.s8.bf16 %v2892
        %v3045 = vunpack.c.l.s8.bf16 %v2893
        %v3046 = vunpack.c.h.s8.bf16 %v2893
        %v3047 = vunpack.c.l.s8.bf16 %v2894
        %v3048 = vunpack.c.h.s8.bf16 %v2894
        %v3049 = vunpack.c.l.s8.bf16 %v2895
        %v3050 = vunpack.c.h.s8.bf16 %v2895
        %v3051 = vunpack.c.l.s8.bf16 %v2896
        %v3052 = vunpack.c.h.s8.bf16 %v2896
        %v3053 = vunpack.c.l.s8.bf16 %v2897
        %v3054 = vunpack.c.h.s8.bf16 %v2897
        %v3055 = vunpack.c.l.s8.bf16 %v2898
        %v3056 = vunpack.c.h.s8.bf16 %v2898
        %v3057 = vunpack.c.l.s8.bf16 %v2899
        %v3058 = vunpack.c.h.s8.bf16 %v2899
        %v3059 = vunpack.c.l.s8.bf16 %v2900
        %v3060 = vunpack.c.h.s8.bf16 %v2900
        %v3061 = vunpack.c.l.s8.bf16 %v2901
        %v3062 = vunpack.c.h.s8.bf16 %v2901
        %v3063 = vunpack.c.l.s8.bf16 %v2902
        %v3064 = vunpack.c.h.s8.bf16 %v2902
        %v3065 = vunpack.c.l.s8.bf16 %v2903
        %v3066 = vunpack.c.h.s8.bf16 %v2903
        %v3067 = vunpack.c.l.s8.bf16 %v2904
        %v3068 = vunpack.c.h.s8.bf16 %v2904
        %v3069 = vunpack.c.l.s8.bf16 %v2905
        %v3070 = vunpack.c.h.s8.bf16 %v2905
        %v3071 = vunpack.c.l.s8.bf16 %v2906
        %v3072 = vunpack.c.h.s8.bf16 %v2906
        %v3073 = vunpack.c.l.s8.bf16 %v2907
        %v3074 = vunpack.c.h.s8.bf16 %v2907
        %v3075 = vunpack.c.l.s8.bf16 %v2908
        %v3076 = vunpack.c.h.s8.bf16 %v2908
        %v3077 = vunpack.c.l.s8.bf16 %v2909
        %v3078 = vunpack.c.h.s8.bf16 %v2909
        %v3079 = vunpack.c.l.s8.bf16 %v2910
        %v3080 = vunpack.c.h.s8.bf16 %v2910
        %v3081 = vunpack.c.l.s8.bf16 %v2911
        %v3082 = vunpack.c.h.s8.bf16 %v2911
        %v3083 = vunpack.c.l.s8.bf16 %v2912
        %v3084 = vunpack.c.h.s8.bf16 %v2912
        %v3085 = vunpack.c.l.s8.bf16 %v2913
        %v3086 = vunpack.c.h.s8.bf16 %v2913
        %v3087 = vunpack.c.l.s8.bf16 %v2914
        %v3088 = vunpack.c.h.s8.bf16 %v2914
        %v3089 = vunpack.c.l.s8.bf16 %v2915
        %v3090 = vunpack.c.h.s8.bf16 %v2915
        %v3091 = vunpack.c.l.s8.bf16 %v2916
        %v3092 = vunpack.c.h.s8.bf16 %v2916
        %v3093 = vunpack.c.l.s8.bf16 %v2917
        %v3094 = vunpack.c.h.s8.bf16 %v2917
        %v3095 = vunpack.c.l.s8.bf16 %v2918
        %v3096 = vunpack.c.h.s8.bf16 %v2918
        %v3097 = vunpack.c.l.s8.bf16 %v2919
        %v3098 = vunpack.c.h.s8.bf16 %v2919
        %v3099 = vunpack.c.l.s8.bf16 %v2920
        %v3100 = vunpack.c.h.s8.bf16 %v2920
        %v3101 = vunpack.c.l.s8.bf16 %v2921
        %v3102 = vunpack.c.h.s8.bf16 %v2921
        %v3103 = vunpack.c.l.s8.bf16 %v2922
        %v3104 = vunpack.c.h.s8.bf16 %v2922
        %v3105 = vunpack.c.l.s8.bf16 %v2923
        %v3106 = vunpack.c.h.s8.bf16 %v2923
        %v3107 = vunpack.c.l.s8.bf16 %v2924
        %v3108 = vunpack.c.h.s8.bf16 %v2924
        %v3109 = vunpack.c.l.s8.bf16 %v2925
        %v3110 = vunpack.c.h.s8.bf16 %v2925
        %v3111 = vunpack.c.l.s8.bf16 %v2926
        %v3112 = vunpack.c.h.s8.bf16 %v2926
        %v3113 = vunpack.c.l.s8.bf16 %v2927
        %v3114 = vunpack.c.h.s8.bf16 %v2927
        %v3115 = vunpack.c.l.s8.bf16 %v2928
        %v3116 = vunpack.c.h.s8.bf16 %v2928
        %v3117 = vunpack.c.l.s8.bf16 %v2929
        %v3118 = vunpack.c.h.s8.bf16 %v2929
        %v3119 = vunpack.c.l.s8.bf16 %v2930
        %v3120 = vunpack.c.h.s8.bf16 %v2930
        %v3121 = vunpack.c.l.s8.bf16 %v2931
        %v3122 = vunpack.c.h.s8.bf16 %v2931
        %v3123 = vunpack.c.l.s8.bf16 %v2932
        %v3124 = vunpack.c.h.s8.bf16 %v2932
        %v3125 = vunpack.c.l.s8.bf16 %v2933
        %v3126 = vunpack.c.h.s8.bf16 %v2933
        %v3127 = vunpack.c.l.s8.bf16 %v2934
        %v3128 = vunpack.c.h.s8.bf16 %v2934
        %v3129 = vunpack.c.l.s8.bf16 %v2935
        %v3130 = vunpack.c.h.s8.bf16 %v2935
        %v3131 = vunpack.c.l.s8.bf16 %v2936
        %v3132 = vunpack.c.h.s8.bf16 %v2936
        %v3133 = vunpack.c.l.s8.bf16 %v2937
        %v3134 = vunpack.c.h.s8.bf16 %v2937
        %v3135 = vunpack.c.l.s8.bf16 %v2938
        %v3136 = vunpack.c.h.s8.bf16 %v2938
        %v3137 = vunpack.c.l.s8.bf16 %v2939
        %v3138 = vunpack.c.h.s8.bf16 %v2939
        %v3139 = vunpack.c.l.s8.bf16 %v2940
        %v3140 = vunpack.c.h.s8.bf16 %v2940
        %3141 = vmatprep.subr.bf16.mxu0 0
        %3142 = vmatpush1.bf16.msra.mxu0 %v2948
        %3143 = vmatprep.subr.bf16.mxu0 0
        %3144 = vmatpush1.bf16.msra.mxu0 %v2947
        %3145 = vmatprep.subr.bf16.mxu0 0
        %3146 = vmatpush1.bf16.msra.mxu0 %v2946
        %3147 = vmatprep.subr.bf16.mxu0 0
        %3148 = vmatpush1.bf16.msra.mxu0 %v2945
        %3149 = vmatprep.subr.bf16.mxu0 0
        %3150 = vmatpush1.bf16.msra.mxu0 %v2944
        %3151 = vmatprep.subr.bf16.mxu0 0
        %3152 = vmatpush1.bf16.msra.mxu0 %v2943
        %3153 = vmatprep.subr.bf16.mxu0 0
        %3154 = vmatpush1.bf16.msra.mxu0 %v2942
        %3155 = vmatprep.subr.bf16.mxu0 0
        %3156 = vmatpush1.bf16.msra.mxu0 %v2941
        %3157 = vmatprep.subr.bf16.mxu0 0
        %3158 = vmatpush2.bf16.msra.mxu0 %v2956
        %3159 = vmatprep.subr.bf16.mxu0 0
        %3160 = vmatpush2.bf16.msra.mxu0 %v2955
        %3161 = vmatprep.subr.bf16.mxu0 0
        %3162 = vmatpush2.bf16.msra.mxu0 %v2954
        %3163 = vmatprep.subr.bf16.mxu0 0
        %3164 = vmatpush2.bf16.msra.mxu0 %v2953
        %3165 = vmatprep.subr.bf16.mxu0 0
        %3166 = vmatpush2.bf16.msra.mxu0 %v2952
        %3167 = vmatprep.subr.bf16.mxu0 0
        %3168 = vmatpush2.bf16.msra.mxu0 %v2951
        %3169 = vmatprep.subr.bf16.mxu0 0
        %3170 = vmatpush2.bf16.msra.mxu0 %v2950
        %3171 = vmatprep.subr.bf16.mxu0 0
        %3172 = vmatpush2.bf16.msra.mxu0 %v2949
        %3173 = vmatprep.mubr.bf16.mxu0 %v2817
        %3174 = vmatmul.mubr.bf16.gmra.mxu0 %v2816
        %v3175 = vpop.f32.mrf.mxu0
        %v3176 = vadd.f32 0.0, %v3175
        %v3177 = vpop.f32.mrf.mxu0
        %v3178 = vpop.f32.mrf.mxu0
        %v3179 = vpop.f32.mrf.mxu0
        %3180 = vdwg.mxu0
        %3181 = vmatprep.subr.bf16.mxu0 0
        %3182 = vmatpush1.bf16.msra.mxu0 %v2964
        %3183 = vmatprep.subr.bf16.mxu0 0
        %3184 = vmatpush1.bf16.msra.mxu0 %v2963
        %3185 = vmatprep.subr.bf16.mxu0 0
        %3186 = vmatpush1.bf16.msra.mxu0 %v2962
        %3187 = vmatprep.subr.bf16.mxu0 0
        %3188 = vmatpush1.bf16.msra.mxu0 %v2961
        %3189 = vmatprep.subr.bf16.mxu0 0
        %3190 = vmatpush1.bf16.msra.mxu0 %v2960
        %3191 = vmatprep.subr.bf16.mxu0 0
        %3192 = vmatpush1.bf16.msra.mxu0 %v2959
        %3193 = vmatprep.subr.bf16.mxu0 0
        %3194 = vmatpush1.bf16.msra.mxu0 %v2958
        %3195 = vmatprep.subr.bf16.mxu0 0
        %3196 = vmatpush1.bf16.msra.mxu0 %v2957
        %3197 = vmatprep.subr.bf16.mxu0 0
        %3198 = vmatpush2.bf16.msra.mxu0 %v2972
        %3199 = vmatprep.subr.bf16.mxu0 0
        %3200 = vmatpush2.bf16.msra.mxu0 %v2971
        %3201 = vmatprep.subr.bf16.mxu0 0
        %3202 = vmatpush2.bf16.msra.mxu0 %v2970
        %3203 = vmatprep.subr.bf16.mxu0 0
        %3204 = vmatpush2.bf16.msra.mxu0 %v2969
        %3205 = vmatprep.subr.bf16.mxu0 0
        %3206 = vmatpush2.bf16.msra.mxu0 %v2968
        %3207 = vmatprep.subr.bf16.mxu0 0
        %3208 = vmatpush2.bf16.msra.mxu0 %v2967
        %3209 = vmatprep.subr.bf16.mxu0 0
        %3210 = vmatpush2.bf16.msra.mxu0 %v2966
        %3211 = vmatprep.subr.bf16.mxu0 0
        %3212 = vmatpush2.bf16.msra.mxu0 %v2965
        %3213 = vmatprep.mubr.bf16.mxu0 %v2819
        %3214 = vmatmul.mubr.bf16.gmra.mxu0 %v2818
        %v3215 = vpop.f32.mrf.mxu0
        %v3216 = vadd.f32 %v3176, %v3215
        %v3217 = vpop.f32.mrf.mxu0
        %v3218 = vpop.f32.mrf.mxu0
        %v3219 = vpop.f32.mrf.mxu0
        %3220 = vdwg.mxu0
        %3221 = vmatprep.subr.bf16.mxu0 0
        %3222 = vmatpush1.bf16.msra.mxu0 %v2980
        %3223 = vmatprep.subr.bf16.mxu0 0
        %3224 = vmatpush1.bf16.msra.mxu0 %v2979
        %3225 = vmatprep.subr.bf16.mxu0 0
        %3226 = vmatpush1.bf16.msra.mxu0 %v2978
        %3227 = vmatprep.subr.bf16.mxu0 0
        %3228 = vmatpush1.bf16.msra.mxu0 %v2977
        %3229 = vmatprep.subr.bf16.mxu0 0
        %3230 = vmatpush1.bf16.msra.mxu0 %v2976
        %3231 = vmatprep.subr.bf16.mxu0 0
        %3232 = vmatpush1.bf16.msra.mxu0 %v2975
        %3233 = vmatprep.subr.bf16.mxu0 0
        %3234 = vmatpush1.bf16.msra.mxu0 %v2974
        %3235 = vmatprep.subr.bf16.mxu0 0
        %3236 = vmatpush1.bf16.msra.mxu0 %v2973
        %3237 = vmatprep.subr.bf16.mxu0 0
        %3238 = vmatpush2.bf16.msra.mxu0 %v2988
        %3239 = vmatprep.subr.bf16.mxu0 0
        %3240 = vmatpush2.bf16.msra.mxu0 %v2987
        %3241 = vmatprep.subr.bf16.mxu0 0
        %3242 = vmatpush2.bf16.msra.mxu0 %v2986
        %3243 = vmatprep.subr.bf16.mxu0 0
        %3244 = vmatpush2.bf16.msra.mxu0 %v2985
        %3245 = vmatprep.subr.bf16.mxu0 0
        %3246 = vmatpush2.bf16.msra.mxu0 %v2984
        %3247 = vmatprep.subr.bf16.mxu0 0
        %3248 = vmatpush2.bf16.msra.mxu0 %v2983
        %3249 = vmatprep.subr.bf16.mxu0 0
        %3250 = vmatpush2.bf16.msra.mxu0 %v2982
        %3251 = vmatprep.subr.bf16.mxu0 0
        %3252 = vmatpush2.bf16.msra.mxu0 %v2981
        %3253 = vmatprep.mubr.bf16.mxu0 %v2821
        %3254 = vmatmul.mubr.bf16.gmra.mxu0 %v2820
        %v3255 = vpop.f32.mrf.mxu0
        %v3256 = vadd.f32 %v3216, %v3255
        %v3257 = vpop.f32.mrf.mxu0
        %v3258 = vpop.f32.mrf.mxu0
        %v3259 = vpop.f32.mrf.mxu0
        %3260 = vdwg.mxu0
        %3261 = vmatprep.subr.bf16.mxu0 0
        %3262 = vmatpush1.bf16.msra.mxu0 %v2996
        %3263 = vmatprep.subr.bf16.mxu0 0
        %3264 = vmatpush1.bf16.msra.mxu0 %v2995
        %3265 = vmatprep.subr.bf16.mxu0 0
        %3266 = vmatpush1.bf16.msra.mxu0 %v2994
        %3267 = vmatprep.subr.bf16.mxu0 0
        %3268 = vmatpush1.bf16.msra.mxu0 %v2993
        %3269 = vmatprep.subr.bf16.mxu0 0
        %3270 = vmatpush1.bf16.msra.mxu0 %v2992
        %3271 = vmatprep.subr.bf16.mxu0 0
        %3272 = vmatpush1.bf16.msra.mxu0 %v2991
        %3273 = vmatprep.subr.bf16.mxu0 0
        %3274 = vmatpush1.bf16.msra.mxu0 %v2990
        %3275 = vmatprep.subr.bf16.mxu0 0
        %3276 = vmatpush1.bf16.msra.mxu0 %v2989
        %3277 = vmatprep.subr.bf16.mxu0 0
        %3278 = vmatpush2.bf16.msra.mxu0 %v3004
        %3279 = vmatprep.subr.bf16.mxu0 0
        %3280 = vmatpush2.bf16.msra.mxu0 %v3003
        %3281 = vmatprep.subr.bf16.mxu0 0
        %3282 = vmatpush2.bf16.msra.mxu0 %v3002
        %3283 = vmatprep.subr.bf16.mxu0 0
        %3284 = vmatpush2.bf16.msra.mxu0 %v3001
        %3285 = vmatprep.subr.bf16.mxu0 0
        %3286 = vmatpush2.bf16.msra.mxu0 %v3000
        %3287 = vmatprep.subr.bf16.mxu0 0
        %3288 = vmatpush2.bf16.msra.mxu0 %v2999
        %3289 = vmatprep.subr.bf16.mxu0 0
        %3290 = vmatpush2.bf16.msra.mxu0 %v2998
        %3291 = vmatprep.subr.bf16.mxu0 0
        %3292 = vmatpush2.bf16.msra.mxu0 %v2997
        %3293 = vmatprep.mubr.bf16.mxu0 %v2823
        %3294 = vmatmul.mubr.bf16.gmra.mxu0 %v2822
        %v3295 = vpop.f32.mrf.mxu0
        %v3296 = vadd.f32 %v3256, %v3295
        %v3297 = vpop.f32.mrf.mxu0
        %v3298 = vpop.f32.mrf.mxu0
        %v3299 = vpop.f32.mrf.mxu0
        %3300 = vdwg.mxu0
        %3301 = vmatprep.subr.bf16.mxu0 0
        %3302 = vmatpush1.bf16.msra.mxu0 %v3012
        %3303 = vmatprep.subr.bf16.mxu0 0
        %3304 = vmatpush1.bf16.msra.mxu0 %v3011
        %3305 = vmatprep.subr.bf16.mxu0 0
        %3306 = vmatpush1.bf16.msra.mxu0 %v3010
        %3307 = vmatprep.subr.bf16.mxu0 0
        %3308 = vmatpush1.bf16.msra.mxu0 %v3009
        %3309 = vmatprep.subr.bf16.mxu0 0
        %3310 = vmatpush1.bf16.msra.mxu0 %v3008
        %3311 = vmatprep.subr.bf16.mxu0 0
        %3312 = vmatpush1.bf16.msra.mxu0 %v3007
        %3313 = vmatprep.subr.bf16.mxu0 0
        %3314 = vmatpush1.bf16.msra.mxu0 %v3006
        %3315 = vmatprep.subr.bf16.mxu0 0
        %3316 = vmatpush1.bf16.msra.mxu0 %v3005
        %3317 = vmatprep.subr.bf16.mxu0 0
        %3318 = vmatpush2.bf16.msra.mxu0 %v3020
        %3319 = vmatprep.subr.bf16.mxu0 0
        %3320 = vmatpush2.bf16.msra.mxu0 %v3019
        %3321 = vmatprep.subr.bf16.mxu0 0
        %3322 = vmatpush2.bf16.msra.mxu0 %v3018
        %3323 = vmatprep.subr.bf16.mxu0 0
        %3324 = vmatpush2.bf16.msra.mxu0 %v3017
        %3325 = vmatprep.subr.bf16.mxu0 0
        %3326 = vmatpush2.bf16.msra.mxu0 %v3016
        %3327 = vmatprep.subr.bf16.mxu0 0
        %3328 = vmatpush2.bf16.msra.mxu0 %v3015
        %3329 = vmatprep.subr.bf16.mxu0 0
        %3330 = vmatpush2.bf16.msra.mxu0 %v3014
        %3331 = vmatprep.subr.bf16.mxu0 0
        %3332 = vmatpush2.bf16.msra.mxu0 %v3013
        %3333 = vmatprep.mubr.bf16.mxu0 %v2825
        %3334 = vmatmul.mubr.bf16.gmra.mxu0 %v2824
        %v3335 = vpop.f32.mrf.mxu0
        %v3336 = vadd.f32 %v3296, %v3335
        %v3337 = vpop.f32.mrf.mxu0
        %v3338 = vpop.f32.mrf.mxu0
        %v3339 = vpop.f32.mrf.mxu0
        %3340 = vdwg.mxu0
        %3341 = vmatprep.subr.bf16.mxu0 0
        %3342 = vmatpush1.bf16.msra.mxu0 %v3028
        %3343 = vmatprep.subr.bf16.mxu0 0
        %3344 = vmatpush1.bf16.msra.mxu0 %v3027
        %3345 = vmatprep.subr.bf16.mxu0 0
        %3346 = vmatpush1.bf16.msra.mxu0 %v3026
        %3347 = vmatprep.subr.bf16.mxu0 0
        %3348 = vmatpush1.bf16.msra.mxu0 %v3025
        %3349 = vmatprep.subr.bf16.mxu0 0
        %3350 = vmatpush1.bf16.msra.mxu0 %v3024
        %3351 = vmatprep.subr.bf16.mxu0 0
        %3352 = vmatpush1.bf16.msra.mxu0 %v3023
        %3353 = vmatprep.subr.bf16.mxu0 0
        %3354 = vmatpush1.bf16.msra.mxu0 %v3022
        %3355 = vmatprep.subr.bf16.mxu0 0
        %3356 = vmatpush1.bf16.msra.mxu0 %v3021
        %3357 = vmatprep.subr.bf16.mxu0 0
        %3358 = vmatpush2.bf16.msra.mxu0 %v3036
        %3359 = vmatprep.subr.bf16.mxu0 0
        %3360 = vmatpush2.bf16.msra.mxu0 %v3035
        %3361 = vmatprep.subr.bf16.mxu0 0
        %3362 = vmatpush2.bf16.msra.mxu0 %v3034
        %3363 = vmatprep.subr.bf16.mxu0 0
        %3364 = vmatpush2.bf16.msra.mxu0 %v3033
        %3365 = vmatprep.subr.bf16.mxu0 0
        %3366 = vmatpush2.bf16.msra.mxu0 %v3032
        %3367 = vmatprep.subr.bf16.mxu0 0
        %3368 = vmatpush2.bf16.msra.mxu0 %v3031
        %3369 = vmatprep.subr.bf16.mxu0 0
        %3370 = vmatpush2.bf16.msra.mxu0 %v3030
        %3371 = vmatprep.subr.bf16.mxu0 0
        %3372 = vmatpush2.bf16.msra.mxu0 %v3029
        %3373 = vmatprep.mubr.bf16.mxu0 %v2827
        %3374 = vmatmul.mubr.bf16.gmra.mxu0 %v2826
        %v3375 = vpop.f32.mrf.mxu0
        %v3376 = vadd.f32 %v3336, %v3375
        %v3377 = vpop.f32.mrf.mxu0
        %v3378 = vpop.f32.mrf.mxu0
        %v3379 = vpop.f32.mrf.mxu0
        %3380 = vdwg.mxu0
        %3381 = vmatprep.subr.bf16.mxu0 0
        %3382 = vmatpush1.bf16.msra.mxu0 %v3044
        %3383 = vmatprep.subr.bf16.mxu0 0
        %3384 = vmatpush1.bf16.msra.mxu0 %v3043
        %3385 = vmatprep.subr.bf16.mxu0 0
        %3386 = vmatpush1.bf16.msra.mxu0 %v3042
        %3387 = vmatprep.subr.bf16.mxu0 0
        %3388 = vmatpush1.bf16.msra.mxu0 %v3041
        %3389 = vmatprep.subr.bf16.mxu0 0
        %3390 = vmatpush1.bf16.msra.mxu0 %v3040
        %3391 = vmatprep.subr.bf16.mxu0 0
        %3392 = vmatpush1.bf16.msra.mxu0 %v3039
        %3393 = vmatprep.subr.bf16.mxu0 0
        %3394 = vmatpush1.bf16.msra.mxu0 %v3038
        %3395 = vmatprep.subr.bf16.mxu0 0
        %3396 = vmatpush1.bf16.msra.mxu0 %v3037
        %3397 = vmatprep.subr.bf16.mxu0 0
        %3398 = vmatpush2.bf16.msra.mxu0 %v3052
        %3399 = vmatprep.subr.bf16.mxu0 0
        %3400 = vmatpush2.bf16.msra.mxu0 %v3051
        %3401 = vmatprep.subr.bf16.mxu0 0
        %3402 = vmatpush2.bf16.msra.mxu0 %v3050
        %3403 = vmatprep.subr.bf16.mxu0 0
        %3404 = vmatpush2.bf16.msra.mxu0 %v3049
        %3405 = vmatprep.subr.bf16.mxu0 0
        %3406 = vmatpush2.bf16.msra.mxu0 %v3048
        %3407 = vmatprep.subr.bf16.mxu0 0
        %3408 = vmatpush2.bf16.msra.mxu0 %v3047
        %3409 = vmatprep.subr.bf16.mxu0 0
        %3410 = vmatpush2.bf16.msra.mxu0 %v3046
        %3411 = vmatprep.subr.bf16.mxu0 0
        %3412 = vmatpush2.bf16.msra.mxu0 %v3045
        %3413 = vmatprep.mubr.bf16.mxu0 %v2829
        %3414 = vmatmul.mubr.bf16.gmra.mxu0 %v2828
        %v3415 = vpop.f32.mrf.mxu0
        %v3416 = vadd.f32 %v3376, %v3415
        %v3417 = vpop.f32.mrf.mxu0
        %v3418 = vpop.f32.mrf.mxu0
        %v3419 = vpop.f32.mrf.mxu0
        %3420 = vdwg.mxu0
        %3421 = vmatprep.subr.bf16.mxu0 0
        %3422 = vmatpush1.bf16.msra.mxu0 %v3060
        %3423 = vmatprep.subr.bf16.mxu0 0
        %3424 = vmatpush1.bf16.msra.mxu0 %v3059
        %3425 = vmatprep.subr.bf16.mxu0 0
        %3426 = vmatpush1.bf16.msra.mxu0 %v3058
        %3427 = vmatprep.subr.bf16.mxu0 0
        %3428 = vmatpush1.bf16.msra.mxu0 %v3057
        %3429 = vmatprep.subr.bf16.mxu0 0
        %3430 = vmatpush1.bf16.msra.mxu0 %v3056
        %3431 = vmatprep.subr.bf16.mxu0 0
        %3432 = vmatpush1.bf16.msra.mxu0 %v3055
        %3433 = vmatprep.subr.bf16.mxu0 0
        %3434 = vmatpush1.bf16.msra.mxu0 %v3054
        %3435 = vmatprep.subr.bf16.mxu0 0
        %3436 = vmatpush1.bf16.msra.mxu0 %v3053
        %3437 = vmatprep.subr.bf16.mxu0 0
        %3438 = vmatpush2.bf16.msra.mxu0 %v3068
        %3439 = vmatprep.subr.bf16.mxu0 0
        %3440 = vmatpush2.bf16.msra.mxu0 %v3067
        %3441 = vmatprep.subr.bf16.mxu0 0
        %3442 = vmatpush2.bf16.msra.mxu0 %v3066
        %3443 = vmatprep.subr.bf16.mxu0 0
        %3444 = vmatpush2.bf16.msra.mxu0 %v3065
        %3445 = vmatprep.subr.bf16.mxu0 0
        %3446 = vmatpush2.bf16.msra.mxu0 %v3064
        %3447 = vmatprep.subr.bf16.mxu0 0
        %3448 = vmatpush2.bf16.msra.mxu0 %v3063
        %3449 = vmatprep.subr.bf16.mxu0 0
        %3450 = vmatpush2.bf16.msra.mxu0 %v3062
        %3451 = vmatprep.subr.bf16.mxu0 0
        %3452 = vmatpush2.bf16.msra.mxu0 %v3061
        %3453 = vmatprep.mubr.bf16.mxu0 %v2831
        %3454 = vmatmul.mubr.bf16.gmra.mxu0 %v2830
        %v3455 = vpop.f32.mrf.mxu0
        %v3456 = vadd.f32 %v3416, %v3455
        %v3457 = vpop.f32.mrf.mxu0
        %v3458 = vpop.f32.mrf.mxu0
        %v3459 = vpop.f32.mrf.mxu0
        %3460 = vdwg.mxu0
        %3461 = vmatprep.subr.bf16.mxu0 0
        %3462 = vmatpush1.bf16.msra.mxu0 %v3076
        %3463 = vmatprep.subr.bf16.mxu0 0
        %3464 = vmatpush1.bf16.msra.mxu0 %v3075
        %3465 = vmatprep.subr.bf16.mxu0 0
        %3466 = vmatpush1.bf16.msra.mxu0 %v3074
        %3467 = vmatprep.subr.bf16.mxu0 0
        %3468 = vmatpush1.bf16.msra.mxu0 %v3073
        %3469 = vmatprep.subr.bf16.mxu0 0
        %3470 = vmatpush1.bf16.msra.mxu0 %v3072
        %3471 = vmatprep.subr.bf16.mxu0 0
        %3472 = vmatpush1.bf16.msra.mxu0 %v3071
        %3473 = vmatprep.subr.bf16.mxu0 0
        %3474 = vmatpush1.bf16.msra.mxu0 %v3070
        %3475 = vmatprep.subr.bf16.mxu0 0
        %3476 = vmatpush1.bf16.msra.mxu0 %v3069
        %3477 = vmatprep.subr.bf16.mxu0 0
        %3478 = vmatpush2.bf16.msra.mxu0 %v3084
        %3479 = vmatprep.subr.bf16.mxu0 0
        %3480 = vmatpush2.bf16.msra.mxu0 %v3083
        %3481 = vmatprep.subr.bf16.mxu0 0
        %3482 = vmatpush2.bf16.msra.mxu0 %v3082
        %3483 = vmatprep.subr.bf16.mxu0 0
        %3484 = vmatpush2.bf16.msra.mxu0 %v3081
        %3485 = vmatprep.subr.bf16.mxu0 0
        %3486 = vmatpush2.bf16.msra.mxu0 %v3080
        %3487 = vmatprep.subr.bf16.mxu0 0
        %3488 = vmatpush2.bf16.msra.mxu0 %v3079
        %3489 = vmatprep.subr.bf16.mxu0 0
        %3490 = vmatpush2.bf16.msra.mxu0 %v3078
        %3491 = vmatprep.subr.bf16.mxu0 0
        %3492 = vmatpush2.bf16.msra.mxu0 %v3077
        %3493 = vmatprep.mubr.bf16.mxu0 %v2833
        %3494 = vmatmul.mubr.bf16.gmra.mxu0 %v2832
        %v3495 = vpop.f32.mrf.mxu0
        %v3496 = vadd.f32 %v3456, %v3495
        %v3497 = vpop.f32.mrf.mxu0
        %v3498 = vpop.f32.mrf.mxu0
        %v3499 = vpop.f32.mrf.mxu0
        %3500 = vdwg.mxu0
        %3501 = vmatprep.subr.bf16.mxu0 0
        %3502 = vmatpush1.bf16.msra.mxu0 %v3092
        %3503 = vmatprep.subr.bf16.mxu0 0
        %3504 = vmatpush1.bf16.msra.mxu0 %v3091
        %3505 = vmatprep.subr.bf16.mxu0 0
        %3506 = vmatpush1.bf16.msra.mxu0 %v3090
        %3507 = vmatprep.subr.bf16.mxu0 0
        %3508 = vmatpush1.bf16.msra.mxu0 %v3089
        %3509 = vmatprep.subr.bf16.mxu0 0
        %3510 = vmatpush1.bf16.msra.mxu0 %v3088
        %3511 = vmatprep.subr.bf16.mxu0 0
        %3512 = vmatpush1.bf16.msra.mxu0 %v3087
        %3513 = vmatprep.subr.bf16.mxu0 0
        %3514 = vmatpush1.bf16.msra.mxu0 %v3086
        %3515 = vmatprep.subr.bf16.mxu0 0
        %3516 = vmatpush1.bf16.msra.mxu0 %v3085
        %3517 = vmatprep.subr.bf16.mxu0 0
        %3518 = vmatpush2.bf16.msra.mxu0 %v3100
        %3519 = vmatprep.subr.bf16.mxu0 0
        %3520 = vmatpush2.bf16.msra.mxu0 %v3099
        %3521 = vmatprep.subr.bf16.mxu0 0
        %3522 = vmatpush2.bf16.msra.mxu0 %v3098
        %3523 = vmatprep.subr.bf16.mxu0 0
        %3524 = vmatpush2.bf16.msra.mxu0 %v3097
        %3525 = vmatprep.subr.bf16.mxu0 0
        %3526 = vmatpush2.bf16.msra.mxu0 %v3096
        %3527 = vmatprep.subr.bf16.mxu0 0
        %3528 = vmatpush2.bf16.msra.mxu0 %v3095
        %3529 = vmatprep.subr.bf16.mxu0 0
        %3530 = vmatpush2.bf16.msra.mxu0 %v3094
        %3531 = vmatprep.subr.bf16.mxu0 0
        %3532 = vmatpush2.bf16.msra.mxu0 %v3093
        %3533 = vmatprep.mubr.bf16.mxu0 %v2835
        %3534 = vmatmul.mubr.bf16.gmra.mxu0 %v2834
        %v3535 = vpop.f32.mrf.mxu0
        %v3536 = vadd.f32 %v3496, %v3535
        %v3537 = vpop.f32.mrf.mxu0
        %v3538 = vpop.f32.mrf.mxu0
        %v3539 = vpop.f32.mrf.mxu0
        %3540 = vdwg.mxu0
        %3541 = vmatprep.subr.bf16.mxu0 0
        %3542 = vmatpush1.bf16.msra.mxu0 %v3108
        %3543 = vmatprep.subr.bf16.mxu0 0
        %3544 = vmatpush1.bf16.msra.mxu0 %v3107
        %3545 = vmatprep.subr.bf16.mxu0 0
        %3546 = vmatpush1.bf16.msra.mxu0 %v3106
        %3547 = vmatprep.subr.bf16.mxu0 0
        %3548 = vmatpush1.bf16.msra.mxu0 %v3105
        %3549 = vmatprep.subr.bf16.mxu0 0
        %3550 = vmatpush1.bf16.msra.mxu0 %v3104
        %3551 = vmatprep.subr.bf16.mxu0 0
        %3552 = vmatpush1.bf16.msra.mxu0 %v3103
        %3553 = vmatprep.subr.bf16.mxu0 0
        %3554 = vmatpush1.bf16.msra.mxu0 %v3102
        %3555 = vmatprep.subr.bf16.mxu0 0
        %3556 = vmatpush1.bf16.msra.mxu0 %v3101
        %3557 = vmatprep.subr.bf16.mxu0 0
        %3558 = vmatpush2.bf16.msra.mxu0 %v3116
        %3559 = vmatprep.subr.bf16.mxu0 0
        %3560 = vmatpush2.bf16.msra.mxu0 %v3115
        %3561 = vmatprep.subr.bf16.mxu0 0
        %3562 = vmatpush2.bf16.msra.mxu0 %v3114
        %3563 = vmatprep.subr.bf16.mxu0 0
        %3564 = vmatpush2.bf16.msra.mxu0 %v3113
        %3565 = vmatprep.subr.bf16.mxu0 0
        %3566 = vmatpush2.bf16.msra.mxu0 %v3112
        %3567 = vmatprep.subr.bf16.mxu0 0
        %3568 = vmatpush2.bf16.msra.mxu0 %v3111
        %3569 = vmatprep.subr.bf16.mxu0 0
        %3570 = vmatpush2.bf16.msra.mxu0 %v3110
        %3571 = vmatprep.subr.bf16.mxu0 0
        %3572 = vmatpush2.bf16.msra.mxu0 %v3109
        %3573 = vmatprep.mubr.bf16.mxu0 %v2837
        %3574 = vmatmul.mubr.bf16.gmra.mxu0 %v2836
        %v3575 = vpop.f32.mrf.mxu0
        %v3576 = vadd.f32 %v3536, %v3575
        %v3577 = vpop.f32.mrf.mxu0
        %v3578 = vpop.f32.mrf.mxu0
        %v3579 = vpop.f32.mrf.mxu0
        %3580 = vdwg.mxu0
        %3581 = vmatprep.subr.bf16.mxu0 0
        %3582 = vmatpush1.bf16.msra.mxu0 %v3124
        %3583 = vmatprep.subr.bf16.mxu0 0
        %3584 = vmatpush1.bf16.msra.mxu0 %v3123
        %3585 = vmatprep.subr.bf16.mxu0 0
        %3586 = vmatpush1.bf16.msra.mxu0 %v3122
        %3587 = vmatprep.subr.bf16.mxu0 0
        %3588 = vmatpush1.bf16.msra.mxu0 %v3121
        %3589 = vmatprep.subr.bf16.mxu0 0
        %3590 = vmatpush1.bf16.msra.mxu0 %v3120
        %3591 = vmatprep.subr.bf16.mxu0 0
        %3592 = vmatpush1.bf16.msra.mxu0 %v3119
        %3593 = vmatprep.subr.bf16.mxu0 0
        %3594 = vmatpush1.bf16.msra.mxu0 %v3118
        %3595 = vmatprep.subr.bf16.mxu0 0
        %3596 = vmatpush1.bf16.msra.mxu0 %v3117
        %3597 = vmatprep.subr.bf16.mxu0 0
        %3598 = vmatpush2.bf16.msra.mxu0 %v3132
        %3599 = vmatprep.subr.bf16.mxu0 0
        %3600 = vmatpush2.bf16.msra.mxu0 %v3131
        %3601 = vmatprep.subr.bf16.mxu0 0
        %3602 = vmatpush2.bf16.msra.mxu0 %v3130
        %3603 = vmatprep.subr.bf16.mxu0 0
        %3604 = vmatpush2.bf16.msra.mxu0 %v3129
        %3605 = vmatprep.subr.bf16.mxu0 0
        %3606 = vmatpush2.bf16.msra.mxu0 %v3128
        %3607 = vmatprep.subr.bf16.mxu0 0
        %3608 = vmatpush2.bf16.msra.mxu0 %v3127
        %3609 = vmatprep.subr.bf16.mxu0 0
        %3610 = vmatpush2.bf16.msra.mxu0 %v3126
        %3611 = vmatprep.subr.bf16.mxu0 0
        %3612 = vmatpush2.bf16.msra.mxu0 %v3125
        %3613 = vmatprep.mubr.bf16.mxu0 %v2839
        %3614 = vmatmul.mubr.bf16.gmra.mxu0 %v2838
        %v3615 = vpop.f32.mrf.mxu0
        %v3616 = vadd.f32 %v3576, %v3615
        %v3617 = vpop.f32.mrf.mxu0
        %v3618 = vpop.f32.mrf.mxu0
        %v3619 = vpop.f32.mrf.mxu0
        %3620 = vdwg.mxu0
        %3621 = vmatprep.subr.bf16.mxu0 0
        %3622 = vmatpush1.bf16.msra.mxu0 %v3140
        %3623 = vmatprep.subr.bf16.mxu0 0
        %3624 = vmatpush1.bf16.msra.mxu0 %v3139
        %3625 = vmatprep.subr.bf16.mxu0 0
        %3626 = vmatpush1.bf16.msra.mxu0 %v3138
        %3627 = vmatprep.subr.bf16.mxu0 0
        %3628 = vmatpush1.bf16.msra.mxu0 %v3137
        %3629 = vmatprep.subr.bf16.mxu0 0
        %3630 = vmatpush1.bf16.msra.mxu0 %v3136
        %3631 = vmatprep.subr.bf16.mxu0 0
        %3632 = vmatpush1.bf16.msra.mxu0 %v3135
        %3633 = vmatprep.subr.bf16.mxu0 0
        %3634 = vmatpush1.bf16.msra.mxu0 %v3134
        %3635 = vmatprep.subr.bf16.mxu0 0
        %3636 = vmatpush1.bf16.msra.mxu0 %v3133
        %3637 = vmatprep.subr.bf16.mxu0 0
        %3638 = vmatpush2.bf16.msra.mxu0 0
        %3639 = vmatprep.subr.bf16.mxu0 0
        %3640 = vmatpush2.bf16.msra.mxu0 0
        %3641 = vmatprep.subr.bf16.mxu0 0
        %3642 = vmatpush2.bf16.msra.mxu0 0
        %3643 = vmatprep.subr.bf16.mxu0 0
        %3644 = vmatpush2.bf16.msra.mxu0 0
        %3645 = vmatprep.subr.bf16.mxu0 0
        %3646 = vmatpush2.bf16.msra.mxu0 0
        %3647 = vmatprep.subr.bf16.mxu0 0
        %3648 = vmatpush2.bf16.msra.mxu0 0
        %3649 = vmatprep.subr.bf16.mxu0 0
        %3650 = vmatpush2.bf16.msra.mxu0 0
        %3651 = vmatprep.subr.bf16.mxu0 0
        %3652 = vmatpush2.bf16.msra.mxu0 0
        %3653 = vmatprep.mubr.bf16.mxu0 0
        %3654 = vmatmul.mubr.bf16.gmra.mxu0 %v2840
        %v3655 = vpop.f32.mrf.mxu0
        %v3656 = vadd.f32 %v3616, %v3655
        %v3657 = vpop.f32.mrf.mxu0
        %v3658 = vpop.f32.mrf.mxu0
        %v3659 = vpop.f32.mrf.mxu0
        %3660 = vdwg.mxu0
        %v3661 = vadd.f32 %v2674, %v3656
        %3662 = vst [vmem:[#allocation2] sm:$0x3] %v3661
        // Predicated region
        $region81: #{mainnet_forward.1} parent=55 // pred_check
          %p3663 = pneg %p1544
        $region82: #{mainnet_forward.1} parent=55 // pred_check_branch
          %3665 = sbr.rel (%p3663) target = $region84
        $region83: #{mainnet_forward.1} parent=55 // pred_region
          %v3666 = vld [vmem:[#allocation2] sm:$0x3]
          %v3667 = vld [vmem:[%s5] sm:$0x1]
          %v3669 = vlaneseq
          %v3670 = vshrl.u32 %v3669, 7
          %v3671 = vsub.s32 0, %v3670
          %v3672 = vrot.slane %v3667, %v3671
          %v3674 = vmul.f32 %v3666, %v3672
          %v3675 = vld [vmem:[%s6] sm:$0x1]
          %v3677 = vlaneseq
          %v3678 = vshrl.u32 %v3677, 7
          %v3679 = vsub.s32 0, %v3678
          %v3680 = vrot.slane %v3675, %v3679
          %v3682 = vadd.f32 %v3674, %v3680
          %v3683 = vmax.f32 %v3682, 0.0
          %v3684 = vld [vmem:[%s7] sm:$0x1]
          %v3685 = vlaneseq
          %v3686 = vshrl.u32 %v3685, 7
          %v3687 = vsub.s32 0, %v3686
          %v3688 = vrot.slane %v3684, %v3687
          %v3689 = vmul.f32 %v3683, %v3688
          %vm3690 = vcmask 1041408
          %v3691 = vsel %vm3690, %v3689, 0.0
          %3692 = vadd.xlane.f32.xlu0 %v3691
          %v3693 = vpop.xlane.xlu0 %3692
          %s3694 = sld [smem:[#allocation9]]
          %v3695 = vstv %s3694
          %v3696 = vadd.f32 %v3693, %v3695
          %v3697 = vld [vmem:[%s7 + $0x1] sm:$0x1]
          %v3698 = vlaneseq
          %v3699 = vshrl.u32 %v3698, 7
          %v3700 = vsub.s32 0, %v3699
          %v3701 = vrot.slane %v3697, %v3700
          %v3702 = vmul.f32 %v3683, %v3701
          %v3703 = vsel %vm3690, %v3702, 0.0
          %3704 = vadd.xlane.f32.xlu0 %v3703
          %v3705 = vpop.xlane.xlu0 %3704
          %s3706 = sld [smem:[#allocation9 + $0x1]]
          %v3707 = vstv %s3706
          %v3708 = vadd.f32 %v3705, %v3707
          %v3709 = vmax.f32 %v3696, %v3708
          %v3710 = vsub.f32 %v3696, %v3709
          %v3711 = vmul.f32 %v3710, 1.442695
          %v3712 = vpow.pop %v3711
          %v3713 = vsub.f32 %v3708, %v3709
          %v3714 = vmul.f32 %v3713, 1.442695
          %v3715 = vpow.pop %v3714
          %v3716 = vadd.f32 %v3712, %v3715
          %v3717 = vrcp.pop %v3716
          %v3718 = vmul.f32 %v3712, %v3717
          %vm3719 = vcmask 1024
          %3720 = vst.msk [vmem:[#allocation11] sm:$0x3] %vm3719, %v3718
          %v3721 = vmul.f32 %v3715, %v3717
          %vm3722 = vcmask 9224
          %3723 = vst.msk [vmem:[#allocation11] sm:$0x3] %vm3722, %v3721
        $region84: #{mainnet_forward.1} parent=55 // pred_fallthru
          _
        %s3724 = smul.u32 25, %s29
        %p3725 = scmp.lt.s32.totalorder %s3724, 49
        %s3726 = scalar_select %p3725, %s3724, 49
        %s3727 = smul.addr %s3726, 2
        %s3728 = scalar_lea.vmem %s9, %s3727
        // Predicated region
        $region85: #{mainnet_forward.1} parent=55 // pred_check
          %p3729 = pneg %p241
        $region86: #{mainnet_forward.1} parent=55 // pred_check_branch
          %3731 = sbr.rel (%p3729) target = $region88
        $region87: #{mainnet_forward.1} parent=55 // pred_region
          %s3732 = smul.u32 25, %s29
        $region88: #{mainnet_forward.1} parent=55 // pred_fallthru
          _
        // Predicated region
        $region89: #{mainnet_forward.1} parent=55 // pred_check
          %p3733 = pneg %p262
        $region90: #{mainnet_forward.1} parent=55 // pred_check_branch
          %3735 = sbr.rel (%p3733) target = $region92
        $region91: #{mainnet_forward.1} parent=55 // pred_region
          %s3737 = ssub.s32 32, 32
          %3738 = vsyncadd [#allocation6], %s3737
          %s3740 = sshll.u32 [#allocation11], 4
          %s3741 = int_to_ptr.vmem [resolvable:$true] %s3740
          %3743 = dma.vmem_to_hbm [thread:$0]  %s3741, 32, %s10, [#allocation6]
        $region92: #{mainnet_forward.1} parent=55 // pred_fallthru
          _
        // Predicated region
        $region93: #{mainnet_forward.1} parent=55 // pred_check
          %p3744 = pneg %p262
        $region94: #{mainnet_forward.1} parent=55 // pred_check_branch
          %3746 = sbr.rel (%p3744) target = $region96
        $region95: #{mainnet_forward.1} parent=55 // pred_region
          %3747 = dma.done [#allocation6], 32
        $region96: #{mainnet_forward.1} parent=55 // pred_fallthru
          _
      $region56: #{mainnet_forward.1} parent=5 // pred_fallthru
        _
      %p3748 = scmp.le.s32.totalorder 2, %s24
      // Predicated region
      $region97: #{mainnet_forward.1} parent=5 // pred_check
        %p3749 = pneg %p3748
      $region98: #{mainnet_forward.1} parent=5 // pred_check_branch
        %3751 = sbr.rel (%p3749) target = $region100
      $region99: #{mainnet_forward.1} parent=5 // pred_region
        %s3752 = ssub.s32 %s24, 2
        // Predicated region
        $region101: #{mainnet_forward.1} parent=99 // pred_check
          %p3753 = pneg %p247
        $region102: #{mainnet_forward.1} parent=99 // pred_check_branch
          %3755 = sbr.rel (%p3753) target = $region104
        $region103: #{mainnet_forward.1} parent=99 // pred_region
          %s3756 = smul.u32 25, %s30
          %p3757 = scmp.lt.s32.totalorder %s3756, 49
          %s3758 = scalar_select %p3757, %s3756, 49
          %s3759 = smul.addr %s3758, 2
          %s3760 = scalar_lea.vmem %s9, %s3759
        $region104: #{mainnet_forward.1} parent=99 // pred_fallthru
          _
      $region100: #{mainnet_forward.1} parent=5 // pred_fallthru
        _
    $region6: #{mainnet_forward.1} parent=1 // loop_footer
      %s28 = sadd.s32 1, %s24
    $region7: #{mainnet_forward.1} parent=1 // loop_footer_branch
      %23 = sbr.rel target = $region3
    $region8: #{mainnet_forward.1} parent=1 // loop_exit
      _
    %3761 = vsyncpa [#allocation5], 1
    %s3762 = scalar_lea.sflag [#allocation5], 1
    %3763 = vsyncpa %s3762, 1
    %3764 = vsyncpa [#allocation6], 1
    %s3765 = scalar_lea.sflag [#allocation6], 1
    %3766 = vsyncpa %s3765, 1
    %3767 = vsyncpa [#allocation7], 1
    %s3768 = scalar_lea.sflag [#allocation7], 1
    %3769 = vsyncpa %s3768, 1
    %3770 = vsyncpa [#allocation10], 1

</llo_original>
